<compile_context>
chip_gen: v7x
topology: tpu7x:2x2x1
jax: 0.10.0
libtpu: 0.0.40
codegen_flags: <defaults>
</compile_context>

<pallas_src>
import jax
import jax.numpy as jnp
from jax.experimental import pallas as pl
from jax.experimental.pallas import tpu as pltpu


# Tile sizes (safe for v5e/v6e/v7x VMEM budgets; clamped to actual dims below).
TM = 256
TN = 128
TK = 512

_VMEM_LIMIT = 32 * 1024 * 1024  # explicit scoped-VMEM cap (v7x-safe)


def _round_up(x, m):
    return (x + m - 1) // m * m


def _pad_to(a, shape, dtype):
    a = a.astype(dtype)
    pads = tuple((0, t - s) for s, t in zip(a.shape, shape))
    if any(p[1] for p in pads):
        a = jnp.pad(a, pads)
    return a


# ----------------------------------------------------------------------------
# im2col from channels-last activations (pure JAX re-layout; no transposes)
# ----------------------------------------------------------------------------
def _im2col_nhwc(x, kh, kw, stride, pad):
    """x: (N, H, W, C) -> (N*Ho*Wo, kh*kw*C), plus (Ho, Wo)."""
    N, H, W, C = x.shape
    xp = jnp.pad(x, ((0, 0), (pad, pad), (pad, pad), (0, 0)))
    Ho = (H + 2 * pad - kh) // stride + 1
    Wo = (W + 2 * pad - kw) // stride + 1
    cols = []
    for i in range(kh):
        for j in range(kw):
            cols.append(xp[:, i:i + stride * Ho:stride,
                           j:j + stride * Wo:stride, :])
    col = jnp.stack(cols, axis=3)                 # (N, Ho, Wo, kh*kw, C)
    col = col.reshape(N * Ho * Wo, kh * kw * C)   # K ordered (kh, kw, C)
    return col, Ho, Wo


# ----------------------------------------------------------------------------
# Pallas kernels
# ----------------------------------------------------------------------------
def _make_matmul_bn_kernel():
    """Tiled matmul; on the last K step writes the f32 pre-BN activation tile
    and per-tile per-channel (sum, sum-of-squares) partials."""
    def kernel(col_ref, w_ref, y_ref, stats_ref, acc_ref):
        k = pl.program_id(2)

        @pl.when(k == 0)
        def _():
            acc_ref[...] = jnp.zeros_like(acc_ref)

        acc_ref[...] += jnp.dot(col_ref[...], w_ref[...],
                                preferred_element_type=jnp.float32)

        @pl.when(k == pl.num_programs(2) - 1)
        def _():
            acc = acc_ref[...]
            y_ref[...] = acc.astype(y_ref.dtype)
            tn = acc.shape[1]
            s = jnp.sum(acc, axis=0, keepdims=True)            # (1, tn)
            ss = jnp.sum(acc * acc, axis=0, keepdims=True)     # (1, tn)
            rows = jax.lax.broadcasted_iota(jnp.int32, (8, tn), 0)
            tile = jnp.where(rows == 0, jnp.broadcast_to(s, (8, tn)),
                             jnp.where(rows == 1, jnp.broadcast_to(ss, (8, tn)),
                                       0.0))
            stats_ref[...] = tile[None]
    return kernel


def _make_matmul_bias_kernel(lrelu):
    """Tiled matmul with bias (+ optional LeakyReLU) fused into the writeback."""
    def kernel(col_ref, w_ref, b_ref, o_ref, acc_ref):
        k = pl.program_id(2)

        @pl.when(k == 0)
        def _():
            acc_ref[...] = jnp.zeros_like(acc_ref)

        acc_ref[...] += jnp.dot(col_ref[...], w_ref[...],
                                preferred_element_type=jnp.float32)

        @pl.when(k == pl.num_programs(2) - 1)
        def _():
            x = acc_ref[...] + b_ref[...]
            if lrelu:
                x = jnp.where(x > 0, x, 0.2 * x)
            o_ref[...] = x.astype(o_ref.dtype)
    return kernel


def _bn_lrelu_apply_kernel(y_ref, scale_ref, shift_ref, o_ref):
    """Per-tile BatchNorm apply (pre-folded scale/shift) + LeakyReLU(0.2)."""
    x = y_ref[...] * scale_ref[...] + shift_ref[...]
    o_ref[...] = jnp.where(x > 0, x, 0.2 * x).astype(o_ref.dtype)


# ----------------------------------------------------------------------------
# One conv block: conv(+bias) [+ BatchNorm(train stats)] [+ LeakyReLU(0.2)]
# ----------------------------------------------------------------------------
def conv_block(x_nhwc, w, b, gamma=None, beta=None, *,
               stride, pad, lrelu, out_dtype=jnp.bfloat16):
    """x_nhwc: (N, H, W, Cin); w: (Cout, Cin, kh, kw); returns (N, Ho, Wo, Cout)."""
    N, H, W_, Cin = x_nhwc.shape
    Cout, _, kh, kw = w.shape

    col, Ho, Wo = _im2col_nhwc(x_nhwc, kh, kw, stride, pad)
    M, K = col.shape

    # Weight reshaped to match the (kh, kw, Cin) K ordering of the patches.
    w2 = w.transpose(2, 3, 1, 0).reshape(kh * kw * Cin, Cout)

    # Padded / tiled dims (lane-dense: K, Cout multiples of 128).
    tm = min(TM, _round_up(M, 8))
    Mp = _round_up(M, tm)
    Kp0 = _round_up(K, 128)
    tk = min(TK, Kp0)
    Kp = _round_up(Kp0, tk)
    tn = TN
    Np = _round_up(Cout, tn)

    colp = _pad_to(col, (Mp, Kp), jnp.bfloat16)
    w2p = _pad_to(w2, (Kp, Np), jnp.bfloat16)

    grid = (Mp // tm, Np // tn, Kp // tk)
    n_m_tiles = grid[0]
    cparams = pltpu.CompilerParams(
        dimension_semantics=("parallel", "parallel", "arbitrary"),
        vmem_limit_bytes=_VMEM_LIMIT,
    )

    use_bn = gamma is not None
    if use_bn:
        # Phase 1: matmul + per-tile stats (bias dropped: cancelled by BN mean).
        y, stats = pl.pallas_call(
            _make_matmul_bn_kernel(),
            out_shape=(jax.ShapeDtypeStruct((Mp, Np), jnp.float32),
                       jax.ShapeDtypeStruct((n_m_tiles, 8, Np), jnp.float32)),
            grid=grid,
            in_specs=[pl.BlockSpec((tm, tk), lambda i, j, k: (i, k)),
                      pl.BlockSpec((tk, tn), lambda i, j, k: (k, j))],
            out_specs=(pl.BlockSpec((tm, tn), lambda i, j, k: (i, j)),
                       pl.BlockSpec((1, 8, tn), lambda i, j, k: (i, 0, j))),
            scratch_shapes=[pltpu.VMEM((tm, tn), jnp.float32)],
            compiler_params=cparams,
        )(colp, w2p)

        # Tiny per-channel fold of the partial sums (padded rows/cols are zero,
        # so dividing by the true M gives exact whole-batch statistics).
        s = jnp.sum(stats[:, 0, :], axis=0)
        ss = jnp.sum(stats[:, 1, :], axis=0)
        mean = s / M
        var = jnp.maximum(ss / M - mean * mean, 0.0)
        gamma_p = _pad_to(gamma, (Np,), jnp.float32)
        beta_p = _pad_to(beta, (Np,), jnp.float32)
        scale = gamma_p * jax.lax.rsqrt(var + 1e-5)
        shift = beta_p - mean * scale

        # Phase 2: apply BN + LeakyReLU per tile (lane-dense writeback).
        out = pl.pallas_call(
            _bn_lrelu_apply_kernel,
            out_shape=jax.ShapeDtypeStruct((Mp, Np), out_dtype),
            grid=(Mp // tm, Np // tn),
            in_specs=[pl.BlockSpec((tm, tn), lambda i, j: (i, j)),
                      pl.BlockSpec((1, tn), lambda i, j: (0, j)),
                      pl.BlockSpec((1, tn), lambda i, j: (0, j))],
            out_specs=pl.BlockSpec((tm, tn), lambda i, j: (i, j)),
            compiler_params=pltpu.CompilerParams(
                dimension_semantics=("parallel", "parallel"),
                vmem_limit_bytes=_VMEM_LIMIT),
        )(y, scale.reshape(1, Np), shift.reshape(1, Np))
    else:
        bp = _pad_to(b.reshape(1, Cout), (1, Np), jnp.float32)
        out = pl.pallas_call(
            _make_matmul_bias_kernel(lrelu),
            out_shape=jax.ShapeDtypeStruct((Mp, Np), out_dtype),
            grid=grid,
            in_specs=[pl.BlockSpec((tm, tk), lambda i, j, k: (i, k)),
                      pl.BlockSpec((tk, tn), lambda i, j, k: (k, j)),
                      pl.BlockSpec((1, tn), lambda i, j, k: (0, j))],
            out_specs=pl.BlockSpec((tm, tn), lambda i, j, k: (i, j)),
            scratch_shapes=[pltpu.VMEM((tm, tn), jnp.float32)],
            compiler_params=cparams,
        )(colp, w2p, bp)

    return out[:M, :Cout].reshape(N, Ho, Wo, Cout)


# ----------------------------------------------------------------------------
# Discriminator: deterministic parameter init + forward
# ----------------------------------------------------------------------------
def init_discriminator_params(key, in_channels, emb_channels=64, n_layers=3):
    def conv_init(k, cout, cin):
        k1, k2 = jax.random.split(k)
        w = jax.random.normal(k1, (cout, cin, 4, 4), jnp.float32) * 0.05
        b = jax.random.normal(k2, (cout,), jnp.float32) * 0.05
        return w, b

    keys = jax.random.split(key, n_layers + 2)
    params = []

    # layer 0: Conv(in, emb, 4, s2, p1) + LeakyReLU (no norm)
    w, b = conv_init(keys[0], emb_channels, in_channels)
    params.append(dict(w=w, b=b, gamma=None, beta=None, stride=2, lrelu=True))

    nf_mult = 1
    for n in range(1, n_layers):
        nf_prev, nf_mult = nf_mult, min(2 ** n, 8)
        cout = emb_channels * nf_mult
        w, b = conv_init(keys[n], cout, emb_channels * nf_prev)
        params.append(dict(w=w, b=b,
                           gamma=jnp.ones((cout,), jnp.float32),
                           beta=jnp.zeros((cout,), jnp.float32),
                           stride=2, lrelu=True))

    nf_prev, nf_mult = nf_mult, min(2 ** n_layers, 8)
    cout = emb_channels * nf_mult
    w, b = conv_init(keys[n_layers], cout, emb_channels * nf_prev)
    params.append(dict(w=w, b=b,
                       gamma=jnp.ones((cout,), jnp.float32),
                       beta=jnp.zeros((cout,), jnp.float32),
                       stride=1, lrelu=True))

    # final 1-channel prediction map: Conv(8*emb, 1, 4, s1, p1)
    w, b = conv_init(keys[n_layers + 1], 1, cout)
    params.append(dict(w=w, b=b, gamma=None, beta=None, stride=1, lrelu=False))
    return params


def discriminator_forward(params, x_nchw):
    """Standard forward: `self.model(inputs)` (NCHW in, NCHW out)."""
    x = jnp.transpose(x_nchw, (0, 2, 3, 1))          # NCHW -> NHWC, once
    last = len(params) - 1
    for idx, p in enumerate(params):
        out_dtype = jnp.float32 if idx == last else jnp.bfloat16
        x = conv_block(x, p["w"], p["b"], p["gamma"], p["beta"],
                       stride=p["stride"], pad=1, lrelu=p["lrelu"],
                       out_dtype=out_dtype)
    return jnp.transpose(x, (0, 3, 1, 2))            # NHWC -> NCHW, once


# ----------------------------------------------------------------------------
if __name__ == "__main__":
    key = jax.random.PRNGKey(0)
    k_param, k_input = jax.random.split(key)

    in_channels, emb_channels, n_layers = 3, 16, 3
    N, H, W = 2, 32, 32

    params = init_discriminator_params(k_param, in_channels,
                                       emb_channels=emb_channels,
                                       n_layers=n_layers)
    x = jax.random.normal(k_input, (N, in_channels, H, W), jnp.float32)

    fwd = jax.jit(lambda inp: discriminator_forward(params, inp))
    out = jax.block_until_ready(fwd(x))

    # PatchGAN output: (N, 1, 2, 2) for 32x32 input with this config.
    assert out.shape == (N, 1, 2, 2), out.shape
    assert bool(jnp.all(jnp.isfinite(out)))
    print("KERNEL_OK")
</pallas_src>

<mosaic_0001>
module attributes {stable_mosaic.version = 11 : i64} {
  func.func @kernel(%arg0: i32, %arg1: i32, %arg2: i32, %arg3: memref<256x128xbf16, #tpu.memory_space<vmem>>, %arg4: memref<128x128xbf16, #tpu.memory_space<vmem>>, %arg5: memref<1x128xf32, #tpu.memory_space<vmem>>, %arg6: memref<256x128xbf16, #tpu.memory_space<vmem>>, %arg7: memref<256x128xf32, #tpu.memory_space<vmem>>) attributes {dimension_semantics = [#tpu.dimension_semantics<parallel>, #tpu.dimension_semantics<parallel>, #tpu.dimension_semantics<arbitrary>], iteration_bounds = array<i64: 2, 1, 1>, scalar_prefetch = 0 : i64, scratch_operands = 1 : i64, tpu.core_type = #tpu.core_type<tc>, window_params = [{transform_indices = @transform_0, window_bounds = array<i64: 256, 128>}, {transform_indices = @transform_1, window_bounds = array<i64: 128, 128>}, {transform_indices = @transform_2, window_bounds = array<i64: 1, 128>}, {transform_indices = @transform_3, window_bounds = array<i64: 256, 128>}]} {
    %c0_i32 = arith.constant 0 : i32
    %0 = arith.cmpi eq, %arg2, %c0_i32 : i32
    %1 = arith.extui %0 : i1 to i32
    %c0_i32_0 = arith.constant 0 : i32
    %2 = arith.cmpi ne, %1, %c0_i32_0 : i32
    scf.if %2 {
      %cst_10 = arith.constant 0.000000e+00 : f32
      %12 = vector.broadcast %cst_10 : f32 to vector<256x128xf32>
      %c0_11 = arith.constant 0 : index
      %c0_12 = arith.constant 0 : index
      %13 = vector.load %arg7[%c0_11, %c0_12] : memref<256x128xf32, #tpu.memory_space<vmem>>, vector<256x128xf32>
      tpu.vector_store %arg7[%c0_11, %c0_12], %12 {strides = array<i32>} : memref<256x128xf32, #tpu.memory_space<vmem>>, vector<256x128xf32>,
    } else {
    }
    %c0 = arith.constant 0 : index
    %c0_1 = arith.constant 0 : index
    %3 = vector.load %arg7[%c0, %c0_1] : memref<256x128xf32, #tpu.memory_space<vmem>>, vector<256x128xf32>
    %c0_2 = arith.constant 0 : index
    %c0_3 = arith.constant 0 : index
    %4 = vector.load %arg3[%c0_2, %c0_3] : memref<256x128xbf16, #tpu.memory_space<vmem>>, vector<256x128xbf16>
    %c0_4 = arith.constant 0 : index
    %c0_5 = arith.constant 0 : index
    %5 = vector.load %arg4[%c0_4, %c0_5] : memref<128x128xbf16, #tpu.memory_space<vmem>>, vector<128x128xbf16>
    %cst = arith.constant dense<0.000000e+00> : vector<256x128xf32>
    %6 = tpu.matmul %4, %5, %cst {dimension_numbers = #tpu.dot_dimension_numbers<[1], [0], [0], [1], [0, 0, 1, 1], [], []>} : vector<256x128xbf16>, vector<128x128xbf16>, vector<256x128xf32> -> vector<256x128xf32>
    %7 = arith.addf %3, %6 : vector<256x128xf32>
    %c0_6 = arith.constant 0 : index
    %c0_7 = arith.constant 0 : index
    %8 = vector.load %arg7[%c0_6, %c0_7] : memref<256x128xf32, #tpu.memory_space<vmem>>, vector<256x128xf32>
    tpu.vector_store %arg7[%c0_6, %c0_7], %7 {strides = array<i32>} : memref<256x128xf32, #tpu.memory_space<vmem>>, vector<256x128xf32>,
    %c0_i32_8 = arith.constant 0 : i32
    %9 = arith.cmpi eq, %arg2, %c0_i32_8 : i32
    %10 = arith.extui %9 : i1 to i32
    %c0_i32_9 = arith.constant 0 : i32
    %11 = arith.cmpi ne, %10, %c0_i32_9 : i32
    scf.if %11 {
      %c0_10 = arith.constant 0 : index
      %c0_11 = arith.constant 0 : index
      %12 = vector.load %arg7[%c0_10, %c0_11] : memref<256x128xf32, #tpu.memory_space<vmem>>, vector<256x128xf32>
      %c0_12 = arith.constant 0 : index
      %c0_13 = arith.constant 0 : index
      %13 = vector.load %arg5[%c0_12, %c0_13] : memref<1x128xf32, #tpu.memory_space<vmem>>, vector<1x128xf32>
      %14 = vector.broadcast %13 : vector<1x128xf32> to vector<256x128xf32>
      %15 = arith.addf %12, %14 : vector<256x128xf32>
      %cst_14 = arith.constant 0.000000e+00 : f32
      %16 = vector.broadcast %cst_14 : f32 to vector<256x128xf32>
      %17 = arith.cmpf ogt, %15, %16 : vector<256x128xf32>
      %cst_15 = arith.constant 2.000000e-01 : f32
      %18 = vector.broadcast %cst_15 : f32 to vector<256x128xf32>
      %19 = arith.mulf %18, %15 : vector<256x128xf32>
      %20 = arith.select %17, %15, %19 : vector<256x128xi1>, vector<256x128xf32>
      %21 = arith.truncf %20 : vector<256x128xf32> to vector<256x128xbf16>
      %c0_16 = arith.constant 0 : index
      %c0_17 = arith.constant 0 : index
      %22 = vector.load %arg6[%c0_16, %c0_17] : memref<256x128xbf16, #tpu.memory_space<vmem>>, vector<256x128xbf16>
      tpu.vector_store %arg6[%c0_16, %c0_17], %21 {strides = array<i32>} : memref<256x128xbf16, #tpu.memory_space<vmem>>, vector<256x128xbf16>,
    } else {
    }
    return
  }
  func.func @transform_0(%arg0: i32, %arg1: i32, %arg2: i32) -> (i32, i32) {
    %c0_i32 = arith.constant 0 : i32
    return %arg0, %arg2 : i32, i32
  }
  func.func @transform_1(%arg0: i32, %arg1: i32, %arg2: i32) -> (i32, i32) {
    %c0_i32 = arith.constant 0 : i32
    return %arg2, %arg1 : i32, i32
  }
  func.func @transform_2(%arg0: i32, %arg1: i32, %arg2: i32) -> (i32, i32) {
    %c0_i32 = arith.constant 0 : i32
    %c0_i32_0 = arith.constant 0 : i32
    return %c0_i32, %arg1 : i32, i32
  }
  func.func @transform_3(%arg0: i32, %arg1: i32, %arg2: i32) -> (i32, i32) {
    %c0_i32 = arith.constant 0 : i32
    return %arg0, %arg1 : i32, i32
  }
}

module attributes {stable_mosaic.version = 11 : i64} {
  func.func @kernel(%arg0: i32, %arg1: i32, %arg2: i32, %arg3: memref<128x256xbf16, #tpu.memory_space<vmem>>, %arg4: memref<256x128xbf16, #tpu.memory_space<vmem>>, %arg5: memref<128x128xf32, #tpu.memory_space<vmem>>, %arg6: memref<1x8x128xf32, #tpu.memory_space<vmem>>, %arg7: memref<128x128xf32, #tpu.memory_space<vmem>>) attributes {dimension_semantics = [#tpu.dimension_semantics<parallel>, #tpu.dimension_semantics<parallel>, #tpu.dimension_semantics<arbitrary>], iteration_bounds = array<i64: 1, 1, 1>, scalar_prefetch = 0 : i64, scratch_operands = 1 : i64, tpu.core_type = #tpu.core_type<tc>, window_params = [{transform_indices = @transform_0, window_bounds = array<i64: 128, 256>}, {transform_indices = @transform_1, window_bounds = array<i64: 256, 128>}, {transform_indices = @transform_2, window_bounds = array<i64: 128, 128>}, {transform_indices = @transform_3, window_bounds = array<i64: 1, 8, 128>}]} {
    %c0_i32 = arith.constant 0 : i32
    %0 = arith.cmpi eq, %arg2, %c0_i32 : i32
    %1 = arith.extui %0 : i1 to i32
    %c0_i32_0 = arith.constant 0 : i32
    %2 = arith.cmpi ne, %1, %c0_i32_0 : i32
    scf.if %2 {
      %cst_10 = arith.constant 0.000000e+00 : f32
      %12 = vector.broadcast %cst_10 : f32 to vector<128x128xf32>
      %c0_11 = arith.constant 0 : index
      %c0_12 = arith.constant 0 : index
      %13 = vector.load %arg7[%c0_11, %c0_12] : memref<128x128xf32, #tpu.memory_space<vmem>>, vector<128x128xf32>
      tpu.vector_store %arg7[%c0_11, %c0_12], %12 {strides = array<i32>} : memref<128x128xf32, #tpu.memory_space<vmem>>, vector<128x128xf32>,
    } else {
    }
    %c0 = arith.constant 0 : index
    %c0_1 = arith.constant 0 : index
    %3 = vector.load %arg7[%c0, %c0_1] : memref<128x128xf32, #tpu.memory_space<vmem>>, vector<128x128xf32>
    %c0_2 = arith.constant 0 : index
    %c0_3 = arith.constant 0 : index
    %4 = vector.load %arg3[%c0_2, %c0_3] : memref<128x256xbf16, #tpu.memory_space<vmem>>, vector<128x256xbf16>
    %c0_4 = arith.constant 0 : index
    %c0_5 = arith.constant 0 : index
    %5 = vector.load %arg4[%c0_4, %c0_5] : memref<256x128xbf16, #tpu.memory_space<vmem>>, vector<256x128xbf16>
    %cst = arith.constant dense<0.000000e+00> : vector<128x128xf32>
    %6 = tpu.matmul %4, %5, %cst {dimension_numbers = #tpu.dot_dimension_numbers<[1], [0], [0], [1], [0, 0, 1, 1], [], []>} : vector<128x256xbf16>, vector<256x128xbf16>, vector<128x128xf32> -> vector<128x128xf32>
    %7 = arith.addf %3, %6 : vector<128x128xf32>
    %c0_6 = arith.constant 0 : index
    %c0_7 = arith.constant 0 : index
    %8 = vector.load %arg7[%c0_6, %c0_7] : memref<128x128xf32, #tpu.memory_space<vmem>>, vector<128x128xf32>
    tpu.vector_store %arg7[%c0_6, %c0_7], %7 {strides = array<i32>} : memref<128x128xf32, #tpu.memory_space<vmem>>, vector<128x128xf32>,
    %c0_i32_8 = arith.constant 0 : i32
    %9 = arith.cmpi eq, %arg2, %c0_i32_8 : i32
    %10 = arith.extui %9 : i1 to i32
    %c0_i32_9 = arith.constant 0 : i32
    %11 = arith.cmpi ne, %10, %c0_i32_9 : i32
    scf.if %11 {
      %c0_10 = arith.constant 0 : index
      %c0_11 = arith.constant 0 : index
      %12 = vector.load %arg7[%c0_10, %c0_11] : memref<128x128xf32, #tpu.memory_space<vmem>>, vector<128x128xf32>
      %c0_12 = arith.constant 0 : index
      %c0_13 = arith.constant 0 : index
      %13 = vector.load %arg5[%c0_12, %c0_13] : memref<128x128xf32, #tpu.memory_space<vmem>>, vector<128x128xf32>
      tpu.vector_store %arg5[%c0_12, %c0_13], %12 {strides = array<i32>} : memref<128x128xf32, #tpu.memory_space<vmem>>, vector<128x128xf32>,
      %cst_14 = arith.constant dense<0.000000e+00> : vector<128xf32>
      %14 = vector.multi_reduction <add>, %12, %cst_14 [0] : vector<128x128xf32> to vector<128xf32>
      %15 = vector.shape_cast %14 : vector<128xf32> to vector<1x128xf32>
      %16 = arith.mulf %12, %12 : vector<128x128xf32>
      %cst_15 = arith.constant dense<0.000000e+00> : vector<128xf32>
      %17 = vector.multi_reduction <add>, %16, %cst_15 [0] : vector<128x128xf32> to vector<128xf32>
      %18 = vector.shape_cast %17 : vector<128xf32> to vector<1x128xf32>
      %19 = tpu.iota {dimensions = array<i32: 0>} : vector<8x128xi32>
      %c0_i32_16 = arith.constant 0 : i32
      %20 = vector.broadcast %c0_i32_16 : i32 to vector<8x128xi32>
      %21 = arith.cmpi eq, %19, %20 : vector<8x128xi32>
      %22 = vector.shape_cast %15 : vector<1x128xf32> to vector<1x128xf32>
      %23 = vector.broadcast %22 : vector<1x128xf32> to vector<8x128xf32>
      %c1_i32 = arith.constant 1 : i32
      %24 = vector.broadcast %c1_i32 : i32 to vector<8x128xi32>
      %25 = arith.cmpi eq, %19, %24 : vector<8x128xi32>
      %26 = vector.shape_cast %18 : vector<1x128xf32> to vector<1x128xf32>
      %27 = vector.broadcast %26 : vector<1x128xf32> to vector<8x128xf32>
      %cst_17 = arith.constant 0.000000e+00 : f32
      %28 = vector.broadcast %cst_17 : f32 to vector<8x128xf32>
      %29 = arith.select %25, %27, %28 : vector<8x128xi1>, vector<8x128xf32>
      %30 = arith.select %21, %23, %29 : vector<8x128xi1>, vector<8x128xf32>
      %31 = vector.shape_cast %30 : vector<8x128xf32> to vector<1x8x128xf32>
      %c0_18 = arith.constant 0 : index
      %c0_19 = arith.constant 0 : index
      %c0_20 = arith.constant 0 : index
      %32 = vector.load %arg6[%c0_18, %c0_19, %c0_20] : memref<1x8x128xf32, #tpu.memory_space<vmem>>, vector<1x8x128xf32>
      tpu.vector_store %arg6[%c0_18, %c0_19, %c0_20], %31 {strides = array<i32>} : memref<1x8x128xf32, #tpu.memory_space<vmem>>, vector<1x8x128xf32>,
    } else {
    }
    return
  }
  func.func @transform_0(%arg0: i32, %arg1: i32, %arg2: i32) -> (i32, i32) {
    %c0_i32 = arith.constant 0 : i32
    return %arg0, %arg2 : i32, i32
  }
  func.func @transform_1(%arg0: i32, %arg1: i32, %arg2: i32) -> (i32, i32) {
    %c0_i32 = arith.constant 0 : i32
    return %arg2, %arg1 : i32, i32
  }
  func.func @transform_2(%arg0: i32, %arg1: i32, %arg2: i32) -> (i32, i32) {
    %c0_i32 = arith.constant 0 : i32
    return %arg0, %arg1 : i32, i32
  }
  func.func @transform_3(%arg0: i32, %arg1: i32, %arg2: i32) -> (i32, i32, i32) {
    %c0_i32 = arith.constant 0 : i32
    %c0_i32_0 = arith.constant 0 : i32
    return %arg0, %c0_i32, %arg1 : i32, i32, i32
  }
}

module attributes {stable_mosaic.version = 11 : i64} {
  func.func @_bn_lrelu_apply_kernel(%arg0: i32, %arg1: i32, %arg2: memref<128x128xf32, #tpu.memory_space<vmem>>, %arg3: memref<1x128xf32, #tpu.memory_space<vmem>>, %arg4: memref<1x128xf32, #tpu.memory_space<vmem>>, %arg5: memref<128x128xbf16, #tpu.memory_space<vmem>>) attributes {dimension_semantics = [#tpu.dimension_semantics<parallel>, #tpu.dimension_semantics<parallel>], iteration_bounds = array<i64: 1, 1>, scalar_prefetch = 0 : i64, scratch_operands = 0 : i64, tpu.core_type = #tpu.core_type<tc>, window_params = [{transform_indices = @transform_0, window_bounds = array<i64: 128, 128>}, {transform_indices = @transform_1, window_bounds = array<i64: 1, 128>}, {transform_indices = @transform_2, window_bounds = array<i64: 1, 128>}, {transform_indices = @transform_3, window_bounds = array<i64: 128, 128>}]} {
    %c0 = arith.constant 0 : index
    %c0_0 = arith.constant 0 : index
    %0 = vector.load %arg2[%c0, %c0_0] : memref<128x128xf32, #tpu.memory_space<vmem>>, vector<128x128xf32>
    %c0_1 = arith.constant 0 : index
    %c0_2 = arith.constant 0 : index
    %1 = vector.load %arg3[%c0_1, %c0_2] : memref<1x128xf32, #tpu.memory_space<vmem>>, vector<1x128xf32>
    %2 = vector.broadcast %1 : vector<1x128xf32> to vector<128x128xf32>
    %3 = arith.mulf %0, %2 : vector<128x128xf32>
    %c0_3 = arith.constant 0 : index
    %c0_4 = arith.constant 0 : index
    %4 = vector.load %arg4[%c0_3, %c0_4] : memref<1x128xf32, #tpu.memory_space<vmem>>, vector<1x128xf32>
    %5 = vector.broadcast %4 : vector<1x128xf32> to vector<128x128xf32>
    %6 = arith.addf %3, %5 : vector<128x128xf32>
    %cst = arith.constant 0.000000e+00 : f32
    %7 = vector.broadcast %cst : f32 to vector<128x128xf32>
    %8 = arith.cmpf ogt, %6, %7 : vector<128x128xf32>
    %cst_5 = arith.constant 2.000000e-01 : f32
    %9 = vector.broadcast %cst_5 : f32 to vector<128x128xf32>
    %10 = arith.mulf %9, %6 : vector<128x128xf32>
    %11 = arith.select %8, %6, %10 : vector<128x128xi1>, vector<128x128xf32>
    %12 = arith.truncf %11 : vector<128x128xf32> to vector<128x128xbf16>
    %c0_6 = arith.constant 0 : index
    %c0_7 = arith.constant 0 : index
    %13 = vector.load %arg5[%c0_6, %c0_7] : memref<128x128xbf16, #tpu.memory_space<vmem>>, vector<128x128xbf16>
    tpu.vector_store %arg5[%c0_6, %c0_7], %12 {strides = array<i32>} : memref<128x128xbf16, #tpu.memory_space<vmem>>, vector<128x128xbf16>,
    return
  }
  func.func @transform_0(%arg0: i32, %arg1: i32) -> (i32, i32) {
    %c0_i32 = arith.constant 0 : i32
    return %arg0, %arg1 : i32, i32
  }
  func.func @transform_1(%arg0: i32, %arg1: i32) -> (i32, i32) {
    %c0_i32 = arith.constant 0 : i32
    %c0_i32_0 = arith.constant 0 : i32
    return %c0_i32, %arg1 : i32, i32
  }
  func.func @transform_2(%arg0: i32, %arg1: i32) -> (i32, i32) {
    %c0_i32 = arith.constant 0 : i32
    %c0_i32_0 = arith.constant 0 : i32
    return %c0_i32, %arg1 : i32, i32
  }
  func.func @transform_3(%arg0: i32, %arg1: i32) -> (i32, i32) {
    %c0_i32 = arith.constant 0 : i32
    return %arg0, %arg1 : i32, i32
  }
}

module attributes {stable_mosaic.version = 11 : i64} {
  func.func @kernel(%arg0: i32, %arg1: i32, %arg2: i32, %arg3: memref<32x512xbf16, #tpu.memory_space<vmem>>, %arg4: memref<512x128xbf16, #tpu.memory_space<vmem>>, %arg5: memref<32x128xf32, #tpu.memory_space<vmem>>, %arg6: memref<1x8x128xf32, #tpu.memory_space<vmem>>, %arg7: memref<32x128xf32, #tpu.memory_space<vmem>>) attributes {dimension_semantics = [#tpu.dimension_semantics<parallel>, #tpu.dimension_semantics<parallel>, #tpu.dimension_semantics<arbitrary>], iteration_bounds = array<i64: 1, 1, 1>, scalar_prefetch = 0 : i64, scratch_operands = 1 : i64, tpu.core_type = #tpu.core_type<tc>, window_params = [{transform_indices = @transform_0, window_bounds = array<i64: 32, 512>}, {transform_indices = @transform_1, window_bounds = array<i64: 512, 128>}, {transform_indices = @transform_2, window_bounds = array<i64: 32, 128>}, {transform_indices = @transform_3, window_bounds = array<i64: 1, 8, 128>}]} {
    %c0_i32 = arith.constant 0 : i32
    %0 = arith.cmpi eq, %arg2, %c0_i32 : i32
    %1 = arith.extui %0 : i1 to i32
    %c0_i32_0 = arith.constant 0 : i32
    %2 = arith.cmpi ne, %1, %c0_i32_0 : i32
    scf.if %2 {
      %cst_10 = arith.constant 0.000000e+00 : f32
      %12 = vector.broadcast %cst_10 : f32 to vector<32x128xf32>
      %c0_11 = arith.constant 0 : index
      %c0_12 = arith.constant 0 : index
      %13 = vector.load %arg7[%c0_11, %c0_12] : memref<32x128xf32, #tpu.memory_space<vmem>>, vector<32x128xf32>
      tpu.vector_store %arg7[%c0_11, %c0_12], %12 {strides = array<i32>} : memref<32x128xf32, #tpu.memory_space<vmem>>, vector<32x128xf32>,
    } else {
    }
    %c0 = arith.constant 0 : index
    %c0_1 = arith.constant 0 : index
    %3 = vector.load %arg7[%c0, %c0_1] : memref<32x128xf32, #tpu.memory_space<vmem>>, vector<32x128xf32>
    %c0_2 = arith.constant 0 : index
    %c0_3 = arith.constant 0 : index
    %4 = vector.load %arg3[%c0_2, %c0_3] : memref<32x512xbf16, #tpu.memory_space<vmem>>, vector<32x512xbf16>
    %c0_4 = arith.constant 0 : index
    %c0_5 = arith.constant 0 : index
    %5 = vector.load %arg4[%c0_4, %c0_5] : memref<512x128xbf16, #tpu.memory_space<vmem>>, vector<512x128xbf16>
    %cst = arith.constant dense<0.000000e+00> : vector<32x128xf32>
    %6 = tpu.matmul %4, %5, %cst {dimension_numbers = #tpu.dot_dimension_numbers<[1], [0], [0], [1], [0, 0, 1, 1], [], []>} : vector<32x512xbf16>, vector<512x128xbf16>, vector<32x128xf32> -> vector<32x128xf32>
    %7 = arith.addf %3, %6 : vector<32x128xf32>
    %c0_6 = arith.constant 0 : index
    %c0_7 = arith.constant 0 : index
    %8 = vector.load %arg7[%c0_6, %c0_7] : memref<32x128xf32, #tpu.memory_space<vmem>>, vector<32x128xf32>
    tpu.vector_store %arg7[%c0_6, %c0_7], %7 {strides = array<i32>} : memref<32x128xf32, #tpu.memory_space<vmem>>, vector<32x128xf32>,
    %c0_i32_8 = arith.constant 0 : i32
    %9 = arith.cmpi eq, %arg2, %c0_i32_8 : i32
    %10 = arith.extui %9 : i1 to i32
    %c0_i32_9 = arith.constant 0 : i32
    %11 = arith.cmpi ne, %10, %c0_i32_9 : i32
    scf.if %11 {
      %c0_10 = arith.constant 0 : index
      %c0_11 = arith.constant 0 : index
      %12 = vector.load %arg7[%c0_10, %c0_11] : memref<32x128xf32, #tpu.memory_space<vmem>>, vector<32x128xf32>
      %c0_12 = arith.constant 0 : index
      %c0_13 = arith.constant 0 : index
      %13 = vector.load %arg5[%c0_12, %c0_13] : memref<32x128xf32, #tpu.memory_space<vmem>>, vector<32x128xf32>
      tpu.vector_store %arg5[%c0_12, %c0_13], %12 {strides = array<i32>} : memref<32x128xf32, #tpu.memory_space<vmem>>, vector<32x128xf32>,
      %cst_14 = arith.constant dense<0.000000e+00> : vector<128xf32>
      %14 = vector.multi_reduction <add>, %12, %cst_14 [0] : vector<32x128xf32> to vector<128xf32>
      %15 = vector.shape_cast %14 : vector<128xf32> to vector<1x128xf32>
      %16 = arith.mulf %12, %12 : vector<32x128xf32>
      %cst_15 = arith.constant dense<0.000000e+00> : vector<128xf32>
      %17 = vector.multi_reduction <add>, %16, %cst_15 [0] : vector<32x128xf32> to vector<128xf32>
      %18 = vector.shape_cast %17 : vector<128xf32> to vector<1x128xf32>
      %19 = tpu.iota {dimensions = array<i32: 0>} : vector<8x128xi32>
      %c0_i32_16 = arith.constant 0 : i32
      %20 = vector.broadcast %c0_i32_16 : i32 to vector<8x128xi32>
      %21 = arith.cmpi eq, %19, %20 : vector<8x128xi32>
      %22 = vector.shape_cast %15 : vector<1x128xf32> to vector<1x128xf32>
      %23 = vector.broadcast %22 : vector<1x128xf32> to vector<8x128xf32>
      %c1_i32 = arith.constant 1 : i32
      %24 = vector.broadcast %c1_i32 : i32 to vector<8x128xi32>
      %25 = arith.cmpi eq, %19, %24 : vector<8x128xi32>
      %26 = vector.shape_cast %18 : vector<1x128xf32> to vector<1x128xf32>
      %27 = vector.broadcast %26 : vector<1x128xf32> to vector<8x128xf32>
      %cst_17 = arith.constant 0.000000e+00 : f32
      %28 = vector.broadcast %cst_17 : f32 to vector<8x128xf32>
      %29 = arith.select %25, %27, %28 : vector<8x128xi1>, vector<8x128xf32>
      %30 = arith.select %21, %23, %29 : vector<8x128xi1>, vector<8x128xf32>
      %31 = vector.shape_cast %30 : vector<8x128xf32> to vector<1x8x128xf32>
      %c0_18 = arith.constant 0 : index
      %c0_19 = arith.constant 0 : index
      %c0_20 = arith.constant 0 : index
      %32 = vector.load %arg6[%c0_18, %c0_19, %c0_20] : memref<1x8x128xf32, #tpu.memory_space<vmem>>, vector<1x8x128xf32>
      tpu.vector_store %arg6[%c0_18, %c0_19, %c0_20], %31 {strides = array<i32>} : memref<1x8x128xf32, #tpu.memory_space<vmem>>, vector<1x8x128xf32>,
    } else {
    }
    return
  }
  func.func @transform_0(%arg0: i32, %arg1: i32, %arg2: i32) -> (i32, i32) {
    %c0_i32 = arith.constant 0 : i32
    return %arg0, %arg2 : i32, i32
  }
  func.func @transform_1(%arg0: i32, %arg1: i32, %arg2: i32) -> (i32, i32) {
    %c0_i32 = arith.constant 0 : i32
    return %arg2, %arg1 : i32, i32
  }
  func.func @transform_2(%arg0: i32, %arg1: i32, %arg2: i32) -> (i32, i32) {
    %c0_i32 = arith.constant 0 : i32
    return %arg0, %arg1 : i32, i32
  }
  func.func @transform_3(%arg0: i32, %arg1: i32, %arg2: i32) -> (i32, i32, i32) {
    %c0_i32 = arith.constant 0 : i32
    %c0_i32_0 = arith.constant 0 : i32
    return %arg0, %c0_i32, %arg1 : i32, i32, i32
  }
}

module attributes {stable_mosaic.version = 11 : i64} {
  func.func @_bn_lrelu_apply_kernel(%arg0: i32, %arg1: i32, %arg2: memref<32x128xf32, #tpu.memory_space<vmem>>, %arg3: memref<1x128xf32, #tpu.memory_space<vmem>>, %arg4: memref<1x128xf32, #tpu.memory_space<vmem>>, %arg5: memref<32x128xbf16, #tpu.memory_space<vmem>>) attributes {dimension_semantics = [#tpu.dimension_semantics<parallel>, #tpu.dimension_semantics<parallel>], iteration_bounds = array<i64: 1, 1>, scalar_prefetch = 0 : i64, scratch_operands = 0 : i64, tpu.core_type = #tpu.core_type<tc>, window_params = [{transform_indices = @transform_0, window_bounds = array<i64: 32, 128>}, {transform_indices = @transform_1, window_bounds = array<i64: 1, 128>}, {transform_indices = @transform_2, window_bounds = array<i64: 1, 128>}, {transform_indices = @transform_3, window_bounds = array<i64: 32, 128>}]} {
    %c0 = arith.constant 0 : index
    %c0_0 = arith.constant 0 : index
    %0 = vector.load %arg2[%c0, %c0_0] : memref<32x128xf32, #tpu.memory_space<vmem>>, vector<32x128xf32>
    %c0_1 = arith.constant 0 : index
    %c0_2 = arith.constant 0 : index
    %1 = vector.load %arg3[%c0_1, %c0_2] : memref<1x128xf32, #tpu.memory_space<vmem>>, vector<1x128xf32>
    %2 = vector.broadcast %1 : vector<1x128xf32> to vector<32x128xf32>
    %3 = arith.mulf %0, %2 : vector<32x128xf32>
    %c0_3 = arith.constant 0 : index
    %c0_4 = arith.constant 0 : index
    %4 = vector.load %arg4[%c0_3, %c0_4] : memref<1x128xf32, #tpu.memory_space<vmem>>, vector<1x128xf32>
    %5 = vector.broadcast %4 : vector<1x128xf32> to vector<32x128xf32>
    %6 = arith.addf %3, %5 : vector<32x128xf32>
    %cst = arith.constant 0.000000e+00 : f32
    %7 = vector.broadcast %cst : f32 to vector<32x128xf32>
    %8 = arith.cmpf ogt, %6, %7 : vector<32x128xf32>
    %cst_5 = arith.constant 2.000000e-01 : f32
    %9 = vector.broadcast %cst_5 : f32 to vector<32x128xf32>
    %10 = arith.mulf %9, %6 : vector<32x128xf32>
    %11 = arith.select %8, %6, %10 : vector<32x128xi1>, vector<32x128xf32>
    %12 = arith.truncf %11 : vector<32x128xf32> to vector<32x128xbf16>
    %c0_6 = arith.constant 0 : index
    %c0_7 = arith.constant 0 : index
    %13 = vector.load %arg5[%c0_6, %c0_7] : memref<32x128xbf16, #tpu.memory_space<vmem>>, vector<32x128xbf16>
    tpu.vector_store %arg5[%c0_6, %c0_7], %12 {strides = array<i32>} : memref<32x128xbf16, #tpu.memory_space<vmem>>, vector<32x128xbf16>,
    return
  }
  func.func @transform_0(%arg0: i32, %arg1: i32) -> (i32, i32) {
    %c0_i32 = arith.constant 0 : i32
    return %arg0, %arg1 : i32, i32
  }
  func.func @transform_1(%arg0: i32, %arg1: i32) -> (i32, i32) {
    %c0_i32 = arith.constant 0 : i32
    %c0_i32_0 = arith.constant 0 : i32
    return %c0_i32, %arg1 : i32, i32
  }
  func.func @transform_2(%arg0: i32, %arg1: i32) -> (i32, i32) {
    %c0_i32 = arith.constant 0 : i32
    %c0_i32_0 = arith.constant 0 : i32
    return %c0_i32, %arg1 : i32, i32
  }
  func.func @transform_3(%arg0: i32, %arg1: i32) -> (i32, i32) {
    %c0_i32 = arith.constant 0 : i32
    return %arg0, %arg1 : i32, i32
  }
}

module attributes {stable_mosaic.version = 11 : i64} {
  func.func @_bn_lrelu_apply_kernel(%arg0: i32, %arg1: i32, %arg2: memref<24x128xf32, #tpu.memory_space<vmem>>, %arg3: memref<1x128xf32, #tpu.memory_space<vmem>>, %arg4: memref<1x128xf32, #tpu.memory_space<vmem>>, %arg5: memref<24x128xbf16, #tpu.memory_space<vmem>>) attributes {dimension_semantics = [#tpu.dimension_semantics<parallel>, #tpu.dimension_semantics<parallel>], iteration_bounds = array<i64: 1, 1>, scalar_prefetch = 0 : i64, scratch_operands = 0 : i64, tpu.core_type = #tpu.core_type<tc>, window_params = [{transform_indices = @transform_0, window_bounds = array<i64: 24, 128>}, {transform_indices = @transform_1, window_bounds = array<i64: 1, 128>}, {transform_indices = @transform_2, window_bounds = array<i64: 1, 128>}, {transform_indices = @transform_3, window_bounds = array<i64: 24, 128>}]} {
    %c0 = arith.constant 0 : index
    %c0_0 = arith.constant 0 : index
    %0 = vector.load %arg2[%c0, %c0_0] : memref<24x128xf32, #tpu.memory_space<vmem>>, vector<24x128xf32>
    %c0_1 = arith.constant 0 : index
    %c0_2 = arith.constant 0 : index
    %1 = vector.load %arg3[%c0_1, %c0_2] : memref<1x128xf32, #tpu.memory_space<vmem>>, vector<1x128xf32>
    %2 = vector.broadcast %1 : vector<1x128xf32> to vector<24x128xf32>
    %3 = arith.mulf %0, %2 : vector<24x128xf32>
    %c0_3 = arith.constant 0 : index
    %c0_4 = arith.constant 0 : index
    %4 = vector.load %arg4[%c0_3, %c0_4] : memref<1x128xf32, #tpu.memory_space<vmem>>, vector<1x128xf32>
    %5 = vector.broadcast %4 : vector<1x128xf32> to vector<24x128xf32>
    %6 = arith.addf %3, %5 : vector<24x128xf32>
    %cst = arith.constant 0.000000e+00 : f32
    %7 = vector.broadcast %cst : f32 to vector<24x128xf32>
    %8 = arith.cmpf ogt, %6, %7 : vector<24x128xf32>
    %cst_5 = arith.constant 2.000000e-01 : f32
    %9 = vector.broadcast %cst_5 : f32 to vector<24x128xf32>
    %10 = arith.mulf %9, %6 : vector<24x128xf32>
    %11 = arith.select %8, %6, %10 : vector<24x128xi1>, vector<24x128xf32>
    %12 = arith.truncf %11 : vector<24x128xf32> to vector<24x128xbf16>
    %c0_6 = arith.constant 0 : index
    %c0_7 = arith.constant 0 : index
    %13 = vector.load %arg5[%c0_6, %c0_7] : memref<24x128xbf16, #tpu.memory_space<vmem>>, vector<24x128xbf16>
    tpu.vector_store %arg5[%c0_6, %c0_7], %12 {strides = array<i32>} : memref<24x128xbf16, #tpu.memory_space<vmem>>, vector<24x128xbf16>,
    return
  }
  func.func @transform_0(%arg0: i32, %arg1: i32) -> (i32, i32) {
    %c0_i32 = arith.constant 0 : i32
    return %arg0, %arg1 : i32, i32
  }
  func.func @transform_1(%arg0: i32, %arg1: i32) -> (i32, i32) {
    %c0_i32 = arith.constant 0 : i32
    %c0_i32_0 = arith.constant 0 : i32
    return %c0_i32, %arg1 : i32, i32
  }
  func.func @transform_2(%arg0: i32, %arg1: i32) -> (i32, i32) {
    %c0_i32 = arith.constant 0 : i32
    %c0_i32_0 = arith.constant 0 : i32
    return %c0_i32, %arg1 : i32, i32
  }
  func.func @transform_3(%arg0: i32, %arg1: i32) -> (i32, i32) {
    %c0_i32 = arith.constant 0 : i32
    return %arg0, %arg1 : i32, i32
  }
}

module attributes {stable_mosaic.version = 11 : i64} {
  func.func @kernel(%arg0: i32, %arg1: i32, %arg2: i32, %arg3: memref<24x512xbf16, #tpu.memory_space<vmem>>, %arg4: memref<512x128xbf16, #tpu.memory_space<vmem>>, %arg5: memref<24x128xf32, #tpu.memory_space<vmem>>, %arg6: memref<1x8x128xf32, #tpu.memory_space<vmem>>, %arg7: memref<24x128xf32, #tpu.memory_space<vmem>>) attributes {dimension_semantics = [#tpu.dimension_semantics<parallel>, #tpu.dimension_semantics<parallel>, #tpu.dimension_semantics<arbitrary>], iteration_bounds = array<i64: 1, 1, 2>, scalar_prefetch = 0 : i64, scratch_operands = 1 : i64, tpu.core_type = #tpu.core_type<tc>, window_params = [{transform_indices = @transform_0, window_bounds = array<i64: 24, 512>}, {transform_indices = @transform_1, window_bounds = array<i64: 512, 128>}, {transform_indices = @transform_2, window_bounds = array<i64: 24, 128>}, {transform_indices = @transform_3, window_bounds = array<i64: 1, 8, 128>}]} {
    %c0_i32 = arith.constant 0 : i32
    %0 = arith.cmpi eq, %arg2, %c0_i32 : i32
    %1 = arith.extui %0 : i1 to i32
    %c0_i32_0 = arith.constant 0 : i32
    %2 = arith.cmpi ne, %1, %c0_i32_0 : i32
    scf.if %2 {
      %cst_9 = arith.constant 0.000000e+00 : f32
      %12 = vector.broadcast %cst_9 : f32 to vector<24x128xf32>
      %c0_10 = arith.constant 0 : index
      %c0_11 = arith.constant 0 : index
      %13 = vector.load %arg7[%c0_10, %c0_11] : memref<24x128xf32, #tpu.memory_space<vmem>>, vector<24x128xf32>
      tpu.vector_store %arg7[%c0_10, %c0_11], %12 {strides = array<i32>} : memref<24x128xf32, #tpu.memory_space<vmem>>, vector<24x128xf32>,
    } else {
    }
    %c0 = arith.constant 0 : index
    %c0_1 = arith.constant 0 : index
    %3 = vector.load %arg7[%c0, %c0_1] : memref<24x128xf32, #tpu.memory_space<vmem>>, vector<24x128xf32>
    %c0_2 = arith.constant 0 : index
    %c0_3 = arith.constant 0 : index
    %4 = vector.load %arg3[%c0_2, %c0_3] : memref<24x512xbf16, #tpu.memory_space<vmem>>, vector<24x512xbf16>
    %c0_4 = arith.constant 0 : index
    %c0_5 = arith.constant 0 : index
    %5 = vector.load %arg4[%c0_4, %c0_5] : memref<512x128xbf16, #tpu.memory_space<vmem>>, vector<512x128xbf16>
    %cst = arith.constant dense<0.000000e+00> : vector<24x128xf32>
    %6 = tpu.matmul %4, %5, %cst {dimension_numbers = #tpu.dot_dimension_numbers<[1], [0], [0], [1], [0, 0, 1, 1], [], []>} : vector<24x512xbf16>, vector<512x128xbf16>, vector<24x128xf32> -> vector<24x128xf32>
    %7 = arith.addf %3, %6 : vector<24x128xf32>
    %c0_6 = arith.constant 0 : index
    %c0_7 = arith.constant 0 : index
    %8 = vector.load %arg7[%c0_6, %c0_7] : memref<24x128xf32, #tpu.memory_space<vmem>>, vector<24x128xf32>
    tpu.vector_store %arg7[%c0_6, %c0_7], %7 {strides = array<i32>} : memref<24x128xf32, #tpu.memory_space<vmem>>, vector<24x128xf32>,
    %c1_i32 = arith.constant 1 : i32
    %9 = arith.cmpi eq, %arg2, %c1_i32 : i32
    %10 = arith.extui %9 : i1 to i32
    %c0_i32_8 = arith.constant 0 : i32
    %11 = arith.cmpi ne, %10, %c0_i32_8 : i32
    scf.if %11 {
      %c0_9 = arith.constant 0 : index
      %c0_10 = arith.constant 0 : index
      %12 = vector.load %arg7[%c0_9, %c0_10] : memref<24x128xf32, #tpu.memory_space<vmem>>, vector<24x128xf32>
      %c0_11 = arith.constant 0 : index
      %c0_12 = arith.constant 0 : index
      %13 = vector.load %arg5[%c0_11, %c0_12] : memref<24x128xf32, #tpu.memory_space<vmem>>, vector<24x128xf32>
      tpu.vector_store %arg5[%c0_11, %c0_12], %12 {strides = array<i32>} : memref<24x128xf32, #tpu.memory_space<vmem>>, vector<24x128xf32>,
      %cst_13 = arith.constant dense<0.000000e+00> : vector<128xf32>
      %14 = vector.multi_reduction <add>, %12, %cst_13 [0] : vector<24x128xf32> to vector<128xf32>
      %15 = vector.shape_cast %14 : vector<128xf32> to vector<1x128xf32>
      %16 = arith.mulf %12, %12 : vector<24x128xf32>
      %cst_14 = arith.constant dense<0.000000e+00> : vector<128xf32>
      %17 = vector.multi_reduction <add>, %16, %cst_14 [0] : vector<24x128xf32> to vector<128xf32>
      %18 = vector.shape_cast %17 : vector<128xf32> to vector<1x128xf32>
      %19 = tpu.iota {dimensions = array<i32: 0>} : vector<8x128xi32>
      %c0_i32_15 = arith.constant 0 : i32
      %20 = vector.broadcast %c0_i32_15 : i32 to vector<8x128xi32>
      %21 = arith.cmpi eq, %19, %20 : vector<8x128xi32>
      %22 = vector.shape_cast %15 : vector<1x128xf32> to vector<1x128xf32>
      %23 = vector.broadcast %22 : vector<1x128xf32> to vector<8x128xf32>
      %c1_i32_16 = arith.constant 1 : i32
      %24 = vector.broadcast %c1_i32_16 : i32 to vector<8x128xi32>
      %25 = arith.cmpi eq, %19, %24 : vector<8x128xi32>
      %26 = vector.shape_cast %18 : vector<1x128xf32> to vector<1x128xf32>
      %27 = vector.broadcast %26 : vector<1x128xf32> to vector<8x128xf32>
      %cst_17 = arith.constant 0.000000e+00 : f32
      %28 = vector.broadcast %cst_17 : f32 to vector<8x128xf32>
      %29 = arith.select %25, %27, %28 : vector<8x128xi1>, vector<8x128xf32>
      %30 = arith.select %21, %23, %29 : vector<8x128xi1>, vector<8x128xf32>
      %31 = vector.shape_cast %30 : vector<8x128xf32> to vector<1x8x128xf32>
      %c0_18 = arith.constant 0 : index
      %c0_19 = arith.constant 0 : index
      %c0_20 = arith.constant 0 : index
      %32 = vector.load %arg6[%c0_18, %c0_19, %c0_20] : memref<1x8x128xf32, #tpu.memory_space<vmem>>, vector<1x8x128xf32>
      tpu.vector_store %arg6[%c0_18, %c0_19, %c0_20], %31 {strides = array<i32>} : memref<1x8x128xf32, #tpu.memory_space<vmem>>, vector<1x8x128xf32>,
    } else {
    }
    return
  }
  func.func @transform_0(%arg0: i32, %arg1: i32, %arg2: i32) -> (i32, i32) {
    %c0_i32 = arith.constant 0 : i32
    return %arg0, %arg2 : i32, i32
  }
  func.func @transform_1(%arg0: i32, %arg1: i32, %arg2: i32) -> (i32, i32) {
    %c0_i32 = arith.constant 0 : i32
    return %arg2, %arg1 : i32, i32
  }
  func.func @transform_2(%arg0: i32, %arg1: i32, %arg2: i32) -> (i32, i32) {
    %c0_i32 = arith.constant 0 : i32
    return %arg0, %arg1 : i32, i32
  }
  func.func @transform_3(%arg0: i32, %arg1: i32, %arg2: i32) -> (i32, i32, i32) {
    %c0_i32 = arith.constant 0 : i32
    %c0_i32_0 = arith.constant 0 : i32
    return %arg0, %c0_i32, %arg1 : i32, i32, i32
  }
}

module attributes {stable_mosaic.version = 11 : i64} {
  func.func @kernel(%arg0: i32, %arg1: i32, %arg2: i32, %arg3: memref<8x512xbf16, #tpu.memory_space<vmem>>, %arg4: memref<512x128xbf16, #tpu.memory_space<vmem>>, %arg5: memref<1x128xf32, #tpu.memory_space<vmem>>, %arg6: memref<8x128xf32, #tpu.memory_space<vmem>>, %arg7: memref<8x128xf32, #tpu.memory_space<vmem>>) attributes {dimension_semantics = [#tpu.dimension_semantics<parallel>, #tpu.dimension_semantics<parallel>, #tpu.dimension_semantics<arbitrary>], iteration_bounds = array<i64: 1, 1, 4>, scalar_prefetch = 0 : i64, scratch_operands = 1 : i64, tpu.core_type = #tpu.core_type<tc>, window_params = [{transform_indices = @transform_0, window_bounds = array<i64: 8, 512>}, {transform_indices = @transform_1, window_bounds = array<i64: 512, 128>}, {transform_indices = @transform_2, window_bounds = array<i64: 1, 128>}, {transform_indices = @transform_3, window_bounds = array<i64: 8, 128>}]} {
    %c0_i32 = arith.constant 0 : i32
    %0 = arith.cmpi eq, %arg2, %c0_i32 : i32
    %1 = arith.extui %0 : i1 to i32
    %c0_i32_0 = arith.constant 0 : i32
    %2 = arith.cmpi ne, %1, %c0_i32_0 : i32
    scf.if %2 {
      %cst_9 = arith.constant 0.000000e+00 : f32
      %12 = vector.broadcast %cst_9 : f32 to vector<8x128xf32>
      %c0_10 = arith.constant 0 : index
      %c0_11 = arith.constant 0 : index
      %13 = vector.load %arg7[%c0_10, %c0_11] : memref<8x128xf32, #tpu.memory_space<vmem>>, vector<8x128xf32>
      tpu.vector_store %arg7[%c0_10, %c0_11], %12 {strides = array<i32>} : memref<8x128xf32, #tpu.memory_space<vmem>>, vector<8x128xf32>,
    } else {
    }
    %c0 = arith.constant 0 : index
    %c0_1 = arith.constant 0 : index
    %3 = vector.load %arg7[%c0, %c0_1] : memref<8x128xf32, #tpu.memory_space<vmem>>, vector<8x128xf32>
    %c0_2 = arith.constant 0 : index
    %c0_3 = arith.constant 0 : index
    %4 = vector.load %arg3[%c0_2, %c0_3] : memref<8x512xbf16, #tpu.memory_space<vmem>>, vector<8x512xbf16>
    %c0_4 = arith.constant 0 : index
    %c0_5 = arith.constant 0 : index
    %5 = vector.load %arg4[%c0_4, %c0_5] : memref<512x128xbf16, #tpu.memory_space<vmem>>, vector<512x128xbf16>
    %cst = arith.constant dense<0.000000e+00> : vector<8x128xf32>
    %6 = tpu.matmul %4, %5, %cst {dimension_numbers = #tpu.dot_dimension_numbers<[1], [0], [0], [1], [0, 0, 1, 1], [], []>} : vector<8x512xbf16>, vector<512x128xbf16>, vector<8x128xf32> -> vector<8x128xf32>
    %7 = arith.addf %3, %6 : vector<8x128xf32>
    %c0_6 = arith.constant 0 : index
    %c0_7 = arith.constant 0 : index
    %8 = vector.load %arg7[%c0_6, %c0_7] : memref<8x128xf32, #tpu.memory_space<vmem>>, vector<8x128xf32>
    tpu.vector_store %arg7[%c0_6, %c0_7], %7 {strides = array<i32>} : memref<8x128xf32, #tpu.memory_space<vmem>>, vector<8x128xf32>,
    %c3_i32 = arith.constant 3 : i32
    %9 = arith.cmpi eq, %arg2, %c3_i32 : i32
    %10 = arith.extui %9 : i1 to i32
    %c0_i32_8 = arith.constant 0 : i32
    %11 = arith.cmpi ne, %10, %c0_i32_8 : i32
    scf.if %11 {
      %c0_9 = arith.constant 0 : index
      %c0_10 = arith.constant 0 : index
      %12 = vector.load %arg7[%c0_9, %c0_10] : memref<8x128xf32, #tpu.memory_space<vmem>>, vector<8x128xf32>
      %c0_11 = arith.constant 0 : index
      %c0_12 = arith.constant 0 : index
      %13 = vector.load %arg5[%c0_11, %c0_12] : memref<1x128xf32, #tpu.memory_space<vmem>>, vector<1x128xf32>
      %14 = vector.broadcast %13 : vector<1x128xf32> to vector<8x128xf32>
      %15 = arith.addf %12, %14 : vector<8x128xf32>
      %c0_13 = arith.constant 0 : index
      %c0_14 = arith.constant 0 : index
      %16 = vector.load %arg6[%c0_13, %c0_14] : memref<8x128xf32, #tpu.memory_space<vmem>>, vector<8x128xf32>
      tpu.vector_store %arg6[%c0_13, %c0_14], %15 {strides = array<i32>} : memref<8x128xf32, #tpu.memory_space<vmem>>, vector<8x128xf32>,
    } else {
    }
    return
  }
  func.func @transform_0(%arg0: i32, %arg1: i32, %arg2: i32) -> (i32, i32) {
    %c0_i32 = arith.constant 0 : i32
    return %arg0, %arg2 : i32, i32
  }
  func.func @transform_1(%arg0: i32, %arg1: i32, %arg2: i32) -> (i32, i32) {
    %c0_i32 = arith.constant 0 : i32
    return %arg2, %arg1 : i32, i32
  }
  func.func @transform_2(%arg0: i32, %arg1: i32, %arg2: i32) -> (i32, i32) {
    %c0_i32 = arith.constant 0 : i32
    %c0_i32_0 = arith.constant 0 : i32
    return %c0_i32, %arg1 : i32, i32
  }
  func.func @transform_3(%arg0: i32, %arg1: i32, %arg2: i32) -> (i32, i32) {
    %c0_i32 = arith.constant 0 : i32
    return %arg0, %arg1 : i32, i32
  }
}

</mosaic_0001>

<llo_original>
// kernel: _lambda_.8
$region0: #{_lambda_.8}
  #allocation0 [shape = 'u32[]', space=smem, size = 0x4, offset = 0x4, fixed_abs, tag = 'smem constant byte address 0x4 - core index']
  #allocation1 [shape = 'u32[144,128]{1,0:T(1,128)}', space=vmem, size = 0x12000, scoped, tag = 'internal scratch']
  #allocation2 [shape = 'f32[256,128]{1,0:T(8,128)}', space=vmem, size = 0x20000, scoped, tag = 'scratch operand']
  %s0 = inlined_call_operand.vmem [shape: bf16[512,128], index: 0, kind: input, shape index: {}]
  %s1 = inlined_call_operand.vmem [shape: bf16[128,128], index: 1, kind: input, shape index: {}]
  %s2 = inlined_call_operand.vmem [shape: f32[1,128], index: 2, kind: input, shape index: {}]
  %s3 = inlined_call_operand.vmem [shape: bf16[512,128], index: 3, kind: output, shape index: {}]
  %s4 = sld [smem:[#allocation0]]
  $region53: #{_lambda_.8} parent=0
    _
  %s6 = ssub.s32 1, %s4
  %s7 = scalar_select 0, %s6, %s4
  loop: start=0, step=1, limit=4
  $region2: #{_lambda_.8} parent=0 // loop_pre_header
    _
  $region3: #{_lambda_.8} parent=0 // loop_header
    %s9 = sphi 0, %s13
    %p10 = scmp.ge.s32.totalorder %s9, 4
    %s16 = sphi 0, %s35
    %s17 = sphi 0, %s31
    %s18 = sphi 0, %s27
    %s19 = sphi 0, %s16
    %s20 = sphi 0, %s17
    %s21 = sphi 0, %s18
    %s22 = sphi 0, %s19
    %s23 = sphi 0, %s20
    %s24 = sphi 0, %s21
    %s40 = sphi 0, %s42
    %s43 = sphi 0, %s40
    %s44 = sphi 0, %s43
    %s60 = sphi 0, %s44
    %s68 = sphi 0, %s70
    %s71 = sphi 0, %s68
    %s72 = sphi 0, %s71
    %s88 = sphi 0, %s72
    %s94 = sphi 0, %s96
    %s97 = sphi 0, %s94
    %s98 = sphi 0, %s97
    %s114 = sphi 0, %s98
    %s122 = sphi 0, %s124
    %s125 = sphi 0, %s122
    %s126 = sphi 0, %s125
    %s142 = sphi 0, %s126
  $region4: #{_lambda_.8} parent=0 // loop_header_branch
    %12 = sbr.rel (%p10) target = $region8
  $region5: #{_lambda_.8} parent=0 // loop_body
    %s14 = ssub.s32 %s9, 1
    %s15 = ssub.s32 %s9, 2
    %s25 = sadd.s32 1, %s18
    %p26 = scmp.ge.s32.totalorder %s25, 1
    %s27 = scalar_select %p26, 0, %s25
    %s28 = sadd.s32 1, %s17
    %s29 = scalar_select %p26, %s28, %s17
    %p30 = scmp.ge.s32.totalorder %s29, 1
    %s31 = scalar_select %p30, 0, %s29
    %s32 = sadd.s32 1, %s16
    %s33 = scalar_select %p30, %s32, %s16
    %p34 = scmp.ge.s32.totalorder %s33, 2
    %s35 = scalar_select %p34, 0, %s33
    %s36 = ssub.s32 %s16, %s35
    %s37 = ssub.s32 %s18, %s27
    %s38 = sor.u32 %s36, %s37
    %p39 = scmp.eq.s32.totalorder %s38, 0
    %s41 = sadd.s32 %s40, 1
    %s42 = scalar_select %p39, %s40, %s41
    %p45 = pneg %p39
    %p46 = scmp.eq.s32.totalorder %s9, 1
    %p47 = por %p45, %p46
    %p48 = scmp.ne.s32.totalorder %s40, %s43
    %p49 = scmp.eq.s32.totalorder %s9, 0
    %p50 = por %p48, %p49
    %p51 = scmp.ne.s32.totalorder %s40, %s43
    %p52 = scmp.eq.s32.totalorder %s14, 1
    %p53 = por %p51, %p52
    %p54 = scmp.ne.s32.totalorder %s43, %s44
    %p55 = scmp.eq.s32.totalorder %s14, 0
    %p56 = por %p54, %p55
    %p57 = scmp.ne.s32.totalorder %s43, %s44
    %p58 = scmp.eq.s32.totalorder %s15, 1
    %p59 = por %p57, %p58
    %p61 = scmp.ne.s32.totalorder %s44, %s60
    %p62 = scmp.eq.s32.totalorder %s15, 0
    %p63 = por %p61, %p62
    %s64 = ssub.s32 %s18, %s27
    %s65 = ssub.s32 %s17, %s31
    %s66 = sor.u32 %s64, %s65
    %p67 = scmp.eq.s32.totalorder %s66, 0
    %s69 = sadd.s32 %s68, 1
    %s70 = scalar_select %p67, %s68, %s69
    %p73 = pneg %p67
    %p74 = scmp.eq.s32.totalorder %s9, 1
    %p75 = por %p73, %p74
    %p76 = scmp.ne.s32.totalorder %s68, %s71
    %p77 = scmp.eq.s32.totalorder %s9, 0
    %p78 = por %p76, %p77
    %p79 = scmp.ne.s32.totalorder %s68, %s71
    %p80 = scmp.eq.s32.totalorder %s14, 1
    %p81 = por %p79, %p80
    %p82 = scmp.ne.s32.totalorder %s71, %s72
    %p83 = scmp.eq.s32.totalorder %s14, 0
    %p84 = por %p82, %p83
    %p85 = scmp.ne.s32.totalorder %s71, %s72
    %p86 = scmp.eq.s32.totalorder %s15, 1
    %p87 = por %p85, %p86
    %p89 = scmp.ne.s32.totalorder %s72, %s88
    %p90 = scmp.eq.s32.totalorder %s15, 0
    %p91 = por %p89, %p90
    %s92 = ssub.s32 %s17, %s31
    %p93 = scmp.eq.s32.totalorder %s92, 0
    %s95 = sadd.s32 %s94, 1
    %s96 = scalar_select %p93, %s94, %s95
    %p99 = pneg %p93
    %p100 = scmp.eq.s32.totalorder %s9, 1
    %p101 = por %p99, %p100
    %p102 = scmp.ne.s32.totalorder %s94, %s97
    %p103 = scmp.eq.s32.totalorder %s9, 0
    %p104 = por %p102, %p103
    %p105 = scmp.ne.s32.totalorder %s94, %s97
    %p106 = scmp.eq.s32.totalorder %s14, 1
    %p107 = por %p105, %p106
    %p108 = scmp.ne.s32.totalorder %s97, %s98
    %p109 = scmp.eq.s32.totalorder %s14, 0
    %p110 = por %p108, %p109
    %p111 = scmp.ne.s32.totalorder %s97, %s98
    %p112 = scmp.eq.s32.totalorder %s15, 1
    %p113 = por %p111, %p112
    %p115 = scmp.ne.s32.totalorder %s98, %s114
    %p116 = scmp.eq.s32.totalorder %s15, 0
    %p117 = por %p115, %p116
    %s118 = ssub.s32 %s16, %s35
    %s119 = ssub.s32 %s17, %s31
    %s120 = sor.u32 %s118, %s119
    %p121 = scmp.eq.s32.totalorder %s120, 0
    %s123 = sadd.s32 %s122, 1
    %s124 = scalar_select %p121, %s122, %s123
    %p127 = pneg %p121
    %p128 = scmp.eq.s32.totalorder %s9, 1
    %p129 = por %p127, %p128
    %p130 = scmp.ne.s32.totalorder %s122, %s125
    %p131 = scmp.eq.s32.totalorder %s9, 0
    %p132 = por %p130, %p131
    %p133 = scmp.ne.s32.totalorder %s122, %s125
    %p134 = scmp.eq.s32.totalorder %s14, 1
    %p135 = por %p133, %p134
    %p136 = scmp.ne.s32.totalorder %s125, %s126
    %p137 = scmp.eq.s32.totalorder %s14, 0
    %p138 = por %p136, %p137
    %p139 = scmp.ne.s32.totalorder %s125, %s126
    %p140 = scmp.eq.s32.totalorder %s15, 1
    %p141 = por %p139, %p140
    %p143 = scmp.ne.s32.totalorder %s126, %s142
    %p144 = scmp.eq.s32.totalorder %s15, 0
    %p145 = por %p143, %p144
    %p146 = scmp.le.s32.totalorder 1, %s9
    %p147 = scmp.lt.s32.totalorder %s9, 3
    %p148 = pnand %p146, %p147
    %p149 = pneg %p148
    // Predicated region
    $region9: #{_lambda_.8} parent=5 // pred_check
      _
    $region10: #{_lambda_.8} parent=5 // pred_check_branch
      %151 = sbr.rel (%p148) target = $region12
    $region11: #{_lambda_.8} parent=5 // pred_region
      %s152 = ssub.s32 %s9, 1
      // Predicated region
      $region13: #{_lambda_.8} parent=11 // pred_check
        %p153 = pneg %p84
      $region14: #{_lambda_.8} parent=11 // pred_check_branch
        %155 = sbr.rel (%p153) target = $region16
      $region15: #{_lambda_.8} parent=11 // pred_region
        %s156 = smul.u32 16, %s21
        %p157 = scmp.lt.s32.totalorder %s156, 15
        %s158 = scalar_select %p157, %s156, 15
        %p159 = scmp.lt.s32.totalorder %s20, 0
        %s160 = scalar_select %p159, %s20, 0
        %s161 = sadd.s32 %s160, %s158
        %s162 = smul.addr %s161, 4
        %s163 = scalar_lea.vmem %s1, %s162
        %s164 = smul.u32 16, %s21
      $region16: #{_lambda_.8} parent=11 // pred_fallthru
        _
      // Predicated region
      $region17: #{_lambda_.8} parent=11 // pred_check
        %p165 = pneg %p110
      $region18: #{_lambda_.8} parent=11 // pred_check_branch
        %167 = sbr.rel (%p165) target = $region20
      $region19: #{_lambda_.8} parent=11 // pred_region
        %p168 = scmp.lt.s32.totalorder %s20, 0
        %s169 = scalar_select %p168, %s20, 0
        %s170 = scalar_lea.vmem %s2, %s169
      $region20: #{_lambda_.8} parent=11 // pred_fallthru
        _
    $region12: #{_lambda_.8} parent=5 // pred_fallthru
      _
    %p171 = scmp.lt.s32.totalorder %s9, 2
    // Predicated region
    $region21: #{_lambda_.8} parent=5 // pred_check
      %p172 = pneg %p171
    $region22: #{_lambda_.8} parent=5 // pred_check_branch
      %174 = sbr.rel (%p172) target = $region24
    $region23: #{_lambda_.8} parent=5 // pred_region
      // Predicated region
      $region25: #{_lambda_.8} parent=23 // pred_check
        %p175 = pneg %p50
      $region26: #{_lambda_.8} parent=23 // pred_check_branch
        %177 = sbr.rel (%p175) target = $region28
      $region27: #{_lambda_.8} parent=23 // pred_region
        %s178 = smul.u32 32, %s16
        %p179 = scmp.lt.s32.totalorder %s178, 63
        %s180 = scalar_select %p179, %s178, 63
        %p181 = scmp.lt.s32.totalorder %s18, 0
        %s182 = scalar_select %p181, %s18, 0
        %s183 = sadd.s32 %s182, %s180
        %s184 = smul.addr %s183, 4
        %s185 = scalar_lea.vmem %s0, %s184
        %s186 = smul.u32 32, %s16
      $region28: #{_lambda_.8} parent=23 // pred_fallthru
        _
    $region24: #{_lambda_.8} parent=5 // pred_fallthru
      _
    %p187 = scmp.le.s32.totalorder 1, %s9
    %p188 = scmp.lt.s32.totalorder %s9, 3
    %p189 = pnand %p187, %p188
    %p190 = pneg %p189
    // Predicated region
    $region29: #{_lambda_.8} parent=5 // pred_check
      _
    $region30: #{_lambda_.8} parent=5 // pred_check_branch
      %192 = sbr.rel (%p189) target = $region32
    $region31: #{_lambda_.8} parent=5 // pred_region
      %s193 = ssub.s32 %s9, 1
      %s194 = smul.u32 32, %s19
      %p195 = scmp.lt.s32.totalorder %s194, 63
      %s196 = scalar_select %p195, %s194, 63
      %p197 = scmp.lt.s32.totalorder %s21, 0
      %s198 = scalar_select %p197, %s21, 0
      %s199 = sadd.s32 %s198, %s196
      %s200 = smul.addr %s199, 4
      %s201 = scalar_lea.vmem %s0, %s200
      %p202 = pneg %p56
      %p203 = pneg %p53
      %s204 = smul.u32 16, %s21
      %p205 = scmp.lt.s32.totalorder %s204, 15
      %s206 = scalar_select %p205, %s204, 15
      %p207 = scmp.lt.s32.totalorder %s20, 0
      %s208 = scalar_select %p207, %s20, 0
      %s209 = sadd.s32 %s208, %s206
      %s210 = smul.addr %s209, 4
      %s211 = scalar_lea.vmem %s1, %s210
      %p212 = pneg %p84
      %p213 = pneg %p81
      %p214 = scmp.lt.s32.totalorder %s20, 0
      %s215 = scalar_select %p214, %s20, 0
      %s216 = scalar_lea.vmem %s2, %s215
      %p217 = pneg %p110
      %p218 = pneg %p107
      %p219 = pneg %p138
      %p220 = pneg %p135
      %s221 = smul.u32 32, %s19
      %p222 = scmp.lt.s32.totalorder %s221, 63
      %s223 = scalar_select %p222, %s221, 63
      %p224 = scmp.lt.s32.totalorder %s20, 0
      %s225 = scalar_select %p224, %s20, 0
      %s226 = sadd.s32 %s225, %s223
      %s227 = smul.addr %s226, 4
      %s228 = scalar_lea.vmem %s3, %s227
      %s229 = smul.u32 32, %s19
      %p230 = scmp.lt.s32.totalorder %s229, 63
      %s231 = scalar_select %p230, %s229, 63
      %p232 = scmp.lt.s32.totalorder %s21, 0
      %s233 = scalar_select %p232, %s21, 0
      %s234 = sadd.s32 %s233, %s231
      %s235 = smul.addr %s234, 4
      %s236 = scalar_lea.vmem %s0, %s235
      %s237 = smul.u32 32, %s19
      %s238 = smul.u32 16, %s21
      %p239 = scmp.lt.s32.totalorder %s238, 15
      %s240 = scalar_select %p239, %s238, 15
      %p241 = scmp.lt.s32.totalorder %s20, 0
      %s242 = scalar_select %p241, %s20, 0
      %s243 = sadd.s32 %s242, %s240
      %s244 = smul.addr %s243, 4
      %s245 = scalar_lea.vmem %s1, %s244
      %s246 = smul.u32 16, %s21
      %p247 = scmp.lt.s32.totalorder %s20, 0
      %s248 = scalar_select %p247, %s20, 0
      %s249 = scalar_lea.vmem %s2, %s248
      %s250 = smul.u32 32, %s19
      %p251 = scmp.lt.s32.totalorder %s250, 63
      %s252 = scalar_select %p251, %s250, 63
      %p253 = scmp.lt.s32.totalorder %s20, 0
      %s254 = scalar_select %p253, %s20, 0
      %s255 = sadd.s32 %s254, %s252
      %s256 = smul.addr %s255, 4
      %s257 = scalar_lea.vmem %s3, %s256
      %s258 = smul.u32 32, %s19
      %p260 = scmp.eq.s32.totalorder %s21, 0
      // Predicated region
      $region33: #{_lambda_.8} parent=31 // pred_check
        %p261 = pneg %p260
      $region34: #{_lambda_.8} parent=31 // pred_check_branch
        %263 = sbr.rel (%p261) target = $region36
      $region35: #{_lambda_.8} parent=31 // pred_region
        %264 = vst [vmem:[#allocation2] sm:$0xff] 0.0
        %265 = vst [vmem:[#allocation2 + $0x8] sm:$0xff] 0.0
        %266 = vst [vmem:[#allocation2 + $0x10] sm:$0xff] 0.0
        %267 = vst [vmem:[#allocation2 + $0x18] sm:$0xff] 0.0
        %268 = vst [vmem:[#allocation2 + $0x20] sm:$0xff] 0.0
        %269 = vst [vmem:[#allocation2 + $0x28] sm:$0xff] 0.0
        %270 = vst [vmem:[#allocation2 + $0x30] sm:$0xff] 0.0
        %271 = vst [vmem:[#allocation2 + $0x38] sm:$0xff] 0.0
        %272 = vst [vmem:[#allocation2 + $0x40] sm:$0xff] 0.0
        %273 = vst [vmem:[#allocation2 + $0x48] sm:$0xff] 0.0
        %274 = vst [vmem:[#allocation2 + $0x50] sm:$0xff] 0.0
        %275 = vst [vmem:[#allocation2 + $0x58] sm:$0xff] 0.0
        %276 = vst [vmem:[#allocation2 + $0x60] sm:$0xff] 0.0
        %277 = vst [vmem:[#allocation2 + $0x68] sm:$0xff] 0.0
        %278 = vst [vmem:[#allocation2 + $0x70] sm:$0xff] 0.0
        %279 = vst [vmem:[#allocation2 + $0x78] sm:$0xff] 0.0
        %280 = vst [vmem:[#allocation2 + $0x80] sm:$0xff] 0.0
        %281 = vst [vmem:[#allocation2 + $0x88] sm:$0xff] 0.0
        %282 = vst [vmem:[#allocation2 + $0x90] sm:$0xff] 0.0
        %283 = vst [vmem:[#allocation2 + $0x98] sm:$0xff] 0.0
        %284 = vst [vmem:[#allocation2 + $0xa0] sm:$0xff] 0.0
        %285 = vst [vmem:[#allocation2 + $0xa8] sm:$0xff] 0.0
        %286 = vst [vmem:[#allocation2 + $0xb0] sm:$0xff] 0.0
        %287 = vst [vmem:[#allocation2 + $0xb8] sm:$0xff] 0.0
        %288 = vst [vmem:[#allocation2 + $0xc0] sm:$0xff] 0.0
        %289 = vst [vmem:[#allocation2 + $0xc8] sm:$0xff] 0.0
        %290 = vst [vmem:[#allocation2 + $0xd0] sm:$0xff] 0.0
        %291 = vst [vmem:[#allocation2 + $0xd8] sm:$0xff] 0.0
        %292 = vst [vmem:[#allocation2 + $0xe0] sm:$0xff] 0.0
        %293 = vst [vmem:[#allocation2 + $0xe8] sm:$0xff] 0.0
        %294 = vst [vmem:[#allocation2 + $0xf0] sm:$0xff] 0.0
        %295 = vst [vmem:[#allocation2 + $0xf8] sm:$0xff] 0.0
      $region36: #{_lambda_.8} parent=31 // pred_fallthru
        _
      %v296 = vld [vmem:[#allocation2] sm:$0xff]
      %v297 = vld [vmem:[#allocation2 + $0x8] sm:$0xff]
      %v298 = vld [vmem:[#allocation2 + $0x10] sm:$0xff]
      %v299 = vld [vmem:[#allocation2 + $0x18] sm:$0xff]
      %v300 = vld [vmem:[#allocation2 + $0x20] sm:$0xff]
      %v301 = vld [vmem:[#allocation2 + $0x28] sm:$0xff]
      %v302 = vld [vmem:[#allocation2 + $0x30] sm:$0xff]
      %v303 = vld [vmem:[#allocation2 + $0x38] sm:$0xff]
      %v304 = vld [vmem:[#allocation2 + $0x40] sm:$0xff]
      %v305 = vld [vmem:[#allocation2 + $0x48] sm:$0xff]
      %v306 = vld [vmem:[#allocation2 + $0x50] sm:$0xff]
      %v307 = vld [vmem:[#allocation2 + $0x58] sm:$0xff]
      %v308 = vld [vmem:[#allocation2 + $0x60] sm:$0xff]
      %v309 = vld [vmem:[#allocation2 + $0x68] sm:$0xff]
      %v310 = vld [vmem:[#allocation2 + $0x70] sm:$0xff]
      %v311 = vld [vmem:[#allocation2 + $0x78] sm:$0xff]
      %v312 = vld [vmem:[#allocation2 + $0x80] sm:$0xff]
      %v313 = vld [vmem:[#allocation2 + $0x88] sm:$0xff]
      %v314 = vld [vmem:[#allocation2 + $0x90] sm:$0xff]
      %v315 = vld [vmem:[#allocation2 + $0x98] sm:$0xff]
      %v316 = vld [vmem:[#allocation2 + $0xa0] sm:$0xff]
      %v317 = vld [vmem:[#allocation2 + $0xa8] sm:$0xff]
      %v318 = vld [vmem:[#allocation2 + $0xb0] sm:$0xff]
      %v319 = vld [vmem:[#allocation2 + $0xb8] sm:$0xff]
      %v320 = vld [vmem:[#allocation2 + $0xc0] sm:$0xff]
      %v321 = vld [vmem:[#allocation2 + $0xc8] sm:$0xff]
      %v322 = vld [vmem:[#allocation2 + $0xd0] sm:$0xff]
      %v323 = vld [vmem:[#allocation2 + $0xd8] sm:$0xff]
      %v324 = vld [vmem:[#allocation2 + $0xe0] sm:$0xff]
      %v325 = vld [vmem:[#allocation2 + $0xe8] sm:$0xff]
      %v326 = vld [vmem:[#allocation2 + $0xf0] sm:$0xff]
      %v327 = vld [vmem:[#allocation2 + $0xf8] sm:$0xff]
      %v328 = vld [vmem:[%s236] sm:$0xf]
      %v329 = vld [vmem:[%s236 + $0x4] sm:$0xf]
      %v330 = vld [vmem:[%s236 + $0x8] sm:$0xf]
      %v331 = vld [vmem:[%s236 + $0xc] sm:$0xf]
      %v332 = vld [vmem:[%s236 + $0x10] sm:$0xf]
      %v333 = vld [vmem:[%s236 + $0x14] sm:$0xf]
      %v334 = vld [vmem:[%s236 + $0x18] sm:$0xf]
      %v335 = vld [vmem:[%s236 + $0x1c] sm:$0xf]
      %v336 = vld [vmem:[%s236 + $0x20] sm:$0xf]
      %v337 = vld [vmem:[%s236 + $0x24] sm:$0xf]
      %v338 = vld [vmem:[%s236 + $0x28] sm:$0xf]
      %v339 = vld [vmem:[%s236 + $0x2c] sm:$0xf]
      %v340 = vld [vmem:[%s236 + $0x30] sm:$0xf]
      %v341 = vld [vmem:[%s236 + $0x34] sm:$0xf]
      %v342 = vld [vmem:[%s236 + $0x38] sm:$0xf]
      %v343 = vld [vmem:[%s236 + $0x3c] sm:$0xf]
      %v344 = vld [vmem:[%s236 + $0x40] sm:$0xf]
      %v345 = vld [vmem:[%s236 + $0x44] sm:$0xf]
      %v346 = vld [vmem:[%s236 + $0x48] sm:$0xf]
      %v347 = vld [vmem:[%s236 + $0x4c] sm:$0xf]
      %v348 = vld [vmem:[%s236 + $0x50] sm:$0xf]
      %v349 = vld [vmem:[%s236 + $0x54] sm:$0xf]
      %v350 = vld [vmem:[%s236 + $0x58] sm:$0xf]
      %v351 = vld [vmem:[%s236 + $0x5c] sm:$0xf]
      %v352 = vld [vmem:[%s236 + $0x60] sm:$0xf]
      %v353 = vld [vmem:[%s236 + $0x64] sm:$0xf]
      %v354 = vld [vmem:[%s236 + $0x68] sm:$0xf]
      %v355 = vld [vmem:[%s236 + $0x6c] sm:$0xf]
      %v356 = vld [vmem:[%s236 + $0x70] sm:$0xf]
      %v357 = vld [vmem:[%s236 + $0x74] sm:$0xf]
      %v358 = vld [vmem:[%s236 + $0x78] sm:$0xf]
      %v359 = vld [vmem:[%s236 + $0x7c] sm:$0xf]
      %v360 = vld [vmem:[%s245] sm:$0xf]
      %v361 = vld [vmem:[%s245 + $0x4] sm:$0xf]
      %v362 = vld [vmem:[%s245 + $0x8] sm:$0xf]
      %v363 = vld [vmem:[%s245 + $0xc] sm:$0xf]
      %v364 = vld [vmem:[%s245 + $0x10] sm:$0xf]
      %v365 = vld [vmem:[%s245 + $0x14] sm:$0xf]
      %v366 = vld [vmem:[%s245 + $0x18] sm:$0xf]
      %v367 = vld [vmem:[%s245 + $0x1c] sm:$0xf]
      %v368 = vld [vmem:[%s245 + $0x20] sm:$0xf]
      %v369 = vld [vmem:[%s245 + $0x24] sm:$0xf]
      %v370 = vld [vmem:[%s245 + $0x28] sm:$0xf]
      %v371 = vld [vmem:[%s245 + $0x2c] sm:$0xf]
      %v372 = vld [vmem:[%s245 + $0x30] sm:$0xf]
      %v373 = vld [vmem:[%s245 + $0x34] sm:$0xf]
      %v374 = vld [vmem:[%s245 + $0x38] sm:$0xf]
      %v375 = vld [vmem:[%s245 + $0x3c] sm:$0xf]
      %v408 = vunpack.c.l.b16 %v328
      %v409 = vunpack.c.l.b16 %v329
      %v410 = vunpack.c.l.b16 %v330
      %v411 = vunpack.c.l.b16 %v331
      %v412 = vunpack.c.l.b16 %v332
      %v413 = vunpack.c.l.b16 %v333
      %v414 = vunpack.c.l.b16 %v334
      %v415 = vunpack.c.l.b16 %v335
      %v416 = vunpack.c.l.b16 %v336
      %v417 = vunpack.c.l.b16 %v337
      %v418 = vunpack.c.l.b16 %v338
      %v419 = vunpack.c.l.b16 %v339
      %v420 = vunpack.c.l.b16 %v340
      %v421 = vunpack.c.l.b16 %v341
      %v422 = vunpack.c.l.b16 %v342
      %v423 = vunpack.c.l.b16 %v343
      %v424 = vunpack.c.l.b16 %v344
      %v425 = vunpack.c.l.b16 %v345
      %v426 = vunpack.c.l.b16 %v346
      %v427 = vunpack.c.l.b16 %v347
      %v428 = vunpack.c.l.b16 %v348
      %v429 = vunpack.c.l.b16 %v349
      %v430 = vunpack.c.l.b16 %v350
      %v431 = vunpack.c.l.b16 %v351
      %v432 = vunpack.c.l.b16 %v352
      %v433 = vunpack.c.l.b16 %v353
      %v434 = vunpack.c.l.b16 %v354
      %v435 = vunpack.c.l.b16 %v355
      %v436 = vunpack.c.l.b16 %v356
      %v437 = vunpack.c.l.b16 %v357
      %v438 = vunpack.c.l.b16 %v358
      %v439 = vunpack.c.l.b16 %v359
      %v440 = vpack.c.b16 %v409, %v408
      %v441 = vpack.c.b16 %v411, %v410
      %v442 = vpack.c.b16 %v413, %v412
      %v443 = vpack.c.b16 %v415, %v414
      %v444 = vpack.c.b16 %v417, %v416
      %v445 = vpack.c.b16 %v419, %v418
      %v446 = vpack.c.b16 %v421, %v420
      %v447 = vpack.c.b16 %v423, %v422
      %v448 = vpack.c.b16 %v425, %v424
      %v449 = vpack.c.b16 %v427, %v426
      %v450 = vpack.c.b16 %v429, %v428
      %v451 = vpack.c.b16 %v431, %v430
      %v452 = vpack.c.b16 %v433, %v432
      %v453 = vpack.c.b16 %v435, %v434
      %v454 = vpack.c.b16 %v437, %v436
      %v455 = vpack.c.b16 %v439, %v438
      %v488 = vunpack.c.l.b16 %v360
      %v489 = vunpack.c.l.b16 %v361
      %v490 = vunpack.c.l.b16 %v362
      %v491 = vunpack.c.l.b16 %v363
      %v492 = vunpack.c.l.b16 %v364
      %v493 = vunpack.c.l.b16 %v365
      %v494 = vunpack.c.l.b16 %v366
      %v495 = vunpack.c.l.b16 %v367
      %v496 = vunpack.c.l.b16 %v368
      %v497 = vunpack.c.l.b16 %v369
      %v498 = vunpack.c.l.b16 %v370
      %v499 = vunpack.c.l.b16 %v371
      %v500 = vunpack.c.l.b16 %v372
      %v501 = vunpack.c.l.b16 %v373
      %v502 = vunpack.c.l.b16 %v374
      %v503 = vunpack.c.l.b16 %v375
      %v504 = vpack.c.b16 %v489, %v488
      %v505 = vpack.c.b16 %v491, %v490
      %v506 = vpack.c.b16 %v493, %v492
      %v507 = vpack.c.b16 %v495, %v494
      %v508 = vpack.c.b16 %v497, %v496
      %v509 = vpack.c.b16 %v499, %v498
      %v510 = vpack.c.b16 %v501, %v500
      %v511 = vpack.c.b16 %v503, %v502
      %520 = vmatprep.subr.bf16.mxu0 0
      %521 = vmatpush1.bf16.msra.mxu0 %v504
      %522 = vmatprep.subr.bf16.mxu0 0
      %523 = vmatpush1.bf16.msra.mxu0 %v505
      %524 = vmatprep.subr.bf16.mxu0 0
      %525 = vmatpush1.bf16.msra.mxu0 %v506
      %526 = vmatprep.subr.bf16.mxu0 0
      %527 = vmatpush1.bf16.msra.mxu0 %v507
      %528 = vmatprep.subr.bf16.mxu0 0
      %529 = vmatpush1.bf16.msra.mxu0 %v508
      %530 = vmatprep.subr.bf16.mxu0 0
      %531 = vmatpush1.bf16.msra.mxu0 %v509
      %532 = vmatprep.subr.bf16.mxu0 0
      %533 = vmatpush1.bf16.msra.mxu0 %v510
      %534 = vmatprep.subr.bf16.mxu0 0
      %535 = vmatpush1.bf16.msra.mxu0 %v511
      %536 = vmatprep.subr.bf16.mxu0 0
      %537 = vmatpush1.bf16.msra.mxu0 0
      %538 = vmatprep.subr.bf16.mxu0 0
      %539 = vmatpush1.bf16.msra.mxu0 0
      %540 = vmatprep.subr.bf16.mxu0 0
      %541 = vmatpush1.bf16.msra.mxu0 0
      %542 = vmatprep.subr.bf16.mxu0 0
      %543 = vmatpush1.bf16.msra.mxu0 0
      %544 = vmatprep.subr.bf16.mxu0 0
      %545 = vmatpush1.bf16.msra.mxu0 0
      %546 = vmatprep.subr.bf16.mxu0 0
      %547 = vmatpush1.bf16.msra.mxu0 0
      %548 = vmatprep.subr.bf16.mxu0 0
      %549 = vmatpush1.bf16.msra.mxu0 0
      %550 = vmatprep.subr.bf16.mxu0 0
      %551 = vmatpush1.bf16.msra.mxu0 0
      %552 = vmatprep.mubr.bf16.mxu0 0
      %553 = vmatmul.mubr.bf16.gmra.mrb[0].mxu0 %v440
      %v554 = vpop.f32.mrb[0].mxu0
      %v555 = vadd.f32 0.0, %v554
      %v556 = vpop.f32.mrb[0].mxu0
      %v557 = vpop.f32.mrb[0].mxu0
      %v558 = vadd.f32 0.0, %v557
      %v559 = vpop.f32.mrb[0].mxu0
      %560 = vmatprep.mubr.bf16.mxu0 0
      %561 = vmatmul.mubr.bf16.gmra.mrb[0].mxu0 %v441
      %v562 = vpop.f32.mrb[0].mxu0
      %v563 = vadd.f32 0.0, %v562
      %v564 = vpop.f32.mrb[0].mxu0
      %v565 = vpop.f32.mrb[0].mxu0
      %v566 = vadd.f32 0.0, %v565
      %v567 = vpop.f32.mrb[0].mxu0
      %568 = vmatprep.mubr.bf16.mxu0 0
      %569 = vmatmul.mubr.bf16.gmra.mrb[0].mxu0 %v442
      %v570 = vpop.f32.mrb[0].mxu0
      %v571 = vadd.f32 0.0, %v570
      %v572 = vpop.f32.mrb[0].mxu0
      %v573 = vpop.f32.mrb[0].mxu0
      %v574 = vadd.f32 0.0, %v573
      %v575 = vpop.f32.mrb[0].mxu0
      %576 = vmatprep.mubr.bf16.mxu0 0
      %577 = vmatmul.mubr.bf16.gmra.mrb[0].mxu0 %v443
      %v578 = vpop.f32.mrb[0].mxu0
      %v579 = vadd.f32 0.0, %v578
      %v580 = vpop.f32.mrb[0].mxu0
      %v581 = vpop.f32.mrb[0].mxu0
      %v582 = vadd.f32 0.0, %v581
      %v583 = vpop.f32.mrb[0].mxu0
      %584 = vmatprep.mubr.bf16.mxu0 0
      %585 = vmatmul.mubr.bf16.gmra.mrb[0].mxu0 %v444
      %v586 = vpop.f32.mrb[0].mxu0
      %v587 = vadd.f32 0.0, %v586
      %v588 = vpop.f32.mrb[0].mxu0
      %v589 = vpop.f32.mrb[0].mxu0
      %v590 = vadd.f32 0.0, %v589
      %v591 = vpop.f32.mrb[0].mxu0
      %592 = vmatprep.mubr.bf16.mxu0 0
      %593 = vmatmul.mubr.bf16.gmra.mrb[0].mxu0 %v445
      %v594 = vpop.f32.mrb[0].mxu0
      %v595 = vadd.f32 0.0, %v594
      %v596 = vpop.f32.mrb[0].mxu0
      %v597 = vpop.f32.mrb[0].mxu0
      %v598 = vadd.f32 0.0, %v597
      %v599 = vpop.f32.mrb[0].mxu0
      %600 = vmatprep.mubr.bf16.mxu0 0
      %601 = vmatmul.mubr.bf16.gmra.mrb[0].mxu0 %v446
      %v602 = vpop.f32.mrb[0].mxu0
      %v603 = vadd.f32 0.0, %v602
      %v604 = vpop.f32.mrb[0].mxu0
      %v605 = vpop.f32.mrb[0].mxu0
      %v606 = vadd.f32 0.0, %v605
      %v607 = vpop.f32.mrb[0].mxu0
      %608 = vmatprep.mubr.bf16.mxu0 0
      %609 = vmatmul.mubr.bf16.gmra.mrb[0].mxu0 %v447
      %v610 = vpop.f32.mrb[0].mxu0
      %v611 = vadd.f32 0.0, %v610
      %v612 = vpop.f32.mrb[0].mxu0
      %v613 = vpop.f32.mrb[0].mxu0
      %v614 = vadd.f32 0.0, %v613
      %v615 = vpop.f32.mrb[0].mxu0
      %616 = vmatprep.mubr.bf16.mxu0 0
      %617 = vmatmul.mubr.bf16.gmra.mrb[0].mxu0 %v448
      %v618 = vpop.f32.mrb[0].mxu0
      %v619 = vadd.f32 0.0, %v618
      %v620 = vpop.f32.mrb[0].mxu0
      %v621 = vpop.f32.mrb[0].mxu0
      %v622 = vadd.f32 0.0, %v621
      %v623 = vpop.f32.mrb[0].mxu0
      %624 = vmatprep.mubr.bf16.mxu0 0
      %625 = vmatmul.mubr.bf16.gmra.mrb[0].mxu0 %v449
      %v626 = vpop.f32.mrb[0].mxu0
      %v627 = vadd.f32 0.0, %v626
      %v628 = vpop.f32.mrb[0].mxu0
      %v629 = vpop.f32.mrb[0].mxu0
      %v630 = vadd.f32 0.0, %v629
      %v631 = vpop.f32.mrb[0].mxu0
      %632 = vmatprep.mubr.bf16.mxu0 0
      %633 = vmatmul.mubr.bf16.gmra.mrb[0].mxu0 %v450
      %v634 = vpop.f32.mrb[0].mxu0
      %v635 = vadd.f32 0.0, %v634
      %v636 = vpop.f32.mrb[0].mxu0
      %v637 = vpop.f32.mrb[0].mxu0
      %v638 = vadd.f32 0.0, %v637
      %v639 = vpop.f32.mrb[0].mxu0
      %640 = vmatprep.mubr.bf16.mxu0 0
      %641 = vmatmul.mubr.bf16.gmra.mrb[0].mxu0 %v451
      %v642 = vpop.f32.mrb[0].mxu0
      %v643 = vadd.f32 0.0, %v642
      %v644 = vpop.f32.mrb[0].mxu0
      %v645 = vpop.f32.mrb[0].mxu0
      %v646 = vadd.f32 0.0, %v645
      %v647 = vpop.f32.mrb[0].mxu0
      %648 = vmatprep.mubr.bf16.mxu0 0
      %649 = vmatmul.mubr.bf16.gmra.mrb[0].mxu0 %v452
      %v650 = vpop.f32.mrb[0].mxu0
      %v651 = vadd.f32 0.0, %v650
      %v652 = vpop.f32.mrb[0].mxu0
      %v653 = vpop.f32.mrb[0].mxu0
      %v654 = vadd.f32 0.0, %v653
      %v655 = vpop.f32.mrb[0].mxu0
      %656 = vmatprep.mubr.bf16.mxu0 0
      %657 = vmatmul.mubr.bf16.gmra.mrb[0].mxu0 %v453
      %v658 = vpop.f32.mrb[0].mxu0
      %v659 = vadd.f32 0.0, %v658
      %v660 = vpop.f32.mrb[0].mxu0
      %v661 = vpop.f32.mrb[0].mxu0
      %v662 = vadd.f32 0.0, %v661
      %v663 = vpop.f32.mrb[0].mxu0
      %664 = vmatprep.mubr.bf16.mxu0 0
      %665 = vmatmul.mubr.bf16.gmra.mrb[0].mxu0 %v454
      %v666 = vpop.f32.mrb[0].mxu0
      %v667 = vadd.f32 0.0, %v666
      %v668 = vpop.f32.mrb[0].mxu0
      %v669 = vpop.f32.mrb[0].mxu0
      %v670 = vadd.f32 0.0, %v669
      %v671 = vpop.f32.mrb[0].mxu0
      %672 = vmatprep.mubr.bf16.mxu0 0
      %673 = vmatmul.mubr.bf16.gmra.mrb[0].mxu0 %v455
      %v674 = vpop.f32.mrb[0].mxu0
      %v675 = vadd.f32 0.0, %v674
      %v676 = vpop.f32.mrb[0].mxu0
      %v677 = vpop.f32.mrb[0].mxu0
      %v678 = vadd.f32 0.0, %v677
      %v679 = vpop.f32.mrb[0].mxu0
      %680 = vdwg.mxu0
      %v681 = vadd.f32 %v296, %v555
      %v682 = vadd.f32 %v297, %v558
      %v683 = vadd.f32 %v298, %v563
      %v684 = vadd.f32 %v299, %v566
      %v685 = vadd.f32 %v300, %v571
      %v686 = vadd.f32 %v301, %v574
      %v687 = vadd.f32 %v302, %v579
      %v688 = vadd.f32 %v303, %v582
      %v689 = vadd.f32 %v304, %v587
      %v690 = vadd.f32 %v305, %v590
      %v691 = vadd.f32 %v306, %v595
      %v692 = vadd.f32 %v307, %v598
      %v693 = vadd.f32 %v308, %v603
      %v694 = vadd.f32 %v309, %v606
      %v695 = vadd.f32 %v310, %v611
      %v696 = vadd.f32 %v311, %v614
      %v697 = vadd.f32 %v312, %v619
      %v698 = vadd.f32 %v313, %v622
      %v699 = vadd.f32 %v314, %v627
      %v700 = vadd.f32 %v315, %v630
      %v701 = vadd.f32 %v316, %v635
      %v702 = vadd.f32 %v317, %v638
      %v703 = vadd.f32 %v318, %v643
      %v704 = vadd.f32 %v319, %v646
      %v705 = vadd.f32 %v320, %v651
      %v706 = vadd.f32 %v321, %v654
      %v707 = vadd.f32 %v322, %v659
      %v708 = vadd.f32 %v323, %v662
      %v709 = vadd.f32 %v324, %v667
      %v710 = vadd.f32 %v325, %v670
      %v711 = vadd.f32 %v326, %v675
      %v712 = vadd.f32 %v327, %v678
      %713 = vst [vmem:[#allocation2] sm:$0xff] %v681
      %714 = vst [vmem:[#allocation2 + $0x8] sm:$0xff] %v682
      %715 = vst [vmem:[#allocation2 + $0x10] sm:$0xff] %v683
      %716 = vst [vmem:[#allocation2 + $0x18] sm:$0xff] %v684
      %717 = vst [vmem:[#allocation2 + $0x20] sm:$0xff] %v685
      %718 = vst [vmem:[#allocation2 + $0x28] sm:$0xff] %v686
      %719 = vst [vmem:[#allocation2 + $0x30] sm:$0xff] %v687
      %720 = vst [vmem:[#allocation2 + $0x38] sm:$0xff] %v688
      %721 = vst [vmem:[#allocation2 + $0x40] sm:$0xff] %v689
      %722 = vst [vmem:[#allocation2 + $0x48] sm:$0xff] %v690
      %723 = vst [vmem:[#allocation2 + $0x50] sm:$0xff] %v691
      %724 = vst [vmem:[#allocation2 + $0x58] sm:$0xff] %v692
      %725 = vst [vmem:[#allocation2 + $0x60] sm:$0xff] %v693
      %726 = vst [vmem:[#allocation2 + $0x68] sm:$0xff] %v694
      %727 = vst [vmem:[#allocation2 + $0x70] sm:$0xff] %v695
      %728 = vst [vmem:[#allocation2 + $0x78] sm:$0xff] %v696
      %729 = vst [vmem:[#allocation2 + $0x80] sm:$0xff] %v697
      %730 = vst [vmem:[#allocation2 + $0x88] sm:$0xff] %v698
      %731 = vst [vmem:[#allocation2 + $0x90] sm:$0xff] %v699
      %732 = vst [vmem:[#allocation2 + $0x98] sm:$0xff] %v700
      %733 = vst [vmem:[#allocation2 + $0xa0] sm:$0xff] %v701
      %734 = vst [vmem:[#allocation2 + $0xa8] sm:$0xff] %v702
      %735 = vst [vmem:[#allocation2 + $0xb0] sm:$0xff] %v703
      %736 = vst [vmem:[#allocation2 + $0xb8] sm:$0xff] %v704
      %737 = vst [vmem:[#allocation2 + $0xc0] sm:$0xff] %v705
      %738 = vst [vmem:[#allocation2 + $0xc8] sm:$0xff] %v706
      %739 = vst [vmem:[#allocation2 + $0xd0] sm:$0xff] %v707
      %740 = vst [vmem:[#allocation2 + $0xd8] sm:$0xff] %v708
      %741 = vst [vmem:[#allocation2 + $0xe0] sm:$0xff] %v709
      %742 = vst [vmem:[#allocation2 + $0xe8] sm:$0xff] %v710
      %743 = vst [vmem:[#allocation2 + $0xf0] sm:$0xff] %v711
      %744 = vst [vmem:[#allocation2 + $0xf8] sm:$0xff] %v712
      // Predicated region
      $region37: #{_lambda_.8} parent=31 // pred_check
        %p745 = pneg %p260
      $region38: #{_lambda_.8} parent=31 // pred_check_branch
        %747 = sbr.rel (%p745) target = $region40
      $region39: #{_lambda_.8} parent=31 // pred_region
        %v748 = vld [vmem:[#allocation2] sm:$0xff]
        %v749 = vld [vmem:[#allocation2 + $0x8] sm:$0xff]
        %v750 = vld [vmem:[#allocation2 + $0x10] sm:$0xff]
        %v751 = vld [vmem:[#allocation2 + $0x18] sm:$0xff]
        %v752 = vld [vmem:[#allocation2 + $0x20] sm:$0xff]
        %v753 = vld [vmem:[#allocation2 + $0x28] sm:$0xff]
        %v754 = vld [vmem:[#allocation2 + $0x30] sm:$0xff]
        %v755 = vld [vmem:[#allocation2 + $0x38] sm:$0xff]
        %v756 = vld [vmem:[#allocation2 + $0x40] sm:$0xff]
        %v757 = vld [vmem:[#allocation2 + $0x48] sm:$0xff]
        %v758 = vld [vmem:[#allocation2 + $0x50] sm:$0xff]
        %v759 = vld [vmem:[#allocation2 + $0x58] sm:$0xff]
        %v760 = vld [vmem:[#allocation2 + $0x60] sm:$0xff]
        %v761 = vld [vmem:[#allocation2 + $0x68] sm:$0xff]
        %v762 = vld [vmem:[#allocation2 + $0x70] sm:$0xff]
        %v763 = vld [vmem:[#allocation2 + $0x78] sm:$0xff]
        %v764 = vld [vmem:[#allocation2 + $0x80] sm:$0xff]
        %v765 = vld [vmem:[#allocation2 + $0x88] sm:$0xff]
        %v766 = vld [vmem:[#allocation2 + $0x90] sm:$0xff]
        %v767 = vld [vmem:[#allocation2 + $0x98] sm:$0xff]
        %v768 = vld [vmem:[#allocation2 + $0xa0] sm:$0xff]
        %v769 = vld [vmem:[#allocation2 + $0xa8] sm:$0xff]
        %v770 = vld [vmem:[#allocation2 + $0xb0] sm:$0xff]
        %v771 = vld [vmem:[#allocation2 + $0xb8] sm:$0xff]
        %v772 = vld [vmem:[#allocation2 + $0xc0] sm:$0xff]
        %v773 = vld [vmem:[#allocation2 + $0xc8] sm:$0xff]
        %v774 = vld [vmem:[#allocation2 + $0xd0] sm:$0xff]
        %v775 = vld [vmem:[#allocation2 + $0xd8] sm:$0xff]
        %v776 = vld [vmem:[#allocation2 + $0xe0] sm:$0xff]
        %v777 = vld [vmem:[#allocation2 + $0xe8] sm:$0xff]
        %v778 = vld [vmem:[#allocation2 + $0xf0] sm:$0xff]
        %v779 = vld [vmem:[#allocation2 + $0xf8] sm:$0xff]
        %v780 = vld [vmem:[%s249] sm:$0x1]
        %v782 = vlaneseq
        %v783 = vshrl.u32 %v782, 7
        %v784 = vsub.s32 0, %v783
        %v785 = vrot.slane %v780, %v784
        %v787 = vadd.f32 %v748, %v785
        %v788 = vadd.f32 %v749, %v785
        %v789 = vadd.f32 %v750, %v785
        %v790 = vadd.f32 %v751, %v785
        %v791 = vadd.f32 %v752, %v785
        %v792 = vadd.f32 %v753, %v785
        %v793 = vadd.f32 %v754, %v785
        %v794 = vadd.f32 %v755, %v785
        %v795 = vadd.f32 %v756, %v785
        %v796 = vadd.f32 %v757, %v785
        %v797 = vadd.f32 %v758, %v785
        %v798 = vadd.f32 %v759, %v785
        %v799 = vadd.f32 %v760, %v785
        %v800 = vadd.f32 %v761, %v785
        %v801 = vadd.f32 %v762, %v785
        %v802 = vadd.f32 %v763, %v785
        %v803 = vadd.f32 %v764, %v785
        %v804 = vadd.f32 %v765, %v785
        %v805 = vadd.f32 %v766, %v785
        %v806 = vadd.f32 %v767, %v785
        %v807 = vadd.f32 %v768, %v785
        %v808 = vadd.f32 %v769, %v785
        %v809 = vadd.f32 %v770, %v785
        %v810 = vadd.f32 %v771, %v785
        %v811 = vadd.f32 %v772, %v785
        %v812 = vadd.f32 %v773, %v785
        %v813 = vadd.f32 %v774, %v785
        %v814 = vadd.f32 %v775, %v785
        %v815 = vadd.f32 %v776, %v785
        %v816 = vadd.f32 %v777, %v785
        %v817 = vadd.f32 %v778, %v785
        %v818 = vadd.f32 %v779, %v785
        %vm819 = vcmp.gt.f32.partialorder %v787, 0.0
        %vm820 = vcmp.gt.f32.partialorder %v788, 0.0
        %vm821 = vcmp.gt.f32.partialorder %v789, 0.0
        %vm822 = vcmp.gt.f32.partialorder %v790, 0.0
        %vm823 = vcmp.gt.f32.partialorder %v791, 0.0
        %vm824 = vcmp.gt.f32.partialorder %v792, 0.0
        %vm825 = vcmp.gt.f32.partialorder %v793, 0.0
        %vm826 = vcmp.gt.f32.partialorder %v794, 0.0
        %vm827 = vcmp.gt.f32.partialorder %v795, 0.0
        %vm828 = vcmp.gt.f32.partialorder %v796, 0.0
        %vm829 = vcmp.gt.f32.partialorder %v797, 0.0
        %vm830 = vcmp.gt.f32.partialorder %v798, 0.0
        %vm831 = vcmp.gt.f32.partialorder %v799, 0.0
        %vm832 = vcmp.gt.f32.partialorder %v800, 0.0
        %vm833 = vcmp.gt.f32.partialorder %v801, 0.0
        %vm834 = vcmp.gt.f32.partialorder %v802, 0.0
        %vm835 = vcmp.gt.f32.partialorder %v803, 0.0
        %vm836 = vcmp.gt.f32.partialorder %v804, 0.0
        %vm837 = vcmp.gt.f32.partialorder %v805, 0.0
        %vm838 = vcmp.gt.f32.partialorder %v806, 0.0
        %vm839 = vcmp.gt.f32.partialorder %v807, 0.0
        %vm840 = vcmp.gt.f32.partialorder %v808, 0.0
        %vm841 = vcmp.gt.f32.partialorder %v809, 0.0
        %vm842 = vcmp.gt.f32.partialorder %v810, 0.0
        %vm843 = vcmp.gt.f32.partialorder %v811, 0.0
        %vm844 = vcmp.gt.f32.partialorder %v812, 0.0
        %vm845 = vcmp.gt.f32.partialorder %v813, 0.0
        %vm846 = vcmp.gt.f32.partialorder %v814, 0.0
        %vm847 = vcmp.gt.f32.partialorder %v815, 0.0
        %vm848 = vcmp.gt.f32.partialorder %v816, 0.0
        %vm849 = vcmp.gt.f32.partialorder %v817, 0.0
        %vm850 = vcmp.gt.f32.partialorder %v818, 0.0
        %v851 = vmul.f32 %v787, 0.2
        %v852 = vmul.f32 %v788, 0.2
        %v853 = vmul.f32 %v789, 0.2
        %v854 = vmul.f32 %v790, 0.2
        %v855 = vmul.f32 %v791, 0.2
        %v856 = vmul.f32 %v792, 0.2
        %v857 = vmul.f32 %v793, 0.2
        %v858 = vmul.f32 %v794, 0.2
        %v859 = vmul.f32 %v795, 0.2
        %v860 = vmul.f32 %v796, 0.2
        %v861 = vmul.f32 %v797, 0.2
        %v862 = vmul.f32 %v798, 0.2
        %v863 = vmul.f32 %v799, 0.2
        %v864 = vmul.f32 %v800, 0.2
        %v865 = vmul.f32 %v801, 0.2
        %v866 = vmul.f32 %v802, 0.2
        %v867 = vmul.f32 %v803, 0.2
        %v868 = vmul.f32 %v804, 0.2
        %v869 = vmul.f32 %v805, 0.2
        %v870 = vmul.f32 %v806, 0.2
        %v871 = vmul.f32 %v807, 0.2
        %v872 = vmul.f32 %v808, 0.2
        %v873 = vmul.f32 %v809, 0.2
        %v874 = vmul.f32 %v810, 0.2
        %v875 = vmul.f32 %v811, 0.2
        %v876 = vmul.f32 %v812, 0.2
        %v877 = vmul.f32 %v813, 0.2
        %v878 = vmul.f32 %v814, 0.2
        %v879 = vmul.f32 %v815, 0.2
        %v880 = vmul.f32 %v816, 0.2
        %v881 = vmul.f32 %v817, 0.2
        %v882 = vmul.f32 %v818, 0.2
        %v883 = vsel %vm819, %v787, %v851
        %v884 = vsel %vm820, %v788, %v852
        %v885 = vsel %vm821, %v789, %v853
        %v886 = vsel %vm822, %v790, %v854
        %v887 = vsel %vm823, %v791, %v855
        %v888 = vsel %vm824, %v792, %v856
        %v889 = vsel %vm825, %v793, %v857
        %v890 = vsel %vm826, %v794, %v858
        %v891 = vsel %vm827, %v795, %v859
        %v892 = vsel %vm828, %v796, %v860
        %v893 = vsel %vm829, %v797, %v861
        %v894 = vsel %vm830, %v798, %v862
        %v895 = vsel %vm831, %v799, %v863
        %v896 = vsel %vm832, %v800, %v864
        %v897 = vsel %vm833, %v801, %v865
        %v898 = vsel %vm834, %v802, %v866
        %v899 = vsel %vm835, %v803, %v867
        %v900 = vsel %vm836, %v804, %v868
        %v901 = vsel %vm837, %v805, %v869
        %v902 = vsel %vm838, %v806, %v870
        %v903 = vsel %vm839, %v807, %v871
        %v904 = vsel %vm840, %v808, %v872
        %v905 = vsel %vm841, %v809, %v873
        %v906 = vsel %vm842, %v810, %v874
        %v907 = vsel %vm843, %v811, %v875
        %v908 = vsel %vm844, %v812, %v876
        %v909 = vsel %vm845, %v813, %v877
        %v910 = vsel %vm846, %v814, %v878
        %v911 = vsel %vm847, %v815, %v879
        %v912 = vsel %vm848, %v816, %v880
        %v913 = vsel %vm849, %v817, %v881
        %v914 = vsel %vm850, %v818, %v882
        %v915 = vpack.c.bf16 %v884, %v883
        %v916 = vpack.c.bf16 %v886, %v885
        %v917 = vpack.c.bf16 %v888, %v887
        %v918 = vpack.c.bf16 %v890, %v889
        %v919 = vpack.c.bf16 %v892, %v891
        %v920 = vpack.c.bf16 %v894, %v893
        %v921 = vpack.c.bf16 %v896, %v895
        %v922 = vpack.c.bf16 %v898, %v897
        %v923 = vpack.c.bf16 %v900, %v899
        %v924 = vpack.c.bf16 %v902, %v901
        %v925 = vpack.c.bf16 %v904, %v903
        %v926 = vpack.c.bf16 %v906, %v905
        %v927 = vpack.c.bf16 %v908, %v907
        %v928 = vpack.c.bf16 %v910, %v909
        %v929 = vpack.c.bf16 %v912, %v911
        %v930 = vpack.c.bf16 %v914, %v913
        %v947 = vunpack.c.l.b16 %v915
        %v948 = vunpack.c.h.b16 %v915
        %v949 = vunpack.c.l.b16 %v916
        %v950 = vunpack.c.h.b16 %v916
        %v951 = vunpack.c.l.b16 %v917
        %v952 = vunpack.c.h.b16 %v917
        %v953 = vunpack.c.l.b16 %v918
        %v954 = vunpack.c.h.b16 %v918
        %v955 = vunpack.c.l.b16 %v919
        %v956 = vunpack.c.h.b16 %v919
        %v957 = vunpack.c.l.b16 %v920
        %v958 = vunpack.c.h.b16 %v920
        %v959 = vunpack.c.l.b16 %v921
        %v960 = vunpack.c.h.b16 %v921
        %v961 = vunpack.c.l.b16 %v922
        %v962 = vunpack.c.h.b16 %v922
        %v963 = vunpack.c.l.b16 %v923
        %v964 = vunpack.c.h.b16 %v923
        %v965 = vunpack.c.l.b16 %v924
        %v966 = vunpack.c.h.b16 %v924
        %v967 = vunpack.c.l.b16 %v925
        %v968 = vunpack.c.h.b16 %v925
        %v969 = vunpack.c.l.b16 %v926
        %v970 = vunpack.c.h.b16 %v926
        %v971 = vunpack.c.l.b16 %v927
        %v972 = vunpack.c.h.b16 %v927
        %v973 = vunpack.c.l.b16 %v928
        %v974 = vunpack.c.h.b16 %v928
        %v975 = vunpack.c.l.b16 %v929
        %v976 = vunpack.c.h.b16 %v929
        %v977 = vunpack.c.l.b16 %v930
        %v978 = vunpack.c.h.b16 %v930
        %v979 = vpack.c.b16 %v947, %v947
        %v980 = vpack.c.b16 %v948, %v948
        %v981 = vpack.c.b16 %v949, %v949
        %v982 = vpack.c.b16 %v950, %v950
        %v983 = vpack.c.b16 %v951, %v951
        %v984 = vpack.c.b16 %v952, %v952
        %v985 = vpack.c.b16 %v953, %v953
        %v986 = vpack.c.b16 %v954, %v954
        %v987 = vpack.c.b16 %v955, %v955
        %v988 = vpack.c.b16 %v956, %v956
        %v989 = vpack.c.b16 %v957, %v957
        %v990 = vpack.c.b16 %v958, %v958
        %v991 = vpack.c.b16 %v959, %v959
        %v992 = vpack.c.b16 %v960, %v960
        %v993 = vpack.c.b16 %v961, %v961
        %v994 = vpack.c.b16 %v962, %v962
        %v995 = vpack.c.b16 %v963, %v963
        %v996 = vpack.c.b16 %v964, %v964
        %v997 = vpack.c.b16 %v965, %v965
        %v998 = vpack.c.b16 %v966, %v966
        %v999 = vpack.c.b16 %v967, %v967
        %v1000 = vpack.c.b16 %v968, %v968
        %v1001 = vpack.c.b16 %v969, %v969
        %v1002 = vpack.c.b16 %v970, %v970
        %v1003 = vpack.c.b16 %v971, %v971
        %v1004 = vpack.c.b16 %v972, %v972
        %v1005 = vpack.c.b16 %v973, %v973
        %v1006 = vpack.c.b16 %v974, %v974
        %v1007 = vpack.c.b16 %v975, %v975
        %v1008 = vpack.c.b16 %v976, %v976
        %v1009 = vpack.c.b16 %v977, %v977
        %v1010 = vpack.c.b16 %v978, %v978
        %1043 = vst [vmem:[%s257] sm:$0xf] %v979
        %1044 = vst [vmem:[%s257 + $0x4] sm:$0xf] %v980
        %1045 = vst [vmem:[%s257 + $0x8] sm:$0xf] %v981
        %1046 = vst [vmem:[%s257 + $0xc] sm:$0xf] %v982
        %1047 = vst [vmem:[%s257 + $0x10] sm:$0xf] %v983
        %1048 = vst [vmem:[%s257 + $0x14] sm:$0xf] %v984
        %1049 = vst [vmem:[%s257 + $0x18] sm:$0xf] %v985
        %1050 = vst [vmem:[%s257 + $0x1c] sm:$0xf] %v986
        %1051 = vst [vmem:[%s257 + $0x20] sm:$0xf] %v987
        %1052 = vst [vmem:[%s257 + $0x24] sm:$0xf] %v988
        %1053 = vst [vmem:[%s257 + $0x28] sm:$0xf] %v989
        %1054 = vst [vmem:[%s257 + $0x2c] sm:$0xf] %v990
        %1055 = vst [vmem:[%s257 + $0x30] sm:$0xf] %v991
        %1056 = vst [vmem:[%s257 + $0x34] sm:$0xf] %v992
        %1057 = vst [vmem:[%s257 + $0x38] sm:$0xf] %v993
        %1058 = vst [vmem:[%s257 + $0x3c] sm:$0xf] %v994
        %1059 = vst [vmem:[%s257 + $0x40] sm:$0xf] %v995
        %1060 = vst [vmem:[%s257 + $0x44] sm:$0xf] %v996
        %1061 = vst [vmem:[%s257 + $0x48] sm:$0xf] %v997
        %1062 = vst [vmem:[%s257 + $0x4c] sm:$0xf] %v998
        %1063 = vst [vmem:[%s257 + $0x50] sm:$0xf] %v999
        %1064 = vst [vmem:[%s257 + $0x54] sm:$0xf] %v1000
        %1065 = vst [vmem:[%s257 + $0x58] sm:$0xf] %v1001
        %1066 = vst [vmem:[%s257 + $0x5c] sm:$0xf] %v1002
        %1067 = vst [vmem:[%s257 + $0x60] sm:$0xf] %v1003
        %1068 = vst [vmem:[%s257 + $0x64] sm:$0xf] %v1004
        %1069 = vst [vmem:[%s257 + $0x68] sm:$0xf] %v1005
        %1070 = vst [vmem:[%s257 + $0x6c] sm:$0xf] %v1006
        %1071 = vst [vmem:[%s257 + $0x70] sm:$0xf] %v1007
        %1072 = vst [vmem:[%s257 + $0x74] sm:$0xf] %v1008
        %1073 = vst [vmem:[%s257 + $0x78] sm:$0xf] %v1009
        %1074 = vst [vmem:[%s257 + $0x7c] sm:$0xf] %v1010
      $region40: #{_lambda_.8} parent=31 // pred_fallthru
        _
      %s1075 = smul.u32 32, %s19
      %p1076 = scmp.lt.s32.totalorder %s1075, 63
      %s1077 = scalar_select %p1076, %s1075, 63
      %p1078 = scmp.lt.s32.totalorder %s20, 0
      %s1079 = scalar_select %p1078, %s20, 0
      %s1080 = sadd.s32 %s1079, %s1077
      %s1081 = smul.addr %s1080, 4
      %s1082 = scalar_lea.vmem %s3, %s1081
      // Predicated region
      $region41: #{_lambda_.8} parent=31 // pred_check
        %p1083 = pneg %p135
      $region42: #{_lambda_.8} parent=31 // pred_check_branch
        %1085 = sbr.rel (%p1083) target = $region44
      $region43: #{_lambda_.8} parent=31 // pred_region
        %s1086 = smul.u32 32, %s19
      $region44: #{_lambda_.8} parent=31 // pred_fallthru
        _
    $region32: #{_lambda_.8} parent=5 // pred_fallthru
      _
    %p1087 = scmp.le.s32.totalorder 2, %s9
    // Predicated region
    $region45: #{_lambda_.8} parent=5 // pred_check
      %p1088 = pneg %p1087
    $region46: #{_lambda_.8} parent=5 // pred_check_branch
      %1090 = sbr.rel (%p1088) target = $region48
    $region47: #{_lambda_.8} parent=5 // pred_region
      %s1091 = ssub.s32 %s9, 2
      // Predicated region
      $region49: #{_lambda_.8} parent=47 // pred_check
        %p1092 = pneg %p141
      $region50: #{_lambda_.8} parent=47 // pred_check_branch
        %1094 = sbr.rel (%p1092) target = $region52
      $region51: #{_lambda_.8} parent=47 // pred_region
        %s1095 = smul.u32 32, %s22
        %p1096 = scmp.lt.s32.totalorder %s1095, 63
        %s1097 = scalar_select %p1096, %s1095, 63
        %p1098 = scmp.lt.s32.totalorder %s23, 0
        %s1099 = scalar_select %p1098, %s23, 0
        %s1100 = sadd.s32 %s1099, %s1097
        %s1101 = smul.addr %s1100, 4
        %s1102 = scalar_lea.vmem %s3, %s1101
      $region52: #{_lambda_.8} parent=47 // pred_fallthru
        _
    $region48: #{_lambda_.8} parent=5 // pred_fallthru
      _
  $region6: #{_lambda_.8} parent=0 // loop_footer
    %s13 = sadd.s32 1, %s9
  $region7: #{_lambda_.8} parent=0 // loop_footer_branch
    %8 = sbr.rel target = $region3
  $region8: #{_lambda_.8} parent=0 // loop_exit
    _

// kernel: _lambda_.9
$region0: #{_lambda_.9}
  #allocation0 [shape = 'u32[]', space=smem, size = 0x4, offset = 0x4, fixed_abs, tag = 'smem constant byte address 0x4 - core index']
  #allocation1 [shape = 'u32[144,128]{1,0:T(1,128)}', space=vmem, size = 0x12000, scoped, tag = 'internal scratch']
  #allocation2 [shape = 'f32[128,128]{1,0:T(8,128)}', space=vmem, size = 0x10000, scoped, tag = 'scratch operand']
  %s0 = inlined_call_operand.vmem [shape: bf16[128,256], index: 0, kind: input, shape index: {}]
  %s1 = inlined_call_operand.vmem [shape: bf16[256,128], index: 1, kind: input, shape index: {}]
  %s2 = inlined_call_operand.vmem [shape: f32[128,128], index: 2, kind: output, shape index: {0}]
  %s3 = inlined_call_operand.vmem [shape: f32[1,8,128], index: 3, kind: output, shape index: {1}]
  %4 = xla_tuple %s2, %s3
  %s5 = sld [smem:[#allocation0]]
  $region34: #{_lambda_.9} parent=0
    _
  %s7 = ssub.s32 1, %s5
  %s8 = scalar_select 0, %s7, %s5
  // Predicated region
  $region2: #{_lambda_.9} parent=0 // pred_check
    _
  $region3: #{_lambda_.9} parent=0 // pred_check_branch
    %10 = sbr.rel (0) target = $region5
  $region4: #{_lambda_.9} parent=0 // pred_region
    _
  $region5: #{_lambda_.9} parent=0 // pred_fallthru
    _
  // Predicated region
  $region6: #{_lambda_.9} parent=0 // pred_check
    _
  $region7: #{_lambda_.9} parent=0 // pred_check_branch
    %12 = sbr.rel (0) target = $region9
  $region8: #{_lambda_.9} parent=0 // pred_region
    _
  $region9: #{_lambda_.9} parent=0 // pred_fallthru
    _
  %p14 = scmp.eq.s32.totalorder 0, 0
  // Predicated region
  $region10: #{_lambda_.9} parent=0 // pred_check
    %p15 = pneg %p14
  $region11: #{_lambda_.9} parent=0 // pred_check_branch
    %17 = sbr.rel (%p15) target = $region13
  $region12: #{_lambda_.9} parent=0 // pred_region
    %18 = vst [vmem:[#allocation2] sm:$0xff] 0.0
    %19 = vst [vmem:[#allocation2 + $0x8] sm:$0xff] 0.0
    %20 = vst [vmem:[#allocation2 + $0x10] sm:$0xff] 0.0
    %21 = vst [vmem:[#allocation2 + $0x18] sm:$0xff] 0.0
    %22 = vst [vmem:[#allocation2 + $0x20] sm:$0xff] 0.0
    %23 = vst [vmem:[#allocation2 + $0x28] sm:$0xff] 0.0
    %24 = vst [vmem:[#allocation2 + $0x30] sm:$0xff] 0.0
    %25 = vst [vmem:[#allocation2 + $0x38] sm:$0xff] 0.0
    %26 = vst [vmem:[#allocation2 + $0x40] sm:$0xff] 0.0
    %27 = vst [vmem:[#allocation2 + $0x48] sm:$0xff] 0.0
    %28 = vst [vmem:[#allocation2 + $0x50] sm:$0xff] 0.0
    %29 = vst [vmem:[#allocation2 + $0x58] sm:$0xff] 0.0
    %30 = vst [vmem:[#allocation2 + $0x60] sm:$0xff] 0.0
    %31 = vst [vmem:[#allocation2 + $0x68] sm:$0xff] 0.0
    %32 = vst [vmem:[#allocation2 + $0x70] sm:$0xff] 0.0
    %33 = vst [vmem:[#allocation2 + $0x78] sm:$0xff] 0.0
  $region13: #{_lambda_.9} parent=0 // pred_fallthru
    _
  %v34 = vld [vmem:[#allocation2] sm:$0xff]
  %v35 = vld [vmem:[#allocation2 + $0x8] sm:$0xff]
  %v36 = vld [vmem:[#allocation2 + $0x10] sm:$0xff]
  %v37 = vld [vmem:[#allocation2 + $0x18] sm:$0xff]
  %v38 = vld [vmem:[#allocation2 + $0x20] sm:$0xff]
  %v39 = vld [vmem:[#allocation2 + $0x28] sm:$0xff]
  %v40 = vld [vmem:[#allocation2 + $0x30] sm:$0xff]
  %v41 = vld [vmem:[#allocation2 + $0x38] sm:$0xff]
  %v42 = vld [vmem:[#allocation2 + $0x40] sm:$0xff]
  %v43 = vld [vmem:[#allocation2 + $0x48] sm:$0xff]
  %v44 = vld [vmem:[#allocation2 + $0x50] sm:$0xff]
  %v45 = vld [vmem:[#allocation2 + $0x58] sm:$0xff]
  %v46 = vld [vmem:[#allocation2 + $0x60] sm:$0xff]
  %v47 = vld [vmem:[#allocation2 + $0x68] sm:$0xff]
  %v48 = vld [vmem:[#allocation2 + $0x70] sm:$0xff]
  %v49 = vld [vmem:[#allocation2 + $0x78] sm:$0xff]
  %v50 = vld [vmem:[%s0] sm:$0xff]
  %v51 = vld [vmem:[%s0 + $0x8] sm:$0xff]
  %v52 = vld [vmem:[%s0 + $0x10] sm:$0xff]
  %v53 = vld [vmem:[%s0 + $0x18] sm:$0xff]
  %v54 = vld [vmem:[%s0 + $0x20] sm:$0xff]
  %v55 = vld [vmem:[%s0 + $0x28] sm:$0xff]
  %v56 = vld [vmem:[%s0 + $0x30] sm:$0xff]
  %v57 = vld [vmem:[%s0 + $0x38] sm:$0xff]
  %v58 = vld [vmem:[%s0 + $0x40] sm:$0xff]
  %v59 = vld [vmem:[%s0 + $0x48] sm:$0xff]
  %v60 = vld [vmem:[%s0 + $0x50] sm:$0xff]
  %v61 = vld [vmem:[%s0 + $0x58] sm:$0xff]
  %v62 = vld [vmem:[%s0 + $0x60] sm:$0xff]
  %v63 = vld [vmem:[%s0 + $0x68] sm:$0xff]
  %v64 = vld [vmem:[%s0 + $0x70] sm:$0xff]
  %v65 = vld [vmem:[%s0 + $0x78] sm:$0xff]
  %v66 = vld [vmem:[%s1] sm:$0xf]
  %v67 = vld [vmem:[%s1 + $0x4] sm:$0xf]
  %v68 = vld [vmem:[%s1 + $0x8] sm:$0xf]
  %v69 = vld [vmem:[%s1 + $0xc] sm:$0xf]
  %v70 = vld [vmem:[%s1 + $0x10] sm:$0xf]
  %v71 = vld [vmem:[%s1 + $0x14] sm:$0xf]
  %v72 = vld [vmem:[%s1 + $0x18] sm:$0xf]
  %v73 = vld [vmem:[%s1 + $0x1c] sm:$0xf]
  %v74 = vld [vmem:[%s1 + $0x20] sm:$0xf]
  %v75 = vld [vmem:[%s1 + $0x24] sm:$0xf]
  %v76 = vld [vmem:[%s1 + $0x28] sm:$0xf]
  %v77 = vld [vmem:[%s1 + $0x2c] sm:$0xf]
  %v78 = vld [vmem:[%s1 + $0x30] sm:$0xf]
  %v79 = vld [vmem:[%s1 + $0x34] sm:$0xf]
  %v80 = vld [vmem:[%s1 + $0x38] sm:$0xf]
  %v81 = vld [vmem:[%s1 + $0x3c] sm:$0xf]
  %v82 = vld [vmem:[%s1 + $0x40] sm:$0xf]
  %v83 = vld [vmem:[%s1 + $0x44] sm:$0xf]
  %v84 = vld [vmem:[%s1 + $0x48] sm:$0xf]
  %v85 = vld [vmem:[%s1 + $0x4c] sm:$0xf]
  %v86 = vld [vmem:[%s1 + $0x50] sm:$0xf]
  %v87 = vld [vmem:[%s1 + $0x54] sm:$0xf]
  %v88 = vld [vmem:[%s1 + $0x58] sm:$0xf]
  %v89 = vld [vmem:[%s1 + $0x5c] sm:$0xf]
  %v90 = vld [vmem:[%s1 + $0x60] sm:$0xf]
  %v91 = vld [vmem:[%s1 + $0x64] sm:$0xf]
  %v92 = vld [vmem:[%s1 + $0x68] sm:$0xf]
  %v93 = vld [vmem:[%s1 + $0x6c] sm:$0xf]
  %v94 = vld [vmem:[%s1 + $0x70] sm:$0xf]
  %v95 = vld [vmem:[%s1 + $0x74] sm:$0xf]
  %v96 = vld [vmem:[%s1 + $0x78] sm:$0xf]
  %v97 = vld [vmem:[%s1 + $0x7c] sm:$0xf]
  %v114 = vunpack.c.l.b16 %v50
  %v115 = vunpack.c.h.b16 %v50
  %v116 = vunpack.c.l.b16 %v51
  %v117 = vunpack.c.h.b16 %v51
  %v118 = vunpack.c.l.b16 %v52
  %v119 = vunpack.c.h.b16 %v52
  %v120 = vunpack.c.l.b16 %v53
  %v121 = vunpack.c.h.b16 %v53
  %v122 = vunpack.c.l.b16 %v54
  %v123 = vunpack.c.h.b16 %v54
  %v124 = vunpack.c.l.b16 %v55
  %v125 = vunpack.c.h.b16 %v55
  %v126 = vunpack.c.l.b16 %v56
  %v127 = vunpack.c.h.b16 %v56
  %v128 = vunpack.c.l.b16 %v57
  %v129 = vunpack.c.h.b16 %v57
  %v130 = vunpack.c.l.b16 %v58
  %v131 = vunpack.c.h.b16 %v58
  %v132 = vunpack.c.l.b16 %v59
  %v133 = vunpack.c.h.b16 %v59
  %v134 = vunpack.c.l.b16 %v60
  %v135 = vunpack.c.h.b16 %v60
  %v136 = vunpack.c.l.b16 %v61
  %v137 = vunpack.c.h.b16 %v61
  %v138 = vunpack.c.l.b16 %v62
  %v139 = vunpack.c.h.b16 %v62
  %v140 = vunpack.c.l.b16 %v63
  %v141 = vunpack.c.h.b16 %v63
  %v142 = vunpack.c.l.b16 %v64
  %v143 = vunpack.c.h.b16 %v64
  %v144 = vunpack.c.l.b16 %v65
  %v145 = vunpack.c.h.b16 %v65
  %v146 = vpack.c.b16 %v116, %v114
  %v147 = vpack.c.b16 %v117, %v115
  %v148 = vpack.c.b16 %v120, %v118
  %v149 = vpack.c.b16 %v121, %v119
  %v150 = vpack.c.b16 %v124, %v122
  %v151 = vpack.c.b16 %v125, %v123
  %v152 = vpack.c.b16 %v128, %v126
  %v153 = vpack.c.b16 %v129, %v127
  %v154 = vpack.c.b16 %v132, %v130
  %v155 = vpack.c.b16 %v133, %v131
  %v156 = vpack.c.b16 %v136, %v134
  %v157 = vpack.c.b16 %v137, %v135
  %v158 = vpack.c.b16 %v140, %v138
  %v159 = vpack.c.b16 %v141, %v139
  %v160 = vpack.c.b16 %v144, %v142
  %v161 = vpack.c.b16 %v145, %v143
  %v210 = vunpack.c.l.b16 %v66
  %v211 = vunpack.c.l.b16 %v67
  %v212 = vunpack.c.l.b16 %v68
  %v213 = vunpack.c.l.b16 %v69
  %v214 = vunpack.c.l.b16 %v70
  %v215 = vunpack.c.l.b16 %v71
  %v216 = vunpack.c.l.b16 %v72
  %v217 = vunpack.c.l.b16 %v73
  %v218 = vunpack.c.l.b16 %v74
  %v219 = vunpack.c.l.b16 %v75
  %v220 = vunpack.c.l.b16 %v76
  %v221 = vunpack.c.l.b16 %v77
  %v222 = vunpack.c.l.b16 %v78
  %v223 = vunpack.c.l.b16 %v79
  %v224 = vunpack.c.l.b16 %v80
  %v225 = vunpack.c.l.b16 %v81
  %v226 = vunpack.c.l.b16 %v82
  %v227 = vunpack.c.l.b16 %v83
  %v228 = vunpack.c.l.b16 %v84
  %v229 = vunpack.c.l.b16 %v85
  %v230 = vunpack.c.l.b16 %v86
  %v231 = vunpack.c.l.b16 %v87
  %v232 = vunpack.c.l.b16 %v88
  %v233 = vunpack.c.l.b16 %v89
  %v234 = vunpack.c.l.b16 %v90
  %v235 = vunpack.c.l.b16 %v91
  %v236 = vunpack.c.l.b16 %v92
  %v237 = vunpack.c.l.b16 %v93
  %v238 = vunpack.c.l.b16 %v94
  %v239 = vunpack.c.l.b16 %v95
  %v240 = vunpack.c.l.b16 %v96
  %v241 = vunpack.c.l.b16 %v97
  %v242 = vpack.c.b16 %v211, %v210
  %v243 = vpack.c.b16 %v213, %v212
  %v244 = vpack.c.b16 %v215, %v214
  %v245 = vpack.c.b16 %v217, %v216
  %v246 = vpack.c.b16 %v219, %v218
  %v247 = vpack.c.b16 %v221, %v220
  %v248 = vpack.c.b16 %v223, %v222
  %v249 = vpack.c.b16 %v225, %v224
  %v250 = vpack.c.b16 %v227, %v226
  %v251 = vpack.c.b16 %v229, %v228
  %v252 = vpack.c.b16 %v231, %v230
  %v253 = vpack.c.b16 %v233, %v232
  %v254 = vpack.c.b16 %v235, %v234
  %v255 = vpack.c.b16 %v237, %v236
  %v256 = vpack.c.b16 %v239, %v238
  %v257 = vpack.c.b16 %v241, %v240
  %274 = vmatprep.subr.bf16.mxu0 0
  %275 = vmatpush1.bf16.msra.mxu0 %v242
  %276 = vmatprep.subr.bf16.mxu0 0
  %277 = vmatpush1.bf16.msra.mxu0 %v243
  %278 = vmatprep.subr.bf16.mxu0 0
  %279 = vmatpush1.bf16.msra.mxu0 %v244
  %280 = vmatprep.subr.bf16.mxu0 0
  %281 = vmatpush1.bf16.msra.mxu0 %v245
  %282 = vmatprep.subr.bf16.mxu0 0
  %283 = vmatpush1.bf16.msra.mxu0 %v246
  %284 = vmatprep.subr.bf16.mxu0 0
  %285 = vmatpush1.bf16.msra.mxu0 %v247
  %286 = vmatprep.subr.bf16.mxu0 0
  %287 = vmatpush1.bf16.msra.mxu0 %v248
  %288 = vmatprep.subr.bf16.mxu0 0
  %289 = vmatpush1.bf16.msra.mxu0 %v249
  %290 = vmatprep.subr.bf16.mxu0 0
  %291 = vmatpush1.bf16.msra.mxu0 %v250
  %292 = vmatprep.subr.bf16.mxu0 0
  %293 = vmatpush1.bf16.msra.mxu0 %v251
  %294 = vmatprep.subr.bf16.mxu0 0
  %295 = vmatpush1.bf16.msra.mxu0 %v252
  %296 = vmatprep.subr.bf16.mxu0 0
  %297 = vmatpush1.bf16.msra.mxu0 %v253
  %298 = vmatprep.subr.bf16.mxu0 0
  %299 = vmatpush1.bf16.msra.mxu0 %v254
  %300 = vmatprep.subr.bf16.mxu0 0
  %301 = vmatpush1.bf16.msra.mxu0 %v255
  %302 = vmatprep.subr.bf16.mxu0 0
  %303 = vmatpush1.bf16.msra.mxu0 %v256
  %304 = vmatprep.subr.bf16.mxu0 0
  %305 = vmatpush1.bf16.msra.mxu0 %v257
  %306 = vmatprep.mubr.bf16.mxu0 %v147
  %307 = vmatmul.mubr.bf16.gmra.mrb[0].mxu0 %v146
  %v308 = vpop.f32.mrb[0].mxu0
  %v309 = vadd.f32 0.0, %v308
  %v310 = vpop.f32.mrb[0].mxu0
  %v311 = vpop.f32.mrb[0].mxu0
  %v312 = vadd.f32 0.0, %v311
  %v313 = vpop.f32.mrb[0].mxu0
  %314 = vmatprep.mubr.bf16.mxu0 %v149
  %315 = vmatmul.mubr.bf16.gmra.mrb[0].mxu0 %v148
  %v316 = vpop.f32.mrb[0].mxu0
  %v317 = vadd.f32 0.0, %v316
  %v318 = vpop.f32.mrb[0].mxu0
  %v319 = vpop.f32.mrb[0].mxu0
  %v320 = vadd.f32 0.0, %v319
  %v321 = vpop.f32.mrb[0].mxu0
  %322 = vmatprep.mubr.bf16.mxu0 %v151
  %323 = vmatmul.mubr.bf16.gmra.mrb[0].mxu0 %v150
  %v324 = vpop.f32.mrb[0].mxu0
  %v325 = vadd.f32 0.0, %v324
  %v326 = vpop.f32.mrb[0].mxu0
  %v327 = vpop.f32.mrb[0].mxu0
  %v328 = vadd.f32 0.0, %v327
  %v329 = vpop.f32.mrb[0].mxu0
  %330 = vmatprep.mubr.bf16.mxu0 %v153
  %331 = vmatmul.mubr.bf16.gmra.mrb[0].mxu0 %v152
  %v332 = vpop.f32.mrb[0].mxu0
  %v333 = vadd.f32 0.0, %v332
  %v334 = vpop.f32.mrb[0].mxu0
  %v335 = vpop.f32.mrb[0].mxu0
  %v336 = vadd.f32 0.0, %v335
  %v337 = vpop.f32.mrb[0].mxu0
  %338 = vmatprep.mubr.bf16.mxu0 %v155
  %339 = vmatmul.mubr.bf16.gmra.mrb[0].mxu0 %v154
  %v340 = vpop.f32.mrb[0].mxu0
  %v341 = vadd.f32 0.0, %v340
  %v342 = vpop.f32.mrb[0].mxu0
  %v343 = vpop.f32.mrb[0].mxu0
  %v344 = vadd.f32 0.0, %v343
  %v345 = vpop.f32.mrb[0].mxu0
  %346 = vmatprep.mubr.bf16.mxu0 %v157
  %347 = vmatmul.mubr.bf16.gmra.mrb[0].mxu0 %v156
  %v348 = vpop.f32.mrb[0].mxu0
  %v349 = vadd.f32 0.0, %v348
  %v350 = vpop.f32.mrb[0].mxu0
  %v351 = vpop.f32.mrb[0].mxu0
  %v352 = vadd.f32 0.0, %v351
  %v353 = vpop.f32.mrb[0].mxu0
  %354 = vmatprep.mubr.bf16.mxu0 %v159
  %355 = vmatmul.mubr.bf16.gmra.mrb[0].mxu0 %v158
  %v356 = vpop.f32.mrb[0].mxu0
  %v357 = vadd.f32 0.0, %v356
  %v358 = vpop.f32.mrb[0].mxu0
  %v359 = vpop.f32.mrb[0].mxu0
  %v360 = vadd.f32 0.0, %v359
  %v361 = vpop.f32.mrb[0].mxu0
  %362 = vmatprep.mubr.bf16.mxu0 %v161
  %363 = vmatmul.mubr.bf16.gmra.mrb[0].mxu0 %v160
  %v364 = vpop.f32.mrb[0].mxu0
  %v365 = vadd.f32 0.0, %v364
  %v366 = vpop.f32.mrb[0].mxu0
  %v367 = vpop.f32.mrb[0].mxu0
  %v368 = vadd.f32 0.0, %v367
  %v369 = vpop.f32.mrb[0].mxu0
  %370 = vdwg.mxu0
  %v371 = vadd.f32 %v34, %v309
  %v372 = vadd.f32 %v35, %v312
  %v373 = vadd.f32 %v36, %v317
  %v374 = vadd.f32 %v37, %v320
  %v375 = vadd.f32 %v38, %v325
  %v376 = vadd.f32 %v39, %v328
  %v377 = vadd.f32 %v40, %v333
  %v378 = vadd.f32 %v41, %v336
  %v379 = vadd.f32 %v42, %v341
  %v380 = vadd.f32 %v43, %v344
  %v381 = vadd.f32 %v44, %v349
  %v382 = vadd.f32 %v45, %v352
  %v383 = vadd.f32 %v46, %v357
  %v384 = vadd.f32 %v47, %v360
  %v385 = vadd.f32 %v48, %v365
  %v386 = vadd.f32 %v49, %v368
  %387 = vst [vmem:[#allocation2] sm:$0xff] %v371
  %388 = vst [vmem:[#allocation2 + $0x8] sm:$0xff] %v372
  %389 = vst [vmem:[#allocation2 + $0x10] sm:$0xff] %v373
  %390 = vst [vmem:[#allocation2 + $0x18] sm:$0xff] %v374
  %391 = vst [vmem:[#allocation2 + $0x20] sm:$0xff] %v375
  %392 = vst [vmem:[#allocation2 + $0x28] sm:$0xff] %v376
  %393 = vst [vmem:[#allocation2 + $0x30] sm:$0xff] %v377
  %394 = vst [vmem:[#allocation2 + $0x38] sm:$0xff] %v378
  %395 = vst [vmem:[#allocation2 + $0x40] sm:$0xff] %v379
  %396 = vst [vmem:[#allocation2 + $0x48] sm:$0xff] %v380
  %397 = vst [vmem:[#allocation2 + $0x50] sm:$0xff] %v381
  %398 = vst [vmem:[#allocation2 + $0x58] sm:$0xff] %v382
  %399 = vst [vmem:[#allocation2 + $0x60] sm:$0xff] %v383
  %400 = vst [vmem:[#allocation2 + $0x68] sm:$0xff] %v384
  %401 = vst [vmem:[#allocation2 + $0x70] sm:$0xff] %v385
  %402 = vst [vmem:[#allocation2 + $0x78] sm:$0xff] %v386
  // Predicated region
  $region14: #{_lambda_.9} parent=0 // pred_check
    %p403 = pneg %p14
  $region15: #{_lambda_.9} parent=0 // pred_check_branch
    %405 = sbr.rel (%p403) target = $region17
  $region16: #{_lambda_.9} parent=0 // pred_region
    %v406 = vld [vmem:[#allocation2] sm:$0xff]
    %v407 = vld [vmem:[#allocation2 + $0x8] sm:$0xff]
    %v408 = vld [vmem:[#allocation2 + $0x10] sm:$0xff]
    %v409 = vld [vmem:[#allocation2 + $0x18] sm:$0xff]
    %v410 = vld [vmem:[#allocation2 + $0x20] sm:$0xff]
    %v411 = vld [vmem:[#allocation2 + $0x28] sm:$0xff]
    %v412 = vld [vmem:[#allocation2 + $0x30] sm:$0xff]
    %v413 = vld [vmem:[#allocation2 + $0x38] sm:$0xff]
    %v414 = vld [vmem:[#allocation2 + $0x40] sm:$0xff]
    %v415 = vld [vmem:[#allocation2 + $0x48] sm:$0xff]
    %v416 = vld [vmem:[#allocation2 + $0x50] sm:$0xff]
    %v417 = vld [vmem:[#allocation2 + $0x58] sm:$0xff]
    %v418 = vld [vmem:[#allocation2 + $0x60] sm:$0xff]
    %v419 = vld [vmem:[#allocation2 + $0x68] sm:$0xff]
    %v420 = vld [vmem:[#allocation2 + $0x70] sm:$0xff]
    %v421 = vld [vmem:[#allocation2 + $0x78] sm:$0xff]
    %422 = vst [vmem:[%s2] sm:$0xff] %v406
    %423 = vst [vmem:[%s2 + $0x8] sm:$0xff] %v407
    %424 = vst [vmem:[%s2 + $0x10] sm:$0xff] %v408
    %425 = vst [vmem:[%s2 + $0x18] sm:$0xff] %v409
    %426 = vst [vmem:[%s2 + $0x20] sm:$0xff] %v410
    %427 = vst [vmem:[%s2 + $0x28] sm:$0xff] %v411
    %428 = vst [vmem:[%s2 + $0x30] sm:$0xff] %v412
    %429 = vst [vmem:[%s2 + $0x38] sm:$0xff] %v413
    %430 = vst [vmem:[%s2 + $0x40] sm:$0xff] %v414
    %431 = vst [vmem:[%s2 + $0x48] sm:$0xff] %v415
    %432 = vst [vmem:[%s2 + $0x50] sm:$0xff] %v416
    %433 = vst [vmem:[%s2 + $0x58] sm:$0xff] %v417
    %434 = vst [vmem:[%s2 + $0x60] sm:$0xff] %v418
    %435 = vst [vmem:[%s2 + $0x68] sm:$0xff] %v419
    %436 = vst [vmem:[%s2 + $0x70] sm:$0xff] %v420
    %437 = vst [vmem:[%s2 + $0x78] sm:$0xff] %v421
    %v438 = vadd.f32 %v406, %v407
    %v439 = vadd.f32 %v438, %v408
    %v440 = vadd.f32 %v439, %v409
    %v441 = vadd.f32 %v440, %v410
    %v442 = vadd.f32 %v441, %v411
    %v443 = vadd.f32 %v442, %v412
    %v444 = vadd.f32 %v443, %v413
    %v445 = vadd.f32 %v444, %v414
    %v446 = vadd.f32 %v445, %v415
    %v447 = vadd.f32 %v446, %v416
    %v448 = vadd.f32 %v447, %v417
    %v449 = vadd.f32 %v448, %v418
    %v450 = vadd.f32 %v449, %v419
    %v451 = vadd.f32 %v450, %v420
    %v452 = vadd.f32 %v451, %v421
    %v453 = vrot.slane %v452, 4
    %v454 = vadd.f32 %v452, %v453
    %v455 = vrot.slane %v454, 2
    %v456 = vadd.f32 %v454, %v455
    %v457 = vrot.slane %v456, 1
    %v458 = vadd.f32 %v456, %v457
    %v459 = vmul.f32 %v406, %v406
    %v460 = vmul.f32 %v407, %v407
    %v461 = vmul.f32 %v408, %v408
    %v462 = vmul.f32 %v409, %v409
    %v463 = vmul.f32 %v410, %v410
    %v464 = vmul.f32 %v411, %v411
    %v465 = vmul.f32 %v412, %v412
    %v466 = vmul.f32 %v413, %v413
    %v467 = vmul.f32 %v414, %v414
    %v468 = vmul.f32 %v415, %v415
    %v469 = vmul.f32 %v416, %v416
    %v470 = vmul.f32 %v417, %v417
    %v471 = vmul.f32 %v418, %v418
    %v472 = vmul.f32 %v419, %v419
    %v473 = vmul.f32 %v420, %v420
    %v474 = vmul.f32 %v421, %v421
    %v475 = vadd.f32 %v459, %v460
    %v476 = vadd.f32 %v475, %v461
    %v477 = vadd.f32 %v476, %v462
    %v478 = vadd.f32 %v477, %v463
    %v479 = vadd.f32 %v478, %v464
    %v480 = vadd.f32 %v479, %v465
    %v481 = vadd.f32 %v480, %v466
    %v482 = vadd.f32 %v481, %v467
    %v483 = vadd.f32 %v482, %v468
    %v484 = vadd.f32 %v483, %v469
    %v485 = vadd.f32 %v484, %v470
    %v486 = vadd.f32 %v485, %v471
    %v487 = vadd.f32 %v486, %v472
    %v488 = vadd.f32 %v487, %v473
    %v489 = vadd.f32 %v488, %v474
    %v490 = vrot.slane %v489, 4
    %v491 = vadd.f32 %v489, %v490
    %v492 = vrot.slane %v491, 2
    %v493 = vadd.f32 %v491, %v492
    %v494 = vrot.slane %v493, 1
    %v495 = vadd.f32 %v493, %v494
    %v496 = vlaneseq
    %v497 = vshrl.u32 %v496, 7
    %vm498 = vcmp.eq.s32.totalorder %v497, 0
    %vm499 = vcmp.eq.s32.totalorder %v497, 1
    %v500 = vsel %vm499, %v495, 0.0
    %v501 = vsel %vm498, %v458, %v500
    %502 = vst [vmem:[%s3] sm:$0xff] %v501
  $region17: #{_lambda_.9} parent=0 // pred_fallthru
    _
  // Predicated region
  $region18: #{_lambda_.9} parent=0 // pred_check
    _
  $region19: #{_lambda_.9} parent=0 // pred_check_branch
    %504 = sbr.rel (0) target = $region21
  $region20: #{_lambda_.9} parent=0 // pred_region
    _
  $region21: #{_lambda_.9} parent=0 // pred_fallthru
    _
  // Predicated region
  $region22: #{_lambda_.9} parent=0 // pred_check
    _
  $region23: #{_lambda_.9} parent=0 // pred_check_branch
    %506 = sbr.rel (0) target = $region25
  $region24: #{_lambda_.9} parent=0 // pred_region
    _
  $region25: #{_lambda_.9} parent=0 // pred_fallthru
    _
  // Predicated region
  $region26: #{_lambda_.9} parent=0 // pred_check
    _
  $region27: #{_lambda_.9} parent=0 // pred_check_branch
    %508 = sbr.rel (0) target = $region29
  $region28: #{_lambda_.9} parent=0 // pred_region
    _
  $region29: #{_lambda_.9} parent=0 // pred_fallthru
    _
  // Predicated region
  $region30: #{_lambda_.9} parent=0 // pred_check
    _
  $region31: #{_lambda_.9} parent=0 // pred_check_branch
    %510 = sbr.rel (0) target = $region33
  $region32: #{_lambda_.9} parent=0 // pred_region
    _
  $region33: #{_lambda_.9} parent=0 // pred_fallthru
    _

// kernel: _lambda_.10
$region0: #{_lambda_.10}
  #allocation0 [shape = 'u32[]', space=smem, size = 0x4, offset = 0x4, fixed_abs, tag = 'smem constant byte address 0x4 - core index']
  #allocation1 [shape = 'u32[144,128]{1,0:T(1,128)}', space=vmem, size = 0x12000, scoped, tag = 'internal scratch']
  %s0 = inlined_call_operand.vmem [shape: f32[128,128], index: 0, kind: input, shape index: {}]
  %s1 = inlined_call_operand.vmem [shape: f32[1,128], index: 1, kind: input, shape index: {}]
  %s2 = inlined_call_operand.vmem [shape: f32[1,128], index: 2, kind: input, shape index: {}]
  %s3 = inlined_call_operand.vmem [shape: bf16[128,128], index: 3, kind: output, shape index: {}]
  %s4 = sld [smem:[#allocation0]]
  $region22: #{_lambda_.10} parent=0
    _
  %s6 = ssub.s32 1, %s4
  %s7 = scalar_select 0, %s6, %s4
  // Predicated region
  $region2: #{_lambda_.10} parent=0 // pred_check
    _
  $region3: #{_lambda_.10} parent=0 // pred_check_branch
    %9 = sbr.rel (0) target = $region5
  $region4: #{_lambda_.10} parent=0 // pred_region
    _
  $region5: #{_lambda_.10} parent=0 // pred_fallthru
    _
  // Predicated region
  $region6: #{_lambda_.10} parent=0 // pred_check
    _
  $region7: #{_lambda_.10} parent=0 // pred_check_branch
    %11 = sbr.rel (0) target = $region9
  $region8: #{_lambda_.10} parent=0 // pred_region
    _
  $region9: #{_lambda_.10} parent=0 // pred_fallthru
    _
  // Predicated region
  $region10: #{_lambda_.10} parent=0 // pred_check
    _
  $region11: #{_lambda_.10} parent=0 // pred_check_branch
    %13 = sbr.rel (0) target = $region13
  $region12: #{_lambda_.10} parent=0 // pred_region
    _
  $region13: #{_lambda_.10} parent=0 // pred_fallthru
    _
  %v14 = vld [vmem:[%s0] sm:$0xff]
  %v15 = vld [vmem:[%s0 + $0x8] sm:$0xff]
  %v16 = vld [vmem:[%s0 + $0x10] sm:$0xff]
  %v17 = vld [vmem:[%s0 + $0x18] sm:$0xff]
  %v18 = vld [vmem:[%s0 + $0x20] sm:$0xff]
  %v19 = vld [vmem:[%s0 + $0x28] sm:$0xff]
  %v20 = vld [vmem:[%s0 + $0x30] sm:$0xff]
  %v21 = vld [vmem:[%s0 + $0x38] sm:$0xff]
  %v22 = vld [vmem:[%s0 + $0x40] sm:$0xff]
  %v23 = vld [vmem:[%s0 + $0x48] sm:$0xff]
  %v24 = vld [vmem:[%s0 + $0x50] sm:$0xff]
  %v25 = vld [vmem:[%s0 + $0x58] sm:$0xff]
  %v26 = vld [vmem:[%s0 + $0x60] sm:$0xff]
  %v27 = vld [vmem:[%s0 + $0x68] sm:$0xff]
  %v28 = vld [vmem:[%s0 + $0x70] sm:$0xff]
  %v29 = vld [vmem:[%s0 + $0x78] sm:$0xff]
  %v30 = vld [vmem:[%s1] sm:$0x1]
  %v32 = vlaneseq
  %v33 = vshrl.u32 %v32, 7
  %v34 = vsub.s32 0, %v33
  %v35 = vrot.slane %v30, %v34
  %v37 = vmul.f32 %v14, %v35
  %v38 = vmul.f32 %v15, %v35
  %v39 = vmul.f32 %v16, %v35
  %v40 = vmul.f32 %v17, %v35
  %v41 = vmul.f32 %v18, %v35
  %v42 = vmul.f32 %v19, %v35
  %v43 = vmul.f32 %v20, %v35
  %v44 = vmul.f32 %v21, %v35
  %v45 = vmul.f32 %v22, %v35
  %v46 = vmul.f32 %v23, %v35
  %v47 = vmul.f32 %v24, %v35
  %v48 = vmul.f32 %v25, %v35
  %v49 = vmul.f32 %v26, %v35
  %v50 = vmul.f32 %v27, %v35
  %v51 = vmul.f32 %v28, %v35
  %v52 = vmul.f32 %v29, %v35
  %v53 = vld [vmem:[%s2] sm:$0x1]
  %v55 = vlaneseq
  %v56 = vshrl.u32 %v55, 7
  %v57 = vsub.s32 0, %v56
  %v58 = vrot.slane %v53, %v57
  %v60 = vadd.f32 %v37, %v58
  %v61 = vadd.f32 %v38, %v58
  %v62 = vadd.f32 %v39, %v58
  %v63 = vadd.f32 %v40, %v58
  %v64 = vadd.f32 %v41, %v58
  %v65 = vadd.f32 %v42, %v58
  %v66 = vadd.f32 %v43, %v58
  %v67 = vadd.f32 %v44, %v58
  %v68 = vadd.f32 %v45, %v58
  %v69 = vadd.f32 %v46, %v58
  %v70 = vadd.f32 %v47, %v58
  %v71 = vadd.f32 %v48, %v58
  %v72 = vadd.f32 %v49, %v58
  %v73 = vadd.f32 %v50, %v58
  %v74 = vadd.f32 %v51, %v58
  %v75 = vadd.f32 %v52, %v58
  %vm76 = vcmp.gt.f32.partialorder %v60, 0.0
  %vm77 = vcmp.gt.f32.partialorder %v61, 0.0
  %vm78 = vcmp.gt.f32.partialorder %v62, 0.0
  %vm79 = vcmp.gt.f32.partialorder %v63, 0.0
  %vm80 = vcmp.gt.f32.partialorder %v64, 0.0
  %vm81 = vcmp.gt.f32.partialorder %v65, 0.0
  %vm82 = vcmp.gt.f32.partialorder %v66, 0.0
  %vm83 = vcmp.gt.f32.partialorder %v67, 0.0
  %vm84 = vcmp.gt.f32.partialorder %v68, 0.0
  %vm85 = vcmp.gt.f32.partialorder %v69, 0.0
  %vm86 = vcmp.gt.f32.partialorder %v70, 0.0
  %vm87 = vcmp.gt.f32.partialorder %v71, 0.0
  %vm88 = vcmp.gt.f32.partialorder %v72, 0.0
  %vm89 = vcmp.gt.f32.partialorder %v73, 0.0
  %vm90 = vcmp.gt.f32.partialorder %v74, 0.0
  %vm91 = vcmp.gt.f32.partialorder %v75, 0.0
  %v92 = vmul.f32 %v60, 0.2
  %v93 = vmul.f32 %v61, 0.2
  %v94 = vmul.f32 %v62, 0.2
  %v95 = vmul.f32 %v63, 0.2
  %v96 = vmul.f32 %v64, 0.2
  %v97 = vmul.f32 %v65, 0.2
  %v98 = vmul.f32 %v66, 0.2
  %v99 = vmul.f32 %v67, 0.2
  %v100 = vmul.f32 %v68, 0.2
  %v101 = vmul.f32 %v69, 0.2
  %v102 = vmul.f32 %v70, 0.2
  %v103 = vmul.f32 %v71, 0.2
  %v104 = vmul.f32 %v72, 0.2
  %v105 = vmul.f32 %v73, 0.2
  %v106 = vmul.f32 %v74, 0.2
  %v107 = vmul.f32 %v75, 0.2
  %v108 = vsel %vm76, %v60, %v92
  %v109 = vsel %vm77, %v61, %v93
  %v110 = vsel %vm78, %v62, %v94
  %v111 = vsel %vm79, %v63, %v95
  %v112 = vsel %vm80, %v64, %v96
  %v113 = vsel %vm81, %v65, %v97
  %v114 = vsel %vm82, %v66, %v98
  %v115 = vsel %vm83, %v67, %v99
  %v116 = vsel %vm84, %v68, %v100
  %v117 = vsel %vm85, %v69, %v101
  %v118 = vsel %vm86, %v70, %v102
  %v119 = vsel %vm87, %v71, %v103
  %v120 = vsel %vm88, %v72, %v104
  %v121 = vsel %vm89, %v73, %v105
  %v122 = vsel %vm90, %v74, %v106
  %v123 = vsel %vm91, %v75, %v107
  %v124 = vpack.c.bf16 %v109, %v108
  %v125 = vpack.c.bf16 %v111, %v110
  %v126 = vpack.c.bf16 %v113, %v112
  %v127 = vpack.c.bf16 %v115, %v114
  %v128 = vpack.c.bf16 %v117, %v116
  %v129 = vpack.c.bf16 %v119, %v118
  %v130 = vpack.c.bf16 %v121, %v120
  %v131 = vpack.c.bf16 %v123, %v122
  %v140 = vunpack.c.l.b16 %v124
  %v141 = vunpack.c.h.b16 %v124
  %v142 = vunpack.c.l.b16 %v125
  %v143 = vunpack.c.h.b16 %v125
  %v144 = vunpack.c.l.b16 %v126
  %v145 = vunpack.c.h.b16 %v126
  %v146 = vunpack.c.l.b16 %v127
  %v147 = vunpack.c.h.b16 %v127
  %v148 = vunpack.c.l.b16 %v128
  %v149 = vunpack.c.h.b16 %v128
  %v150 = vunpack.c.l.b16 %v129
  %v151 = vunpack.c.h.b16 %v129
  %v152 = vunpack.c.l.b16 %v130
  %v153 = vunpack.c.h.b16 %v130
  %v154 = vunpack.c.l.b16 %v131
  %v155 = vunpack.c.h.b16 %v131
  %v156 = vpack.c.b16 %v140, %v140
  %v157 = vpack.c.b16 %v141, %v141
  %v158 = vpack.c.b16 %v142, %v142
  %v159 = vpack.c.b16 %v143, %v143
  %v160 = vpack.c.b16 %v144, %v144
  %v161 = vpack.c.b16 %v145, %v145
  %v162 = vpack.c.b16 %v146, %v146
  %v163 = vpack.c.b16 %v147, %v147
  %v164 = vpack.c.b16 %v148, %v148
  %v165 = vpack.c.b16 %v149, %v149
  %v166 = vpack.c.b16 %v150, %v150
  %v167 = vpack.c.b16 %v151, %v151
  %v168 = vpack.c.b16 %v152, %v152
  %v169 = vpack.c.b16 %v153, %v153
  %v170 = vpack.c.b16 %v154, %v154
  %v171 = vpack.c.b16 %v155, %v155
  %188 = vst [vmem:[%s3] sm:$0xf] %v156
  %189 = vst [vmem:[%s3 + $0x4] sm:$0xf] %v157
  %190 = vst [vmem:[%s3 + $0x8] sm:$0xf] %v158
  %191 = vst [vmem:[%s3 + $0xc] sm:$0xf] %v159
  %192 = vst [vmem:[%s3 + $0x10] sm:$0xf] %v160
  %193 = vst [vmem:[%s3 + $0x14] sm:$0xf] %v161
  %194 = vst [vmem:[%s3 + $0x18] sm:$0xf] %v162
  %195 = vst [vmem:[%s3 + $0x1c] sm:$0xf] %v163
  %196 = vst [vmem:[%s3 + $0x20] sm:$0xf] %v164
  %197 = vst [vmem:[%s3 + $0x24] sm:$0xf] %v165
  %198 = vst [vmem:[%s3 + $0x28] sm:$0xf] %v166
  %199 = vst [vmem:[%s3 + $0x2c] sm:$0xf] %v167
  %200 = vst [vmem:[%s3 + $0x30] sm:$0xf] %v168
  %201 = vst [vmem:[%s3 + $0x34] sm:$0xf] %v169
  %202 = vst [vmem:[%s3 + $0x38] sm:$0xf] %v170
  %203 = vst [vmem:[%s3 + $0x3c] sm:$0xf] %v171
  // Predicated region
  $region14: #{_lambda_.10} parent=0 // pred_check
    _
  $region15: #{_lambda_.10} parent=0 // pred_check_branch
    %205 = sbr.rel (0) target = $region17
  $region16: #{_lambda_.10} parent=0 // pred_region
    _
  $region17: #{_lambda_.10} parent=0 // pred_fallthru
    _
  // Predicated region
  $region18: #{_lambda_.10} parent=0 // pred_check
    _
  $region19: #{_lambda_.10} parent=0 // pred_check_branch
    %207 = sbr.rel (0) target = $region21
  $region20: #{_lambda_.10} parent=0 // pred_region
    _
  $region21: #{_lambda_.10} parent=0 // pred_fallthru
    _

// kernel: _lambda_.11
$region0: #{_lambda_.11}
  #allocation0 [shape = 'u32[]', space=smem, size = 0x4, offset = 0x4, fixed_abs, tag = 'smem constant byte address 0x4 - core index']
  #allocation1 [shape = 'u32[144,128]{1,0:T(1,128)}', space=vmem, size = 0x12000, scoped, tag = 'internal scratch']
  #allocation2 [shape = 'f32[32,128]{1,0:T(8,128)}', space=vmem, size = 0x4000, scoped, tag = 'scratch operand']
  %s0 = inlined_call_operand.vmem [shape: bf16[32,512], index: 0, kind: input, shape index: {}]
  %s1 = inlined_call_operand.vmem [shape: bf16[512,128], index: 1, kind: input, shape index: {}]
  %s2 = inlined_call_operand.vmem [shape: f32[32,128], index: 2, kind: output, shape index: {0}]
  %s3 = inlined_call_operand.vmem [shape: f32[1,8,128], index: 3, kind: output, shape index: {1}]
  %4 = xla_tuple %s2, %s3
  %s5 = sld [smem:[#allocation0]]
  $region34: #{_lambda_.11} parent=0
    _
  %s7 = ssub.s32 1, %s5
  %s8 = scalar_select 0, %s7, %s5
  // Predicated region
  $region2: #{_lambda_.11} parent=0 // pred_check
    _
  $region3: #{_lambda_.11} parent=0 // pred_check_branch
    %10 = sbr.rel (0) target = $region5
  $region4: #{_lambda_.11} parent=0 // pred_region
    _
  $region5: #{_lambda_.11} parent=0 // pred_fallthru
    _
  // Predicated region
  $region6: #{_lambda_.11} parent=0 // pred_check
    _
  $region7: #{_lambda_.11} parent=0 // pred_check_branch
    %12 = sbr.rel (0) target = $region9
  $region8: #{_lambda_.11} parent=0 // pred_region
    _
  $region9: #{_lambda_.11} parent=0 // pred_fallthru
    _
  %p14 = scmp.eq.s32.totalorder 0, 0
  // Predicated region
  $region10: #{_lambda_.11} parent=0 // pred_check
    %p15 = pneg %p14
  $region11: #{_lambda_.11} parent=0 // pred_check_branch
    %17 = sbr.rel (%p15) target = $region13
  $region12: #{_lambda_.11} parent=0 // pred_region
    %18 = vst [vmem:[#allocation2] sm:$0xff] 0.0
    %19 = vst [vmem:[#allocation2 + $0x8] sm:$0xff] 0.0
    %20 = vst [vmem:[#allocation2 + $0x10] sm:$0xff] 0.0
    %21 = vst [vmem:[#allocation2 + $0x18] sm:$0xff] 0.0
  $region13: #{_lambda_.11} parent=0 // pred_fallthru
    _
  %v22 = vld [vmem:[#allocation2] sm:$0xff]
  %v23 = vld [vmem:[#allocation2 + $0x8] sm:$0xff]
  %v24 = vld [vmem:[#allocation2 + $0x10] sm:$0xff]
  %v25 = vld [vmem:[#allocation2 + $0x18] sm:$0xff]
  %v26 = vld [vmem:[%s0] sm:$0xff]
  %v27 = vld [vmem:[%s0 + $0x8] sm:$0xff]
  %v28 = vld [vmem:[%s0 + $0x10] sm:$0xff]
  %v29 = vld [vmem:[%s0 + $0x18] sm:$0xff]
  %v30 = vld [vmem:[%s0 + $0x20] sm:$0xff]
  %v31 = vld [vmem:[%s0 + $0x28] sm:$0xff]
  %v32 = vld [vmem:[%s0 + $0x30] sm:$0xff]
  %v33 = vld [vmem:[%s0 + $0x38] sm:$0xff]
  %v34 = vld [vmem:[%s1] sm:$0xf]
  %v35 = vld [vmem:[%s1 + $0x4] sm:$0xf]
  %v36 = vld [vmem:[%s1 + $0x8] sm:$0xf]
  %v37 = vld [vmem:[%s1 + $0xc] sm:$0xf]
  %v38 = vld [vmem:[%s1 + $0x10] sm:$0xf]
  %v39 = vld [vmem:[%s1 + $0x14] sm:$0xf]
  %v40 = vld [vmem:[%s1 + $0x18] sm:$0xf]
  %v41 = vld [vmem:[%s1 + $0x1c] sm:$0xf]
  %v42 = vld [vmem:[%s1 + $0x20] sm:$0xf]
  %v43 = vld [vmem:[%s1 + $0x24] sm:$0xf]
  %v44 = vld [vmem:[%s1 + $0x28] sm:$0xf]
  %v45 = vld [vmem:[%s1 + $0x2c] sm:$0xf]
  %v46 = vld [vmem:[%s1 + $0x30] sm:$0xf]
  %v47 = vld [vmem:[%s1 + $0x34] sm:$0xf]
  %v48 = vld [vmem:[%s1 + $0x38] sm:$0xf]
  %v49 = vld [vmem:[%s1 + $0x3c] sm:$0xf]
  %v50 = vld [vmem:[%s1 + $0x40] sm:$0xf]
  %v51 = vld [vmem:[%s1 + $0x44] sm:$0xf]
  %v52 = vld [vmem:[%s1 + $0x48] sm:$0xf]
  %v53 = vld [vmem:[%s1 + $0x4c] sm:$0xf]
  %v54 = vld [vmem:[%s1 + $0x50] sm:$0xf]
  %v55 = vld [vmem:[%s1 + $0x54] sm:$0xf]
  %v56 = vld [vmem:[%s1 + $0x58] sm:$0xf]
  %v57 = vld [vmem:[%s1 + $0x5c] sm:$0xf]
  %v58 = vld [vmem:[%s1 + $0x60] sm:$0xf]
  %v59 = vld [vmem:[%s1 + $0x64] sm:$0xf]
  %v60 = vld [vmem:[%s1 + $0x68] sm:$0xf]
  %v61 = vld [vmem:[%s1 + $0x6c] sm:$0xf]
  %v62 = vld [vmem:[%s1 + $0x70] sm:$0xf]
  %v63 = vld [vmem:[%s1 + $0x74] sm:$0xf]
  %v64 = vld [vmem:[%s1 + $0x78] sm:$0xf]
  %v65 = vld [vmem:[%s1 + $0x7c] sm:$0xf]
  %v66 = vld [vmem:[%s1 + $0x80] sm:$0xf]
  %v67 = vld [vmem:[%s1 + $0x84] sm:$0xf]
  %v68 = vld [vmem:[%s1 + $0x88] sm:$0xf]
  %v69 = vld [vmem:[%s1 + $0x8c] sm:$0xf]
  %v70 = vld [vmem:[%s1 + $0x90] sm:$0xf]
  %v71 = vld [vmem:[%s1 + $0x94] sm:$0xf]
  %v72 = vld [vmem:[%s1 + $0x98] sm:$0xf]
  %v73 = vld [vmem:[%s1 + $0x9c] sm:$0xf]
  %v74 = vld [vmem:[%s1 + $0xa0] sm:$0xf]
  %v75 = vld [vmem:[%s1 + $0xa4] sm:$0xf]
  %v76 = vld [vmem:[%s1 + $0xa8] sm:$0xf]
  %v77 = vld [vmem:[%s1 + $0xac] sm:$0xf]
  %v78 = vld [vmem:[%s1 + $0xb0] sm:$0xf]
  %v79 = vld [vmem:[%s1 + $0xb4] sm:$0xf]
  %v80 = vld [vmem:[%s1 + $0xb8] sm:$0xf]
  %v81 = vld [vmem:[%s1 + $0xbc] sm:$0xf]
  %v82 = vld [vmem:[%s1 + $0xc0] sm:$0xf]
  %v83 = vld [vmem:[%s1 + $0xc4] sm:$0xf]
  %v84 = vld [vmem:[%s1 + $0xc8] sm:$0xf]
  %v85 = vld [vmem:[%s1 + $0xcc] sm:$0xf]
  %v86 = vld [vmem:[%s1 + $0xd0] sm:$0xf]
  %v87 = vld [vmem:[%s1 + $0xd4] sm:$0xf]
  %v88 = vld [vmem:[%s1 + $0xd8] sm:$0xf]
  %v89 = vld [vmem:[%s1 + $0xdc] sm:$0xf]
  %v90 = vld [vmem:[%s1 + $0xe0] sm:$0xf]
  %v91 = vld [vmem:[%s1 + $0xe4] sm:$0xf]
  %v92 = vld [vmem:[%s1 + $0xe8] sm:$0xf]
  %v93 = vld [vmem:[%s1 + $0xec] sm:$0xf]
  %v94 = vld [vmem:[%s1 + $0xf0] sm:$0xf]
  %v95 = vld [vmem:[%s1 + $0xf4] sm:$0xf]
  %v96 = vld [vmem:[%s1 + $0xf8] sm:$0xf]
  %v97 = vld [vmem:[%s1 + $0xfc] sm:$0xf]
  %v106 = vunpack.c.l.b16 %v26
  %v107 = vunpack.c.h.b16 %v26
  %v108 = vunpack.c.l.b16 %v27
  %v109 = vunpack.c.h.b16 %v27
  %v110 = vunpack.c.l.b16 %v28
  %v111 = vunpack.c.h.b16 %v28
  %v112 = vunpack.c.l.b16 %v29
  %v113 = vunpack.c.h.b16 %v29
  %v114 = vunpack.c.l.b16 %v30
  %v115 = vunpack.c.h.b16 %v30
  %v116 = vunpack.c.l.b16 %v31
  %v117 = vunpack.c.h.b16 %v31
  %v118 = vunpack.c.l.b16 %v32
  %v119 = vunpack.c.h.b16 %v32
  %v120 = vunpack.c.l.b16 %v33
  %v121 = vunpack.c.h.b16 %v33
  %v122 = vpack.c.b16 %v110, %v106
  %v123 = vpack.c.b16 %v111, %v107
  %v124 = vpack.c.b16 %v112, %v108
  %v125 = vpack.c.b16 %v113, %v109
  %v126 = vpack.c.b16 %v118, %v114
  %v127 = vpack.c.b16 %v119, %v115
  %v128 = vpack.c.b16 %v120, %v116
  %v129 = vpack.c.b16 %v121, %v117
  %v202 = vunpack.c.l.b16 %v34
  %v203 = vunpack.c.l.b16 %v35
  %v204 = vunpack.c.l.b16 %v36
  %v205 = vunpack.c.l.b16 %v37
  %v206 = vunpack.c.l.b16 %v38
  %v207 = vunpack.c.l.b16 %v39
  %v208 = vunpack.c.l.b16 %v40
  %v209 = vunpack.c.l.b16 %v41
  %v210 = vunpack.c.l.b16 %v42
  %v211 = vunpack.c.l.b16 %v43
  %v212 = vunpack.c.l.b16 %v44
  %v213 = vunpack.c.l.b16 %v45
  %v214 = vunpack.c.l.b16 %v46
  %v215 = vunpack.c.l.b16 %v47
  %v216 = vunpack.c.l.b16 %v48
  %v217 = vunpack.c.l.b16 %v49
  %v218 = vunpack.c.l.b16 %v50
  %v219 = vunpack.c.l.b16 %v51
  %v220 = vunpack.c.l.b16 %v52
  %v221 = vunpack.c.l.b16 %v53
  %v222 = vunpack.c.l.b16 %v54
  %v223 = vunpack.c.l.b16 %v55
  %v224 = vunpack.c.l.b16 %v56
  %v225 = vunpack.c.l.b16 %v57
  %v226 = vunpack.c.l.b16 %v58
  %v227 = vunpack.c.l.b16 %v59
  %v228 = vunpack.c.l.b16 %v60
  %v229 = vunpack.c.l.b16 %v61
  %v230 = vunpack.c.l.b16 %v62
  %v231 = vunpack.c.l.b16 %v63
  %v232 = vunpack.c.l.b16 %v64
  %v233 = vunpack.c.l.b16 %v65
  %v234 = vunpack.c.l.b16 %v66
  %v235 = vunpack.c.l.b16 %v67
  %v236 = vunpack.c.l.b16 %v68
  %v237 = vunpack.c.l.b16 %v69
  %v238 = vunpack.c.l.b16 %v70
  %v239 = vunpack.c.l.b16 %v71
  %v240 = vunpack.c.l.b16 %v72
  %v241 = vunpack.c.l.b16 %v73
  %v242 = vunpack.c.l.b16 %v74
  %v243 = vunpack.c.l.b16 %v75
  %v244 = vunpack.c.l.b16 %v76
  %v245 = vunpack.c.l.b16 %v77
  %v246 = vunpack.c.l.b16 %v78
  %v247 = vunpack.c.l.b16 %v79
  %v248 = vunpack.c.l.b16 %v80
  %v249 = vunpack.c.l.b16 %v81
  %v250 = vunpack.c.l.b16 %v82
  %v251 = vunpack.c.l.b16 %v83
  %v252 = vunpack.c.l.b16 %v84
  %v253 = vunpack.c.l.b16 %v85
  %v254 = vunpack.c.l.b16 %v86
  %v255 = vunpack.c.l.b16 %v87
  %v256 = vunpack.c.l.b16 %v88
  %v257 = vunpack.c.l.b16 %v89
  %v258 = vunpack.c.l.b16 %v90
  %v259 = vunpack.c.l.b16 %v91
  %v260 = vunpack.c.l.b16 %v92
  %v261 = vunpack.c.l.b16 %v93
  %v262 = vunpack.c.l.b16 %v94
  %v263 = vunpack.c.l.b16 %v95
  %v264 = vunpack.c.l.b16 %v96
  %v265 = vunpack.c.l.b16 %v97
  %v266 = vpack.c.b16 %v203, %v202
  %v267 = vpack.c.b16 %v205, %v204
  %v268 = vpack.c.b16 %v207, %v206
  %v269 = vpack.c.b16 %v209, %v208
  %v270 = vpack.c.b16 %v211, %v210
  %v271 = vpack.c.b16 %v213, %v212
  %v272 = vpack.c.b16 %v215, %v214
  %v273 = vpack.c.b16 %v217, %v216
  %v274 = vpack.c.b16 %v219, %v218
  %v275 = vpack.c.b16 %v221, %v220
  %v276 = vpack.c.b16 %v223, %v222
  %v277 = vpack.c.b16 %v225, %v224
  %v278 = vpack.c.b16 %v227, %v226
  %v279 = vpack.c.b16 %v229, %v228
  %v280 = vpack.c.b16 %v231, %v230
  %v281 = vpack.c.b16 %v233, %v232
  %v282 = vpack.c.b16 %v235, %v234
  %v283 = vpack.c.b16 %v237, %v236
  %v284 = vpack.c.b16 %v239, %v238
  %v285 = vpack.c.b16 %v241, %v240
  %v286 = vpack.c.b16 %v243, %v242
  %v287 = vpack.c.b16 %v245, %v244
  %v288 = vpack.c.b16 %v247, %v246
  %v289 = vpack.c.b16 %v249, %v248
  %v290 = vpack.c.b16 %v251, %v250
  %v291 = vpack.c.b16 %v253, %v252
  %v292 = vpack.c.b16 %v255, %v254
  %v293 = vpack.c.b16 %v257, %v256
  %v294 = vpack.c.b16 %v259, %v258
  %v295 = vpack.c.b16 %v261, %v260
  %v296 = vpack.c.b16 %v263, %v262
  %v297 = vpack.c.b16 %v265, %v264
  %330 = vmatprep.subr.bf16.mxu0 0
  %331 = vmatpush1.bf16.msra.mxu0 %v266
  %332 = vmatprep.subr.bf16.mxu0 0
  %333 = vmatpush1.bf16.msra.mxu0 %v267
  %334 = vmatprep.subr.bf16.mxu0 0
  %335 = vmatpush1.bf16.msra.mxu0 %v268
  %336 = vmatprep.subr.bf16.mxu0 0
  %337 = vmatpush1.bf16.msra.mxu0 %v269
  %338 = vmatprep.subr.bf16.mxu0 0
  %339 = vmatpush1.bf16.msra.mxu0 %v270
  %340 = vmatprep.subr.bf16.mxu0 0
  %341 = vmatpush1.bf16.msra.mxu0 %v271
  %342 = vmatprep.subr.bf16.mxu0 0
  %343 = vmatpush1.bf16.msra.mxu0 %v272
  %344 = vmatprep.subr.bf16.mxu0 0
  %345 = vmatpush1.bf16.msra.mxu0 %v273
  %346 = vmatprep.subr.bf16.mxu0 0
  %347 = vmatpush1.bf16.msra.mxu0 %v274
  %348 = vmatprep.subr.bf16.mxu0 0
  %349 = vmatpush1.bf16.msra.mxu0 %v275
  %350 = vmatprep.subr.bf16.mxu0 0
  %351 = vmatpush1.bf16.msra.mxu0 %v276
  %352 = vmatprep.subr.bf16.mxu0 0
  %353 = vmatpush1.bf16.msra.mxu0 %v277
  %354 = vmatprep.subr.bf16.mxu0 0
  %355 = vmatpush1.bf16.msra.mxu0 %v278
  %356 = vmatprep.subr.bf16.mxu0 0
  %357 = vmatpush1.bf16.msra.mxu0 %v279
  %358 = vmatprep.subr.bf16.mxu0 0
  %359 = vmatpush1.bf16.msra.mxu0 %v280
  %360 = vmatprep.subr.bf16.mxu0 0
  %361 = vmatpush1.bf16.msra.mxu0 %v281
  %362 = vmatprep.mubr.bf16.mxu0 %v123
  %363 = vmatmul.mubr.bf16.gmra.mrb[0].mxu0 %v122
  %v364 = vpop.f32.mrb[0].mxu0
  %v365 = vadd.f32 0.0, %v364
  %v366 = vpop.f32.mrb[0].mxu0
  %v367 = vpop.f32.mrb[0].mxu0
  %v368 = vadd.f32 0.0, %v367
  %v369 = vpop.f32.mrb[0].mxu0
  %370 = vmatprep.mubr.bf16.mxu0 %v127
  %371 = vmatmul.mubr.bf16.gmra.mrb[0].mxu0 %v126
  %v372 = vpop.f32.mrb[0].mxu0
  %v373 = vadd.f32 0.0, %v372
  %v374 = vpop.f32.mrb[0].mxu0
  %v375 = vpop.f32.mrb[0].mxu0
  %v376 = vadd.f32 0.0, %v375
  %v377 = vpop.f32.mrb[0].mxu0
  %378 = vdwg.mxu0
  %379 = vmatprep.subr.bf16.mxu0 0
  %380 = vmatpush1.bf16.msra.mxu0 %v282
  %381 = vmatprep.subr.bf16.mxu0 0
  %382 = vmatpush1.bf16.msra.mxu0 %v283
  %383 = vmatprep.subr.bf16.mxu0 0
  %384 = vmatpush1.bf16.msra.mxu0 %v284
  %385 = vmatprep.subr.bf16.mxu0 0
  %386 = vmatpush1.bf16.msra.mxu0 %v285
  %387 = vmatprep.subr.bf16.mxu0 0
  %388 = vmatpush1.bf16.msra.mxu0 %v286
  %389 = vmatprep.subr.bf16.mxu0 0
  %390 = vmatpush1.bf16.msra.mxu0 %v287
  %391 = vmatprep.subr.bf16.mxu0 0
  %392 = vmatpush1.bf16.msra.mxu0 %v288
  %393 = vmatprep.subr.bf16.mxu0 0
  %394 = vmatpush1.bf16.msra.mxu0 %v289
  %395 = vmatprep.subr.bf16.mxu0 0
  %396 = vmatpush1.bf16.msra.mxu0 %v290
  %397 = vmatprep.subr.bf16.mxu0 0
  %398 = vmatpush1.bf16.msra.mxu0 %v291
  %399 = vmatprep.subr.bf16.mxu0 0
  %400 = vmatpush1.bf16.msra.mxu0 %v292
  %401 = vmatprep.subr.bf16.mxu0 0
  %402 = vmatpush1.bf16.msra.mxu0 %v293
  %403 = vmatprep.subr.bf16.mxu0 0
  %404 = vmatpush1.bf16.msra.mxu0 %v294
  %405 = vmatprep.subr.bf16.mxu0 0
  %406 = vmatpush1.bf16.msra.mxu0 %v295
  %407 = vmatprep.subr.bf16.mxu0 0
  %408 = vmatpush1.bf16.msra.mxu0 %v296
  %409 = vmatprep.subr.bf16.mxu0 0
  %410 = vmatpush1.bf16.msra.mxu0 %v297
  %411 = vmatprep.mubr.bf16.mxu0 %v125
  %412 = vmatmul.mubr.bf16.gmra.mrb[0].mxu0 %v124
  %v413 = vpop.f32.mrb[0].mxu0
  %v414 = vadd.f32 %v365, %v413
  %v415 = vpop.f32.mrb[0].mxu0
  %v416 = vpop.f32.mrb[0].mxu0
  %v417 = vadd.f32 %v368, %v416
  %v418 = vpop.f32.mrb[0].mxu0
  %419 = vmatprep.mubr.bf16.mxu0 %v129
  %420 = vmatmul.mubr.bf16.gmra.mrb[0].mxu0 %v128
  %v421 = vpop.f32.mrb[0].mxu0
  %v422 = vadd.f32 %v373, %v421
  %v423 = vpop.f32.mrb[0].mxu0
  %v424 = vpop.f32.mrb[0].mxu0
  %v425 = vadd.f32 %v376, %v424
  %v426 = vpop.f32.mrb[0].mxu0
  %427 = vdwg.mxu0
  %v428 = vadd.f32 %v22, %v414
  %v429 = vadd.f32 %v23, %v417
  %v430 = vadd.f32 %v24, %v422
  %v431 = vadd.f32 %v25, %v425
  %432 = vst [vmem:[#allocation2] sm:$0xff] %v428
  %433 = vst [vmem:[#allocation2 + $0x8] sm:$0xff] %v429
  %434 = vst [vmem:[#allocation2 + $0x10] sm:$0xff] %v430
  %435 = vst [vmem:[#allocation2 + $0x18] sm:$0xff] %v431
  // Predicated region
  $region14: #{_lambda_.11} parent=0 // pred_check
    %p436 = pneg %p14
  $region15: #{_lambda_.11} parent=0 // pred_check_branch
    %438 = sbr.rel (%p436) target = $region17
  $region16: #{_lambda_.11} parent=0 // pred_region
    %v439 = vld [vmem:[#allocation2] sm:$0xff]
    %v440 = vld [vmem:[#allocation2 + $0x8] sm:$0xff]
    %v441 = vld [vmem:[#allocation2 + $0x10] sm:$0xff]
    %v442 = vld [vmem:[#allocation2 + $0x18] sm:$0xff]
    %443 = vst [vmem:[%s2] sm:$0xff] %v439
    %444 = vst [vmem:[%s2 + $0x8] sm:$0xff] %v440
    %445 = vst [vmem:[%s2 + $0x10] sm:$0xff] %v441
    %446 = vst [vmem:[%s2 + $0x18] sm:$0xff] %v442
    %v447 = vadd.f32 %v439, %v440
    %v448 = vadd.f32 %v447, %v441
    %v449 = vadd.f32 %v448, %v442
    %v450 = vrot.slane %v449, 4
    %v451 = vadd.f32 %v449, %v450
    %v452 = vrot.slane %v451, 2
    %v453 = vadd.f32 %v451, %v452
    %v454 = vrot.slane %v453, 1
    %v455 = vadd.f32 %v453, %v454
    %v456 = vmul.f32 %v439, %v439
    %v457 = vmul.f32 %v440, %v440
    %v458 = vmul.f32 %v441, %v441
    %v459 = vmul.f32 %v442, %v442
    %v460 = vadd.f32 %v456, %v457
    %v461 = vadd.f32 %v460, %v458
    %v462 = vadd.f32 %v461, %v459
    %v463 = vrot.slane %v462, 4
    %v464 = vadd.f32 %v462, %v463
    %v465 = vrot.slane %v464, 2
    %v466 = vadd.f32 %v464, %v465
    %v467 = vrot.slane %v466, 1
    %v468 = vadd.f32 %v466, %v467
    %v469 = vlaneseq
    %v470 = vshrl.u32 %v469, 7
    %vm471 = vcmp.eq.s32.totalorder %v470, 0
    %vm472 = vcmp.eq.s32.totalorder %v470, 1
    %v473 = vsel %vm472, %v468, 0.0
    %v474 = vsel %vm471, %v455, %v473
    %475 = vst [vmem:[%s3] sm:$0xff] %v474
  $region17: #{_lambda_.11} parent=0 // pred_fallthru
    _
  // Predicated region
  $region18: #{_lambda_.11} parent=0 // pred_check
    _
  $region19: #{_lambda_.11} parent=0 // pred_check_branch
    %477 = sbr.rel (0) target = $region21
  $region20: #{_lambda_.11} parent=0 // pred_region
    _
  $region21: #{_lambda_.11} parent=0 // pred_fallthru
    _
  // Predicated region
  $region22: #{_lambda_.11} parent=0 // pred_check
    _
  $region23: #{_lambda_.11} parent=0 // pred_check_branch
    %479 = sbr.rel (0) target = $region25
  $region24: #{_lambda_.11} parent=0 // pred_region
    _
  $region25: #{_lambda_.11} parent=0 // pred_fallthru
    _
  // Predicated region
  $region26: #{_lambda_.11} parent=0 // pred_check
    _
  $region27: #{_lambda_.11} parent=0 // pred_check_branch
    %481 = sbr.rel (0) target = $region29
  $region28: #{_lambda_.11} parent=0 // pred_region
    _
  $region29: #{_lambda_.11} parent=0 // pred_fallthru
    _
  // Predicated region
  $region30: #{_lambda_.11} parent=0 // pred_check
    _
  $region31: #{_lambda_.11} parent=0 // pred_check_branch
    %483 = sbr.rel (0) target = $region33
  $region32: #{_lambda_.11} parent=0 // pred_region
    _
  $region33: #{_lambda_.11} parent=0 // pred_fallthru
    _

// kernel: _lambda_.12
$region0: #{_lambda_.12}
  #allocation0 [shape = 'u32[]', space=smem, size = 0x4, offset = 0x4, fixed_abs, tag = 'smem constant byte address 0x4 - core index']
  #allocation1 [shape = 'u32[144,128]{1,0:T(1,128)}', space=vmem, size = 0x12000, scoped, tag = 'internal scratch']
  %s0 = inlined_call_operand.vmem [shape: f32[32,128], index: 0, kind: input, shape index: {}]
  %s1 = inlined_call_operand.vmem [shape: f32[1,128], index: 1, kind: input, shape index: {}]
  %s2 = inlined_call_operand.vmem [shape: f32[1,128], index: 2, kind: input, shape index: {}]
  %s3 = inlined_call_operand.vmem [shape: bf16[32,128], index: 3, kind: output, shape index: {}]
  %s4 = sld [smem:[#allocation0]]
  $region22: #{_lambda_.12} parent=0
    _
  %s6 = ssub.s32 1, %s4
  %s7 = scalar_select 0, %s6, %s4
  // Predicated region
  $region2: #{_lambda_.12} parent=0 // pred_check
    _
  $region3: #{_lambda_.12} parent=0 // pred_check_branch
    %9 = sbr.rel (0) target = $region5
  $region4: #{_lambda_.12} parent=0 // pred_region
    _
  $region5: #{_lambda_.12} parent=0 // pred_fallthru
    _
  // Predicated region
  $region6: #{_lambda_.12} parent=0 // pred_check
    _
  $region7: #{_lambda_.12} parent=0 // pred_check_branch
    %11 = sbr.rel (0) target = $region9
  $region8: #{_lambda_.12} parent=0 // pred_region
    _
  $region9: #{_lambda_.12} parent=0 // pred_fallthru
    _
  // Predicated region
  $region10: #{_lambda_.12} parent=0 // pred_check
    _
  $region11: #{_lambda_.12} parent=0 // pred_check_branch
    %13 = sbr.rel (0) target = $region13
  $region12: #{_lambda_.12} parent=0 // pred_region
    _
  $region13: #{_lambda_.12} parent=0 // pred_fallthru
    _
  %v14 = vld [vmem:[%s0] sm:$0xff]
  %v15 = vld [vmem:[%s0 + $0x8] sm:$0xff]
  %v16 = vld [vmem:[%s0 + $0x10] sm:$0xff]
  %v17 = vld [vmem:[%s0 + $0x18] sm:$0xff]
  %v18 = vld [vmem:[%s1] sm:$0x1]
  %v20 = vlaneseq
  %v21 = vshrl.u32 %v20, 7
  %v22 = vsub.s32 0, %v21
  %v23 = vrot.slane %v18, %v22
  %v25 = vmul.f32 %v14, %v23
  %v26 = vmul.f32 %v15, %v23
  %v27 = vmul.f32 %v16, %v23
  %v28 = vmul.f32 %v17, %v23
  %v29 = vld [vmem:[%s2] sm:$0x1]
  %v31 = vlaneseq
  %v32 = vshrl.u32 %v31, 7
  %v33 = vsub.s32 0, %v32
  %v34 = vrot.slane %v29, %v33
  %v36 = vadd.f32 %v25, %v34
  %v37 = vadd.f32 %v26, %v34
  %v38 = vadd.f32 %v27, %v34
  %v39 = vadd.f32 %v28, %v34
  %vm40 = vcmp.gt.f32.partialorder %v36, 0.0
  %vm41 = vcmp.gt.f32.partialorder %v37, 0.0
  %vm42 = vcmp.gt.f32.partialorder %v38, 0.0
  %vm43 = vcmp.gt.f32.partialorder %v39, 0.0
  %v44 = vmul.f32 %v36, 0.2
  %v45 = vmul.f32 %v37, 0.2
  %v46 = vmul.f32 %v38, 0.2
  %v47 = vmul.f32 %v39, 0.2
  %v48 = vsel %vm40, %v36, %v44
  %v49 = vsel %vm41, %v37, %v45
  %v50 = vsel %vm42, %v38, %v46
  %v51 = vsel %vm43, %v39, %v47
  %v52 = vpack.c.bf16 %v49, %v48
  %v53 = vpack.c.bf16 %v51, %v50
  %v56 = vunpack.c.l.b16 %v52
  %v57 = vunpack.c.h.b16 %v52
  %v58 = vunpack.c.l.b16 %v53
  %v59 = vunpack.c.h.b16 %v53
  %v60 = vpack.c.b16 %v56, %v56
  %v61 = vpack.c.b16 %v57, %v57
  %v62 = vpack.c.b16 %v58, %v58
  %v63 = vpack.c.b16 %v59, %v59
  %68 = vst [vmem:[%s3] sm:$0xf] %v60
  %69 = vst [vmem:[%s3 + $0x4] sm:$0xf] %v61
  %70 = vst [vmem:[%s3 + $0x8] sm:$0xf] %v62
  %71 = vst [vmem:[%s3 + $0xc] sm:$0xf] %v63
  // Predicated region
  $region14: #{_lambda_.12} parent=0 // pred_check
    _
  $region15: #{_lambda_.12} parent=0 // pred_check_branch
    %73 = sbr.rel (0) target = $region17
  $region16: #{_lambda_.12} parent=0 // pred_region
    _
  $region17: #{_lambda_.12} parent=0 // pred_fallthru
    _
  // Predicated region
  $region18: #{_lambda_.12} parent=0 // pred_check
    _
  $region19: #{_lambda_.12} parent=0 // pred_check_branch
    %75 = sbr.rel (0) target = $region21
  $region20: #{_lambda_.12} parent=0 // pred_region
    _
  $region21: #{_lambda_.12} parent=0 // pred_fallthru
    _

// kernel: _lambda_.14
$region0: #{_lambda_.14}
  #allocation0 [shape = 'u32[]', space=smem, size = 0x4, offset = 0x4, fixed_abs, tag = 'smem constant byte address 0x4 - core index']
  #allocation1 [shape = 'u32[144,128]{1,0:T(1,128)}', space=vmem, size = 0x12000, scoped, tag = 'internal scratch']
  %s0 = inlined_call_operand.vmem [shape: f32[24,128], index: 0, kind: input, shape index: {}]
  %s1 = inlined_call_operand.vmem [shape: f32[1,128], index: 1, kind: input, shape index: {}]
  %s2 = inlined_call_operand.vmem [shape: f32[1,128], index: 2, kind: input, shape index: {}]
  %s3 = inlined_call_operand.vmem [shape: bf16[24,128], index: 3, kind: output, shape index: {}]
  %s4 = sld [smem:[#allocation0]]
  $region22: #{_lambda_.14} parent=0
    _
  %s6 = ssub.s32 1, %s4
  %s7 = scalar_select 0, %s6, %s4
  // Predicated region
  $region2: #{_lambda_.14} parent=0 // pred_check
    _
  $region3: #{_lambda_.14} parent=0 // pred_check_branch
    %9 = sbr.rel (0) target = $region5
  $region4: #{_lambda_.14} parent=0 // pred_region
    _
  $region5: #{_lambda_.14} parent=0 // pred_fallthru
    _
  // Predicated region
  $region6: #{_lambda_.14} parent=0 // pred_check
    _
  $region7: #{_lambda_.14} parent=0 // pred_check_branch
    %11 = sbr.rel (0) target = $region9
  $region8: #{_lambda_.14} parent=0 // pred_region
    _
  $region9: #{_lambda_.14} parent=0 // pred_fallthru
    _
  // Predicated region
  $region10: #{_lambda_.14} parent=0 // pred_check
    _
  $region11: #{_lambda_.14} parent=0 // pred_check_branch
    %13 = sbr.rel (0) target = $region13
  $region12: #{_lambda_.14} parent=0 // pred_region
    _
  $region13: #{_lambda_.14} parent=0 // pred_fallthru
    _
  %v14 = vld [vmem:[%s0] sm:$0xff]
  %v15 = vld [vmem:[%s0 + $0x8] sm:$0xff]
  %v16 = vld [vmem:[%s0 + $0x10] sm:$0xff]
  %v17 = vld [vmem:[%s1] sm:$0x1]
  %v19 = vlaneseq
  %v20 = vshrl.u32 %v19, 7
  %v21 = vsub.s32 0, %v20
  %v22 = vrot.slane %v17, %v21
  %v24 = vmul.f32 %v14, %v22
  %v25 = vmul.f32 %v15, %v22
  %v26 = vmul.f32 %v16, %v22
  %v27 = vld [vmem:[%s2] sm:$0x1]
  %v29 = vlaneseq
  %v30 = vshrl.u32 %v29, 7
  %v31 = vsub.s32 0, %v30
  %v32 = vrot.slane %v27, %v31
  %v34 = vadd.f32 %v24, %v32
  %v35 = vadd.f32 %v25, %v32
  %v36 = vadd.f32 %v26, %v32
  %vm37 = vcmp.gt.f32.partialorder %v34, 0.0
  %vm38 = vcmp.gt.f32.partialorder %v35, 0.0
  %vm39 = vcmp.gt.f32.partialorder %v36, 0.0
  %v40 = vmul.f32 %v34, 0.2
  %v41 = vmul.f32 %v35, 0.2
  %v42 = vmul.f32 %v36, 0.2
  %v43 = vsel %vm37, %v34, %v40
  %v44 = vsel %vm38, %v35, %v41
  %v45 = vsel %vm39, %v36, %v42
  %v46 = vpack.c.bf16 %v44, %v43
  %v47 = vpack.c.bf16 %v45, %v45
  %v50 = vunpack.c.l.b16 %v46
  %v51 = vunpack.c.h.b16 %v46
  %v52 = vunpack.c.l.b16 %v47
  %v53 = vpack.c.b16 %v50, %v50
  %v54 = vpack.c.b16 %v51, %v51
  %v55 = vpack.c.b16 %v52, %v52
  %59 = vst [vmem:[%s3] sm:$0xf] %v53
  %60 = vst [vmem:[%s3 + $0x4] sm:$0xf] %v54
  %61 = vst [vmem:[%s3 + $0x8] sm:$0xf] %v55
  // Predicated region
  $region14: #{_lambda_.14} parent=0 // pred_check
    _
  $region15: #{_lambda_.14} parent=0 // pred_check_branch
    %63 = sbr.rel (0) target = $region17
  $region16: #{_lambda_.14} parent=0 // pred_region
    _
  $region17: #{_lambda_.14} parent=0 // pred_fallthru
    _
  // Predicated region
  $region18: #{_lambda_.14} parent=0 // pred_check
    _
  $region19: #{_lambda_.14} parent=0 // pred_check_branch
    %65 = sbr.rel (0) target = $region21
  $region20: #{_lambda_.14} parent=0 // pred_region
    _
  $region21: #{_lambda_.14} parent=0 // pred_fallthru
    _

// kernel: _lambda_.13
$region0: #{_lambda_.13}
  #allocation0 [shape = 'u32[]', space=smem, size = 0x4, offset = 0x4, fixed_abs, tag = 'smem constant byte address 0x4 - core index']
  #allocation1 [shape = 'u32[144,128]{1,0:T(1,128)}', space=vmem, size = 0x12000, scoped, tag = 'internal scratch']
  #allocation2 [shape = 'f32[24,128]{1,0:T(8,128)}', space=vmem, size = 0x3000, scoped, tag = 'scratch operand']
  %s0 = inlined_call_operand.vmem [shape: bf16[24,1024], index: 0, kind: input, shape index: {}]
  %s1 = inlined_call_operand.vmem [shape: bf16[1024,128], index: 1, kind: input, shape index: {}]
  %s2 = inlined_call_operand.vmem [shape: f32[24,128], index: 2, kind: output, shape index: {0}]
  %s3 = inlined_call_operand.vmem [shape: f32[1,8,128], index: 3, kind: output, shape index: {1}]
  %4 = xla_tuple %s2, %s3
  %s5 = sld [smem:[#allocation0]]
  $region80: #{_lambda_.13} parent=0
    _
  %s7 = ssub.s32 1, %s5
  %s8 = scalar_select 0, %s7, %s5
  $region1: #{_lambda_.13} parent=0
    #allocation3 [shape = 'u8[49152]{0}', space=vmem, size = 0xc000, scoped, tag = 'input window, operand 0']
    loop: start=0, step=1, limit=4
    $region2: #{_lambda_.13} parent=1 // loop_pre_header
      _
    $region3: #{_lambda_.13} parent=1 // loop_header
      %s10 = sphi 0, %s14
      %p11 = scmp.ge.s32.totalorder %s10, 4
      %s17 = sphi 0, %s36
      %s18 = sphi 0, %s32
      %s19 = sphi 0, %s28
      %s20 = sphi 0, %s17
      %s21 = sphi 0, %s18
      %s22 = sphi 0, %s19
      %s23 = sphi 0, %s20
      %s24 = sphi 0, %s21
      %s25 = sphi 0, %s22
      %s41 = sphi 0, %s43
      %s44 = sphi 0, %s41
      %s45 = sphi 0, %s44
      %s61 = sphi 0, %s45
      %s69 = sphi 0, %s71
      %s72 = sphi 0, %s69
      %s73 = sphi 0, %s72
      %s89 = sphi 0, %s73
      %s97 = sphi 0, %s99
      %s100 = sphi 0, %s97
      %s101 = sphi 0, %s100
      %s117 = sphi 0, %s101
      %s125 = sphi 0, %s127
      %s128 = sphi 0, %s125
      %s129 = sphi 0, %s128
      %s145 = sphi 0, %s129
    $region4: #{_lambda_.13} parent=1 // loop_header_branch
      %13 = sbr.rel (%p11) target = $region8
    $region5: #{_lambda_.13} parent=1 // loop_body
      %s15 = ssub.s32 %s10, 1
      %s16 = ssub.s32 %s10, 2
      %s26 = sadd.s32 1, %s19
      %p27 = scmp.ge.s32.totalorder %s26, 2
      %s28 = scalar_select %p27, 0, %s26
      %s29 = sadd.s32 1, %s18
      %s30 = scalar_select %p27, %s29, %s18
      %p31 = scmp.ge.s32.totalorder %s30, 1
      %s32 = scalar_select %p31, 0, %s30
      %s33 = sadd.s32 1, %s17
      %s34 = scalar_select %p31, %s33, %s17
      %p35 = scmp.ge.s32.totalorder %s34, 1
      %s36 = scalar_select %p35, 0, %s34
      %s37 = ssub.s32 %s17, %s36
      %s38 = ssub.s32 %s19, %s28
      %s39 = sor.u32 %s37, %s38
      %p40 = scmp.eq.s32.totalorder %s39, 0
      %s42 = sadd.s32 %s41, 1
      %s43 = scalar_select %p40, %s41, %s42
      %p46 = pneg %p40
      %p47 = scmp.eq.s32.totalorder %s10, 1
      %p48 = por %p46, %p47
      %p49 = scmp.ne.s32.totalorder %s41, %s44
      %p50 = scmp.eq.s32.totalorder %s10, 0
      %p51 = por %p49, %p50
      %p52 = scmp.ne.s32.totalorder %s41, %s44
      %p53 = scmp.eq.s32.totalorder %s15, 1
      %p54 = por %p52, %p53
      %p55 = scmp.ne.s32.totalorder %s44, %s45
      %p56 = scmp.eq.s32.totalorder %s15, 0
      %p57 = por %p55, %p56
      %p58 = scmp.ne.s32.totalorder %s44, %s45
      %p59 = scmp.eq.s32.totalorder %s16, 1
      %p60 = por %p58, %p59
      %p62 = scmp.ne.s32.totalorder %s45, %s61
      %p63 = scmp.eq.s32.totalorder %s16, 0
      %p64 = por %p62, %p63
      %s65 = ssub.s32 %s19, %s28
      %s66 = ssub.s32 %s18, %s32
      %s67 = sor.u32 %s65, %s66
      %p68 = scmp.eq.s32.totalorder %s67, 0
      %s70 = sadd.s32 %s69, 1
      %s71 = scalar_select %p68, %s69, %s70
      %p74 = pneg %p68
      %p75 = scmp.eq.s32.totalorder %s10, 1
      %p76 = por %p74, %p75
      %p77 = scmp.ne.s32.totalorder %s69, %s72
      %p78 = scmp.eq.s32.totalorder %s10, 0
      %p79 = por %p77, %p78
      %p80 = scmp.ne.s32.totalorder %s69, %s72
      %p81 = scmp.eq.s32.totalorder %s15, 1
      %p82 = por %p80, %p81
      %p83 = scmp.ne.s32.totalorder %s72, %s73
      %p84 = scmp.eq.s32.totalorder %s15, 0
      %p85 = por %p83, %p84
      %p86 = scmp.ne.s32.totalorder %s72, %s73
      %p87 = scmp.eq.s32.totalorder %s16, 1
      %p88 = por %p86, %p87
      %p90 = scmp.ne.s32.totalorder %s73, %s89
      %p91 = scmp.eq.s32.totalorder %s16, 0
      %p92 = por %p90, %p91
      %s93 = ssub.s32 %s17, %s36
      %s94 = ssub.s32 %s18, %s32
      %s95 = sor.u32 %s93, %s94
      %p96 = scmp.eq.s32.totalorder %s95, 0
      %s98 = sadd.s32 %s97, 1
      %s99 = scalar_select %p96, %s97, %s98
      %p102 = pneg %p96
      %p103 = scmp.eq.s32.totalorder %s10, 1
      %p104 = por %p102, %p103
      %p105 = scmp.ne.s32.totalorder %s97, %s100
      %p106 = scmp.eq.s32.totalorder %s10, 0
      %p107 = por %p105, %p106
      %p108 = scmp.ne.s32.totalorder %s97, %s100
      %p109 = scmp.eq.s32.totalorder %s15, 1
      %p110 = por %p108, %p109
      %p111 = scmp.ne.s32.totalorder %s100, %s101
      %p112 = scmp.eq.s32.totalorder %s15, 0
      %p113 = por %p111, %p112
      %p114 = scmp.ne.s32.totalorder %s100, %s101
      %p115 = scmp.eq.s32.totalorder %s16, 1
      %p116 = por %p114, %p115
      %p118 = scmp.ne.s32.totalorder %s101, %s117
      %p119 = scmp.eq.s32.totalorder %s16, 0
      %p120 = por %p118, %p119
      %s121 = ssub.s32 %s17, %s36
      %s122 = ssub.s32 %s18, %s32
      %s123 = sor.u32 %s121, %s122
      %p124 = scmp.eq.s32.totalorder %s123, 0
      %s126 = sadd.s32 %s125, 1
      %s127 = scalar_select %p124, %s125, %s126
      %p130 = pneg %p124
      %p131 = scmp.eq.s32.totalorder %s10, 1
      %p132 = por %p130, %p131
      %p133 = scmp.ne.s32.totalorder %s125, %s128
      %p134 = scmp.eq.s32.totalorder %s10, 0
      %p135 = por %p133, %p134
      %p136 = scmp.ne.s32.totalorder %s125, %s128
      %p137 = scmp.eq.s32.totalorder %s15, 1
      %p138 = por %p136, %p137
      %p139 = scmp.ne.s32.totalorder %s128, %s129
      %p140 = scmp.eq.s32.totalorder %s15, 0
      %p141 = por %p139, %p140
      %p142 = scmp.ne.s32.totalorder %s128, %s129
      %p143 = scmp.eq.s32.totalorder %s16, 1
      %p144 = por %p142, %p143
      %p146 = scmp.ne.s32.totalorder %s129, %s145
      %p147 = scmp.eq.s32.totalorder %s16, 0
      %p148 = por %p146, %p147
      %p149 = scmp.le.s32.totalorder 1, %s10
      %p150 = scmp.lt.s32.totalorder %s10, 3
      %p151 = pnand %p149, %p150
      %p152 = pneg %p151
      // Predicated region
      $region9: #{_lambda_.13} parent=5 // pred_check
        _
      $region10: #{_lambda_.13} parent=5 // pred_check_branch
        %154 = sbr.rel (%p151) target = $region12
      $region11: #{_lambda_.13} parent=5 // pred_region
        %s155 = ssub.s32 %s10, 1
      $region12: #{_lambda_.13} parent=5 // pred_fallthru
        _
      %p156 = scmp.lt.s32.totalorder %s10, 2
      // Predicated region
      $region13: #{_lambda_.13} parent=5 // pred_check
        %p157 = pneg %p156
      $region14: #{_lambda_.13} parent=5 // pred_check_branch
        %159 = sbr.rel (%p157) target = $region16
      $region15: #{_lambda_.13} parent=5 // pred_region
        // Predicated region
        $region17: #{_lambda_.13} parent=15 // pred_check
          %p160 = pneg %p51
        $region18: #{_lambda_.13} parent=15 // pred_check_branch
          %162 = sbr.rel (%p160) target = $region20
        $region19: #{_lambda_.13} parent=15 // pred_region
          %s163 = sand.u32 %s41, 1
          %s164 = sand.u32 %s41, 1
          %s165 = smul.addr %s164, 48
          %s166 = scalar_lea.vmem [#allocation3], %s165
          %s167 = smul.u32 3, %s17
          %s168 = smul.u32 4, %s19
          %s169 = smul.addr %s167, 8
          %s170 = sadd.s32 %s168, %s169
          %s171 = smul.addr %s170, 4
          %s172 = scalar_lea.vmem %s0, %s171
          // Predicated region
          $region21: #{_lambda_.13} parent=19 // pred_check
            _
          $region22: #{_lambda_.13} parent=19 // pred_check_branch
            %174 = sbr.rel (0) target = $region24
          $region23: #{_lambda_.13} parent=19 // pred_region
            // Predicated region
            $region25: #{_lambda_.13} parent=23 // pred_check
              _
            $region26: #{_lambda_.13} parent=23 // pred_check_branch
              %176 = sbr.rel (0) target = $region28
            $region27: #{_lambda_.13} parent=23 // pred_region
              loop: start=0, step=1, limit=1
              $region29: #{_lambda_.13} parent=27 // loop_pre_header
                _
              $region30: #{_lambda_.13} parent=27 // loop_header
                %s178 = sphi 0, %s182
                %p179 = scmp.ge.s32.totalorder %s178, 1
                %s183 = sphi %s172, %s172
                %s184 = sphi %s166, %s166
              $region31: #{_lambda_.13} parent=27 // loop_header_branch
                %181 = sbr.rel (%p179) target = $region35
              $region32: #{_lambda_.13} parent=27 // loop_body
                %v185 = vld [vmem:[%s183] sm:$0xff]
                %186 = vst [vmem:[%s184] sm:$0xff] %v185
                %v187 = vld [vmem:[%s183 + $0x8] sm:$0xff]
                %188 = vst [vmem:[%s184 + $0x8] sm:$0xff] %v187
                %v189 = vld [vmem:[%s183 + $0x20] sm:$0xff]
                %190 = vst [vmem:[%s184 + $0x10] sm:$0xff] %v189
                %v191 = vld [vmem:[%s183 + $0x28] sm:$0xff]
                %192 = vst [vmem:[%s184 + $0x18] sm:$0xff] %v191
                %v193 = vld [vmem:[%s183 + $0x40] sm:$0xff]
                %194 = vst [vmem:[%s184 + $0x20] sm:$0xff] %v193
                %v195 = vld [vmem:[%s183 + $0x48] sm:$0xff]
                %196 = vst [vmem:[%s184 + $0x28] sm:$0xff] %v195
              $region33: #{_lambda_.13} parent=27 // loop_footer
                %s182 = sadd.s32 1, %s178
              $region34: #{_lambda_.13} parent=27 // loop_footer_branch
                %177 = sbr.rel target = $region30
              $region35: #{_lambda_.13} parent=27 // loop_exit
                _
            $region28: #{_lambda_.13} parent=23 // pred_fallthru
              _
            // Predicated region
            $region36: #{_lambda_.13} parent=23 // pred_check
              _
            $region37: #{_lambda_.13} parent=23 // pred_check_branch
              %198 = sbr.rel target = $region39
            $region38: #{_lambda_.13} parent=23 // pred_region
              _
            $region39: #{_lambda_.13} parent=23 // pred_fallthru
              _
          $region24: #{_lambda_.13} parent=19 // pred_fallthru
            _
          %199 = vnop
        $region20: #{_lambda_.13} parent=15 // pred_fallthru
          _
        // Predicated region
        $region40: #{_lambda_.13} parent=15 // pred_check
          %p200 = pneg %p79
        $region41: #{_lambda_.13} parent=15 // pred_check_branch
          %202 = sbr.rel (%p200) target = $region43
        $region42: #{_lambda_.13} parent=15 // pred_region
          %s203 = smul.u32 64, %s19
          %p204 = scmp.lt.s32.totalorder %s203, 127
          %s205 = scalar_select %p204, %s203, 127
          %p206 = scmp.lt.s32.totalorder %s18, 0
          %s207 = scalar_select %p206, %s18, 0
          %s208 = sadd.s32 %s207, %s205
          %s209 = smul.addr %s208, 4
          %s210 = scalar_lea.vmem %s1, %s209
          %s211 = smul.u32 64, %s19
        $region43: #{_lambda_.13} parent=15 // pred_fallthru
          _
      $region16: #{_lambda_.13} parent=5 // pred_fallthru
        _
      %p212 = scmp.le.s32.totalorder 1, %s10
      %p213 = scmp.lt.s32.totalorder %s10, 3
      %p214 = pnand %p212, %p213
      %p215 = pneg %p214
      // Predicated region
      $region44: #{_lambda_.13} parent=5 // pred_check
        _
      $region45: #{_lambda_.13} parent=5 // pred_check_branch
        %217 = sbr.rel (%p214) target = $region47
      $region46: #{_lambda_.13} parent=5 // pred_region
        %s218 = ssub.s32 %s10, 1
        %s219 = sand.u32 %s44, 1
        %s220 = sand.u32 %s44, 1
        %s221 = smul.addr %s220, 48
        %s222 = scalar_lea.vmem [#allocation3], %s221
        // Predicated region
        $region48: #{_lambda_.13} parent=46 // pred_check
          %p223 = pneg %p57
        $region49: #{_lambda_.13} parent=46 // pred_check_branch
          %225 = sbr.rel (%p223) target = $region51
        $region50: #{_lambda_.13} parent=46 // pred_region
          _
        $region51: #{_lambda_.13} parent=46 // pred_fallthru
          _
        %s226 = sand.u32 %s44, 1
        %s227 = sand.u32 %s44, 1
        %s228 = smul.addr %s227, 48
        %s229 = scalar_lea.vmem [#allocation3], %s228
        %p230 = pneg %p57
        %p231 = pneg %p54
        %s232 = smul.u32 64, %s22
        %p233 = scmp.lt.s32.totalorder %s232, 127
        %s234 = scalar_select %p233, %s232, 127
        %p235 = scmp.lt.s32.totalorder %s21, 0
        %s236 = scalar_select %p235, %s21, 0
        %s237 = sadd.s32 %s236, %s234
        %s238 = smul.addr %s237, 4
        %s239 = scalar_lea.vmem %s1, %s238
        %p240 = pneg %p85
        %p241 = pneg %p82
        %p242 = pneg %p113
        %p243 = pneg %p110
        %s244 = smul.u32 3, %s20
        %p245 = scmp.lt.s32.totalorder %s244, 2
        %s246 = scalar_select %p245, %s244, 2
        %p247 = scmp.lt.s32.totalorder %s21, 0
        %s248 = scalar_select %p247, %s21, 0
        %s249 = sadd.s32 %s248, %s246
        %s250 = smul.addr %s249, 8
        %s251 = scalar_lea.vmem %s2, %s250
        %p252 = pneg %p141
        %p253 = pneg %p138
        %p254 = scmp.lt.s32.totalorder %s20, 0
        %s255 = scalar_select %p254, %s20, 0
        %p256 = scmp.lt.s32.totalorder %s21, 0
        %s257 = scalar_select %p256, %s21, 0
        %s258 = sadd.s32 %s257, %s255
        %s259 = smul.addr %s258, 8
        %s260 = scalar_lea.vmem %s3, %s259
        %s261 = smul.u32 3, %s20
        %s262 = smul.u32 4, %s22
        %s263 = smul.u32 64, %s22
        %p264 = scmp.lt.s32.totalorder %s263, 127
        %s265 = scalar_select %p264, %s263, 127
        %p266 = scmp.lt.s32.totalorder %s21, 0
        %s267 = scalar_select %p266, %s21, 0
        %s268 = sadd.s32 %s267, %s265
        %s269 = smul.addr %s268, 4
        %s270 = scalar_lea.vmem %s1, %s269
        %s271 = smul.u32 64, %s22
        %s272 = smul.u32 3, %s20
        %p273 = scmp.lt.s32.totalorder %s272, 2
        %s274 = scalar_select %p273, %s272, 2
        %p275 = scmp.lt.s32.totalorder %s21, 0
        %s276 = scalar_select %p275, %s21, 0
        %s277 = sadd.s32 %s276, %s274
        %s278 = smul.addr %s277, 8
        %s279 = scalar_lea.vmem %s2, %s278
        %s280 = smul.u32 3, %s20
        %p281 = scmp.lt.s32.totalorder %s20, 0
        %s282 = scalar_select %p281, %s20, 0
        %p283 = scmp.lt.s32.totalorder %s21, 0
        %s284 = scalar_select %p283, %s21, 0
        %s285 = sadd.s32 %s284, %s282
        %s286 = smul.addr %s285, 8
        %s287 = scalar_lea.vmem %s3, %s286
        %p289 = scmp.eq.s32.totalorder %s22, 0
        // Predicated region
        $region52: #{_lambda_.13} parent=46 // pred_check
          %p290 = pneg %p289
        $region53: #{_lambda_.13} parent=46 // pred_check_branch
          %292 = sbr.rel (%p290) target = $region55
        $region54: #{_lambda_.13} parent=46 // pred_region
          %293 = vst [vmem:[#allocation2] sm:$0xff] 0.0
          %294 = vst [vmem:[#allocation2 + $0x8] sm:$0xff] 0.0
          %295 = vst [vmem:[#allocation2 + $0x10] sm:$0xff] 0.0
        $region55: #{_lambda_.13} parent=46 // pred_fallthru
          _
        %v296 = vld [vmem:[#allocation2] sm:$0xff]
        %v297 = vld [vmem:[#allocation2 + $0x8] sm:$0xff]
        %v298 = vld [vmem:[#allocation2 + $0x10] sm:$0xff]
        %v299 = vld [vmem:[%s222] sm:$0xff]
        %v300 = vld [vmem:[%s222 + $0x8] sm:$0xff]
        %v301 = vld [vmem:[%s222 + $0x10] sm:$0xff]
        %v302 = vld [vmem:[%s222 + $0x18] sm:$0xff]
        %v303 = vld [vmem:[%s222 + $0x20] sm:$0xff]
        %v304 = vld [vmem:[%s222 + $0x28] sm:$0xff]
        %v305 = vld [vmem:[%s270] sm:$0xf]
        %v306 = vld [vmem:[%s270 + $0x4] sm:$0xf]
        %v307 = vld [vmem:[%s270 + $0x8] sm:$0xf]
        %v308 = vld [vmem:[%s270 + $0xc] sm:$0xf]
        %v309 = vld [vmem:[%s270 + $0x10] sm:$0xf]
        %v310 = vld [vmem:[%s270 + $0x14] sm:$0xf]
        %v311 = vld [vmem:[%s270 + $0x18] sm:$0xf]
        %v312 = vld [vmem:[%s270 + $0x1c] sm:$0xf]
        %v313 = vld [vmem:[%s270 + $0x20] sm:$0xf]
        %v314 = vld [vmem:[%s270 + $0x24] sm:$0xf]
        %v315 = vld [vmem:[%s270 + $0x28] sm:$0xf]
        %v316 = vld [vmem:[%s270 + $0x2c] sm:$0xf]
        %v317 = vld [vmem:[%s270 + $0x30] sm:$0xf]
        %v318 = vld [vmem:[%s270 + $0x34] sm:$0xf]
        %v319 = vld [vmem:[%s270 + $0x38] sm:$0xf]
        %v320 = vld [vmem:[%s270 + $0x3c] sm:$0xf]
        %v321 = vld [vmem:[%s270 + $0x40] sm:$0xf]
        %v322 = vld [vmem:[%s270 + $0x44] sm:$0xf]
        %v323 = vld [vmem:[%s270 + $0x48] sm:$0xf]
        %v324 = vld [vmem:[%s270 + $0x4c] sm:$0xf]
        %v325 = vld [vmem:[%s270 + $0x50] sm:$0xf]
        %v326 = vld [vmem:[%s270 + $0x54] sm:$0xf]
        %v327 = vld [vmem:[%s270 + $0x58] sm:$0xf]
        %v328 = vld [vmem:[%s270 + $0x5c] sm:$0xf]
        %v329 = vld [vmem:[%s270 + $0x60] sm:$0xf]
        %v330 = vld [vmem:[%s270 + $0x64] sm:$0xf]
        %v331 = vld [vmem:[%s270 + $0x68] sm:$0xf]
        %v332 = vld [vmem:[%s270 + $0x6c] sm:$0xf]
        %v333 = vld [vmem:[%s270 + $0x70] sm:$0xf]
        %v334 = vld [vmem:[%s270 + $0x74] sm:$0xf]
        %v335 = vld [vmem:[%s270 + $0x78] sm:$0xf]
        %v336 = vld [vmem:[%s270 + $0x7c] sm:$0xf]
        %v337 = vld [vmem:[%s270 + $0x80] sm:$0xf]
        %v338 = vld [vmem:[%s270 + $0x84] sm:$0xf]
        %v339 = vld [vmem:[%s270 + $0x88] sm:$0xf]
        %v340 = vld [vmem:[%s270 + $0x8c] sm:$0xf]
        %v341 = vld [vmem:[%s270 + $0x90] sm:$0xf]
        %v342 = vld [vmem:[%s270 + $0x94] sm:$0xf]
        %v343 = vld [vmem:[%s270 + $0x98] sm:$0xf]
        %v344 = vld [vmem:[%s270 + $0x9c] sm:$0xf]
        %v345 = vld [vmem:[%s270 + $0xa0] sm:$0xf]
        %v346 = vld [vmem:[%s270 + $0xa4] sm:$0xf]
        %v347 = vld [vmem:[%s270 + $0xa8] sm:$0xf]
        %v348 = vld [vmem:[%s270 + $0xac] sm:$0xf]
        %v349 = vld [vmem:[%s270 + $0xb0] sm:$0xf]
        %v350 = vld [vmem:[%s270 + $0xb4] sm:$0xf]
        %v351 = vld [vmem:[%s270 + $0xb8] sm:$0xf]
        %v352 = vld [vmem:[%s270 + $0xbc] sm:$0xf]
        %v353 = vld [vmem:[%s270 + $0xc0] sm:$0xf]
        %v354 = vld [vmem:[%s270 + $0xc4] sm:$0xf]
        %v355 = vld [vmem:[%s270 + $0xc8] sm:$0xf]
        %v356 = vld [vmem:[%s270 + $0xcc] sm:$0xf]
        %v357 = vld [vmem:[%s270 + $0xd0] sm:$0xf]
        %v358 = vld [vmem:[%s270 + $0xd4] sm:$0xf]
        %v359 = vld [vmem:[%s270 + $0xd8] sm:$0xf]
        %v360 = vld [vmem:[%s270 + $0xdc] sm:$0xf]
        %v361 = vld [vmem:[%s270 + $0xe0] sm:$0xf]
        %v362 = vld [vmem:[%s270 + $0xe4] sm:$0xf]
        %v363 = vld [vmem:[%s270 + $0xe8] sm:$0xf]
        %v364 = vld [vmem:[%s270 + $0xec] sm:$0xf]
        %v365 = vld [vmem:[%s270 + $0xf0] sm:$0xf]
        %v366 = vld [vmem:[%s270 + $0xf4] sm:$0xf]
        %v367 = vld [vmem:[%s270 + $0xf8] sm:$0xf]
        %v368 = vld [vmem:[%s270 + $0xfc] sm:$0xf]
        %v375 = vunpack.c.l.b16 %v299
        %v376 = vunpack.c.h.b16 %v299
        %v377 = vunpack.c.l.b16 %v300
        %v378 = vunpack.c.h.b16 %v300
        %v379 = vunpack.c.l.b16 %v301
        %v380 = vunpack.c.h.b16 %v301
        %v381 = vunpack.c.l.b16 %v302
        %v382 = vunpack.c.h.b16 %v302
        %v383 = vunpack.c.l.b16 %v303
        %v384 = vunpack.c.h.b16 %v303
        %v385 = vunpack.c.l.b16 %v304
        %v386 = vunpack.c.h.b16 %v304
        %v387 = vpack.c.b16 %v379, %v375
        %v388 = vpack.c.b16 %v380, %v376
        %v389 = vpack.c.b16 %v381, %v377
        %v390 = vpack.c.b16 %v382, %v378
        %v391 = vpack.c.b16 %v383, %v383
        %v392 = vpack.c.b16 %v384, %v384
        %v393 = vpack.c.b16 %v385, %v385
        %v394 = vpack.c.b16 %v386, %v386
        %v467 = vunpack.c.l.b16 %v305
        %v468 = vunpack.c.l.b16 %v306
        %v469 = vunpack.c.l.b16 %v307
        %v470 = vunpack.c.l.b16 %v308
        %v471 = vunpack.c.l.b16 %v309
        %v472 = vunpack.c.l.b16 %v310
        %v473 = vunpack.c.l.b16 %v311
        %v474 = vunpack.c.l.b16 %v312
        %v475 = vunpack.c.l.b16 %v313
        %v476 = vunpack.c.l.b16 %v314
        %v477 = vunpack.c.l.b16 %v315
        %v478 = vunpack.c.l.b16 %v316
        %v479 = vunpack.c.l.b16 %v317
        %v480 = vunpack.c.l.b16 %v318
        %v481 = vunpack.c.l.b16 %v319
        %v482 = vunpack.c.l.b16 %v320
        %v483 = vunpack.c.l.b16 %v321
        %v484 = vunpack.c.l.b16 %v322
        %v485 = vunpack.c.l.b16 %v323
        %v486 = vunpack.c.l.b16 %v324
        %v487 = vunpack.c.l.b16 %v325
        %v488 = vunpack.c.l.b16 %v326
        %v489 = vunpack.c.l.b16 %v327
        %v490 = vunpack.c.l.b16 %v328
        %v491 = vunpack.c.l.b16 %v329
        %v492 = vunpack.c.l.b16 %v330
        %v493 = vunpack.c.l.b16 %v331
        %v494 = vunpack.c.l.b16 %v332
        %v495 = vunpack.c.l.b16 %v333
        %v496 = vunpack.c.l.b16 %v334
        %v497 = vunpack.c.l.b16 %v335
        %v498 = vunpack.c.l.b16 %v336
        %v499 = vunpack.c.l.b16 %v337
        %v500 = vunpack.c.l.b16 %v338
        %v501 = vunpack.c.l.b16 %v339
        %v502 = vunpack.c.l.b16 %v340
        %v503 = vunpack.c.l.b16 %v341
        %v504 = vunpack.c.l.b16 %v342
        %v505 = vunpack.c.l.b16 %v343
        %v506 = vunpack.c.l.b16 %v344
        %v507 = vunpack.c.l.b16 %v345
        %v508 = vunpack.c.l.b16 %v346
        %v509 = vunpack.c.l.b16 %v347
        %v510 = vunpack.c.l.b16 %v348
        %v511 = vunpack.c.l.b16 %v349
        %v512 = vunpack.c.l.b16 %v350
        %v513 = vunpack.c.l.b16 %v351
        %v514 = vunpack.c.l.b16 %v352
        %v515 = vunpack.c.l.b16 %v353
        %v516 = vunpack.c.l.b16 %v354
        %v517 = vunpack.c.l.b16 %v355
        %v518 = vunpack.c.l.b16 %v356
        %v519 = vunpack.c.l.b16 %v357
        %v520 = vunpack.c.l.b16 %v358
        %v521 = vunpack.c.l.b16 %v359
        %v522 = vunpack.c.l.b16 %v360
        %v523 = vunpack.c.l.b16 %v361
        %v524 = vunpack.c.l.b16 %v362
        %v525 = vunpack.c.l.b16 %v363
        %v526 = vunpack.c.l.b16 %v364
        %v527 = vunpack.c.l.b16 %v365
        %v528 = vunpack.c.l.b16 %v366
        %v529 = vunpack.c.l.b16 %v367
        %v530 = vunpack.c.l.b16 %v368
        %v531 = vpack.c.b16 %v468, %v467
        %v532 = vpack.c.b16 %v470, %v469
        %v533 = vpack.c.b16 %v472, %v471
        %v534 = vpack.c.b16 %v474, %v473
        %v535 = vpack.c.b16 %v476, %v475
        %v536 = vpack.c.b16 %v478, %v477
        %v537 = vpack.c.b16 %v480, %v479
        %v538 = vpack.c.b16 %v482, %v481
        %v539 = vpack.c.b16 %v484, %v483
        %v540 = vpack.c.b16 %v486, %v485
        %v541 = vpack.c.b16 %v488, %v487
        %v542 = vpack.c.b16 %v490, %v489
        %v543 = vpack.c.b16 %v492, %v491
        %v544 = vpack.c.b16 %v494, %v493
        %v545 = vpack.c.b16 %v496, %v495
        %v546 = vpack.c.b16 %v498, %v497
        %v547 = vpack.c.b16 %v500, %v499
        %v548 = vpack.c.b16 %v502, %v501
        %v549 = vpack.c.b16 %v504, %v503
        %v550 = vpack.c.b16 %v506, %v505
        %v551 = vpack.c.b16 %v508, %v507
        %v552 = vpack.c.b16 %v510, %v509
        %v553 = vpack.c.b16 %v512, %v511
        %v554 = vpack.c.b16 %v514, %v513
        %v555 = vpack.c.b16 %v516, %v515
        %v556 = vpack.c.b16 %v518, %v517
        %v557 = vpack.c.b16 %v520, %v519
        %v558 = vpack.c.b16 %v522, %v521
        %v559 = vpack.c.b16 %v524, %v523
        %v560 = vpack.c.b16 %v526, %v525
        %v561 = vpack.c.b16 %v528, %v527
        %v562 = vpack.c.b16 %v530, %v529
        %595 = vmatprep.subr.bf16.mxu0 0
        %596 = vmatpush1.bf16.msra.mxu0 %v531
        %597 = vmatprep.subr.bf16.mxu0 0
        %598 = vmatpush1.bf16.msra.mxu0 %v532
        %599 = vmatprep.subr.bf16.mxu0 0
        %600 = vmatpush1.bf16.msra.mxu0 %v533
        %601 = vmatprep.subr.bf16.mxu0 0
        %602 = vmatpush1.bf16.msra.mxu0 %v534
        %603 = vmatprep.subr.bf16.mxu0 0
        %604 = vmatpush1.bf16.msra.mxu0 %v535
        %605 = vmatprep.subr.bf16.mxu0 0
        %606 = vmatpush1.bf16.msra.mxu0 %v536
        %607 = vmatprep.subr.bf16.mxu0 0
        %608 = vmatpush1.bf16.msra.mxu0 %v537
        %609 = vmatprep.subr.bf16.mxu0 0
        %610 = vmatpush1.bf16.msra.mxu0 %v538
        %611 = vmatprep.subr.bf16.mxu0 0
        %612 = vmatpush1.bf16.msra.mxu0 %v539
        %613 = vmatprep.subr.bf16.mxu0 0
        %614 = vmatpush1.bf16.msra.mxu0 %v540
        %615 = vmatprep.subr.bf16.mxu0 0
        %616 = vmatpush1.bf16.msra.mxu0 %v541
        %617 = vmatprep.subr.bf16.mxu0 0
        %618 = vmatpush1.bf16.msra.mxu0 %v542
        %619 = vmatprep.subr.bf16.mxu0 0
        %620 = vmatpush1.bf16.msra.mxu0 %v543
        %621 = vmatprep.subr.bf16.mxu0 0
        %622 = vmatpush1.bf16.msra.mxu0 %v544
        %623 = vmatprep.subr.bf16.mxu0 0
        %624 = vmatpush1.bf16.msra.mxu0 %v545
        %625 = vmatprep.subr.bf16.mxu0 0
        %626 = vmatpush1.bf16.msra.mxu0 %v546
        %627 = vmatprep.mubr.bf16.mxu0 %v388
        %628 = vmatmul.mubr.bf16.gmra.mrb[0].mxu0 %v387
        %v629 = vpop.f32.mrb[0].mxu0
        %v630 = vadd.f32 0.0, %v629
        %v631 = vpop.f32.mrb[0].mxu0
        %v632 = vpop.f32.mrb[0].mxu0
        %v633 = vadd.f32 0.0, %v632
        %v634 = vpop.f32.mrb[0].mxu0
        %635 = vmatprep.mubr.bf16.mxu0 %v392
        %636 = vmatmul.mubr.bf16.gmra.mrb[0].mxu0 %v391
        %v637 = vpop.f32.mrb[0].mxu0
        %v638 = vadd.f32 0.0, %v637
        %v639 = vpop.f32.mrb[0].mxu0
        %v640 = vpop.f32.mrb[0].mxu0
        %v641 = vpop.f32.mrb[0].mxu0
        %642 = vdwg.mxu0
        %643 = vmatprep.subr.bf16.mxu0 0
        %644 = vmatpush1.bf16.msra.mxu0 %v547
        %645 = vmatprep.subr.bf16.mxu0 0
        %646 = vmatpush1.bf16.msra.mxu0 %v548
        %647 = vmatprep.subr.bf16.mxu0 0
        %648 = vmatpush1.bf16.msra.mxu0 %v549
        %649 = vmatprep.subr.bf16.mxu0 0
        %650 = vmatpush1.bf16.msra.mxu0 %v550
        %651 = vmatprep.subr.bf16.mxu0 0
        %652 = vmatpush1.bf16.msra.mxu0 %v551
        %653 = vmatprep.subr.bf16.mxu0 0
        %654 = vmatpush1.bf16.msra.mxu0 %v552
        %655 = vmatprep.subr.bf16.mxu0 0
        %656 = vmatpush1.bf16.msra.mxu0 %v553
        %657 = vmatprep.subr.bf16.mxu0 0
        %658 = vmatpush1.bf16.msra.mxu0 %v554
        %659 = vmatprep.subr.bf16.mxu0 0
        %660 = vmatpush1.bf16.msra.mxu0 %v555
        %661 = vmatprep.subr.bf16.mxu0 0
        %662 = vmatpush1.bf16.msra.mxu0 %v556
        %663 = vmatprep.subr.bf16.mxu0 0
        %664 = vmatpush1.bf16.msra.mxu0 %v557
        %665 = vmatprep.subr.bf16.mxu0 0
        %666 = vmatpush1.bf16.msra.mxu0 %v558
        %667 = vmatprep.subr.bf16.mxu0 0
        %668 = vmatpush1.bf16.msra.mxu0 %v559
        %669 = vmatprep.subr.bf16.mxu0 0
        %670 = vmatpush1.bf16.msra.mxu0 %v560
        %671 = vmatprep.subr.bf16.mxu0 0
        %672 = vmatpush1.bf16.msra.mxu0 %v561
        %673 = vmatprep.subr.bf16.mxu0 0
        %674 = vmatpush1.bf16.msra.mxu0 %v562
        %675 = vmatprep.mubr.bf16.mxu0 %v390
        %676 = vmatmul.mubr.bf16.gmra.mrb[0].mxu0 %v389
        %v677 = vpop.f32.mrb[0].mxu0
        %v678 = vadd.f32 %v630, %v677
        %v679 = vpop.f32.mrb[0].mxu0
        %v680 = vpop.f32.mrb[0].mxu0
        %v681 = vadd.f32 %v633, %v680
        %v682 = vpop.f32.mrb[0].mxu0
        %683 = vmatprep.mubr.bf16.mxu0 %v394
        %684 = vmatmul.mubr.bf16.gmra.mrb[0].mxu0 %v393
        %v685 = vpop.f32.mrb[0].mxu0
        %v686 = vadd.f32 %v638, %v685
        %v687 = vpop.f32.mrb[0].mxu0
        %v688 = vpop.f32.mrb[0].mxu0
        %v689 = vpop.f32.mrb[0].mxu0
        %690 = vdwg.mxu0
        %v691 = vadd.f32 %v296, %v678
        %v692 = vadd.f32 %v297, %v681
        %v693 = vadd.f32 %v298, %v686
        %694 = vst [vmem:[#allocation2] sm:$0xff] %v691
        %695 = vst [vmem:[#allocation2 + $0x8] sm:$0xff] %v692
        %696 = vst [vmem:[#allocation2 + $0x10] sm:$0xff] %v693
        %p697 = scmp.eq.s32.totalorder %s22, 1
        // Predicated region
        $region56: #{_lambda_.13} parent=46 // pred_check
          %p698 = pneg %p697
        $region57: #{_lambda_.13} parent=46 // pred_check_branch
          %700 = sbr.rel (%p698) target = $region59
        $region58: #{_lambda_.13} parent=46 // pred_region
          %v701 = vld [vmem:[#allocation2] sm:$0xff]
          %v702 = vld [vmem:[#allocation2 + $0x8] sm:$0xff]
          %v703 = vld [vmem:[#allocation2 + $0x10] sm:$0xff]
          %704 = vst [vmem:[%s279] sm:$0xff] %v701
          %705 = vst [vmem:[%s279 + $0x8] sm:$0xff] %v702
          %706 = vst [vmem:[%s279 + $0x10] sm:$0xff] %v703
          %v707 = vadd.f32 %v701, %v702
          %v708 = vadd.f32 %v707, %v703
          %v709 = vrot.slane %v708, 4
          %v710 = vadd.f32 %v708, %v709
          %v711 = vrot.slane %v710, 2
          %v712 = vadd.f32 %v710, %v711
          %v713 = vrot.slane %v712, 1
          %v714 = vadd.f32 %v712, %v713
          %v715 = vmul.f32 %v701, %v701
          %v716 = vmul.f32 %v702, %v702
          %v717 = vmul.f32 %v703, %v703
          %v718 = vadd.f32 %v715, %v716
          %v719 = vadd.f32 %v718, %v717
          %v720 = vrot.slane %v719, 4
          %v721 = vadd.f32 %v719, %v720
          %v722 = vrot.slane %v721, 2
          %v723 = vadd.f32 %v721, %v722
          %v724 = vrot.slane %v723, 1
          %v725 = vadd.f32 %v723, %v724
          %v726 = vlaneseq
          %v727 = vshrl.u32 %v726, 7
          %vm728 = vcmp.eq.s32.totalorder %v727, 0
          %vm729 = vcmp.eq.s32.totalorder %v727, 1
          %v730 = vsel %vm729, %v725, 0.0
          %v731 = vsel %vm728, %v714, %v730
          %732 = vst [vmem:[%s287] sm:$0xff] %v731
        $region59: #{_lambda_.13} parent=46 // pred_fallthru
          _
        %s733 = smul.u32 3, %s20
        %p734 = scmp.lt.s32.totalorder %s733, 2
        %s735 = scalar_select %p734, %s733, 2
        %p736 = scmp.lt.s32.totalorder %s21, 0
        %s737 = scalar_select %p736, %s21, 0
        %s738 = sadd.s32 %s737, %s735
        %s739 = smul.addr %s738, 8
        %s740 = scalar_lea.vmem %s2, %s739
        %p741 = scmp.lt.s32.totalorder %s20, 0
        %s742 = scalar_select %p741, %s20, 0
        %p743 = scmp.lt.s32.totalorder %s21, 0
        %s744 = scalar_select %p743, %s21, 0
        %s745 = sadd.s32 %s744, %s742
        %s746 = smul.addr %s745, 8
        %s747 = scalar_lea.vmem %s3, %s746
        // Predicated region
        $region60: #{_lambda_.13} parent=46 // pred_check
          %p748 = pneg %p110
        $region61: #{_lambda_.13} parent=46 // pred_check_branch
          %750 = sbr.rel (%p748) target = $region63
        $region62: #{_lambda_.13} parent=46 // pred_region
          %s751 = smul.u32 3, %s20
        $region63: #{_lambda_.13} parent=46 // pred_fallthru
          _
        // Predicated region
        $region64: #{_lambda_.13} parent=46 // pred_check
          %p752 = pneg %p138
        $region65: #{_lambda_.13} parent=46 // pred_check_branch
          %754 = sbr.rel (%p752) target = $region67
        $region66: #{_lambda_.13} parent=46 // pred_region
          _
        $region67: #{_lambda_.13} parent=46 // pred_fallthru
          _
        // Predicated region
        $region68: #{_lambda_.13} parent=46 // pred_check
          %p755 = pneg %p110
        $region69: #{_lambda_.13} parent=46 // pred_check_branch
          %757 = sbr.rel (%p755) target = $region71
        $region70: #{_lambda_.13} parent=46 // pred_region
          %s758 = smul.u32 3, %s20
          %p759 = scmp.lt.s32.totalorder %s758, 2
          %s760 = scalar_select %p759, %s758, 2
          %p761 = scmp.lt.s32.totalorder %s21, 0
          %s762 = scalar_select %p761, %s21, 0
          %s763 = sadd.s32 %s762, %s760
          %s764 = smul.addr %s763, 8
          %s765 = scalar_lea.vmem %s2, %s764
        $region71: #{_lambda_.13} parent=46 // pred_fallthru
          _
        // Predicated region
        $region72: #{_lambda_.13} parent=46 // pred_check
          %p766 = pneg %p138
        $region73: #{_lambda_.13} parent=46 // pred_check_branch
          %768 = sbr.rel (%p766) target = $region75
        $region74: #{_lambda_.13} parent=46 // pred_region
          %p769 = scmp.lt.s32.totalorder %s20, 0
          %s770 = scalar_select %p769, %s20, 0
          %p771 = scmp.lt.s32.totalorder %s21, 0
          %s772 = scalar_select %p771, %s21, 0
          %s773 = sadd.s32 %s772, %s770
          %s774 = smul.addr %s773, 8
          %s775 = scalar_lea.vmem %s3, %s774
        $region75: #{_lambda_.13} parent=46 // pred_fallthru
          _
      $region47: #{_lambda_.13} parent=5 // pred_fallthru
        _
      %p776 = scmp.le.s32.totalorder 2, %s10
      // Predicated region
      $region76: #{_lambda_.13} parent=5 // pred_check
        %p777 = pneg %p776
      $region77: #{_lambda_.13} parent=5 // pred_check_branch
        %779 = sbr.rel (%p777) target = $region79
      $region78: #{_lambda_.13} parent=5 // pred_region
        %s780 = ssub.s32 %s10, 2
      $region79: #{_lambda_.13} parent=5 // pred_fallthru
        _
    $region6: #{_lambda_.13} parent=1 // loop_footer
      %s14 = sadd.s32 1, %s10
    $region7: #{_lambda_.13} parent=1 // loop_footer_branch
      %9 = sbr.rel target = $region3
    $region8: #{_lambda_.13} parent=1 // loop_exit
      _

// kernel: _lambda_.15
$region0: #{_lambda_.15}
  #allocation0 [shape = 'u32[]', space=smem, size = 0x4, offset = 0x4, fixed_abs, tag = 'smem constant byte address 0x4 - core index']
  #allocation1 [shape = 'u32[144,128]{1,0:T(1,128)}', space=vmem, size = 0x12000, scoped, tag = 'internal scratch']
  #allocation2 [shape = 'f32[8,128]{1,0:T(8,128)}', space=vmem, size = 0x1000, scoped, tag = 'scratch operand']
  %s0 = inlined_call_operand.vmem [shape: bf16[8,2048], index: 0, kind: input, shape index: {}]
  %s1 = inlined_call_operand.vmem [shape: bf16[2048,128], index: 1, kind: input, shape index: {}]
  %s2 = inlined_call_operand.vmem [shape: f32[1,128], index: 2, kind: input, shape index: {}]
  %s3 = inlined_call_operand.vmem [shape: f32[8,128], index: 3, kind: output, shape index: {}]
  %s4 = sld [smem:[#allocation0]]
  $region53: #{_lambda_.15} parent=0
    _
  %s6 = ssub.s32 1, %s4
  %s7 = scalar_select 0, %s6, %s4
  loop: start=0, step=1, limit=6
  $region2: #{_lambda_.15} parent=0 // loop_pre_header
    _
  $region3: #{_lambda_.15} parent=0 // loop_header
    %s9 = sphi 0, %s13
    %p10 = scmp.ge.s32.totalorder %s9, 6
    %s16 = sphi 0, %s35
    %s17 = sphi 0, %s31
    %s18 = sphi 0, %s27
    %s19 = sphi 0, %s16
    %s20 = sphi 0, %s17
    %s21 = sphi 0, %s18
    %s22 = sphi 0, %s19
    %s23 = sphi 0, %s20
    %s24 = sphi 0, %s21
    %s40 = sphi 0, %s42
    %s43 = sphi 0, %s40
    %s44 = sphi 0, %s43
    %s60 = sphi 0, %s44
    %s68 = sphi 0, %s70
    %s71 = sphi 0, %s68
    %s72 = sphi 0, %s71
    %s88 = sphi 0, %s72
    %s94 = sphi 0, %s96
    %s97 = sphi 0, %s94
    %s98 = sphi 0, %s97
    %s114 = sphi 0, %s98
    %s122 = sphi 0, %s124
    %s125 = sphi 0, %s122
    %s126 = sphi 0, %s125
    %s142 = sphi 0, %s126
  $region4: #{_lambda_.15} parent=0 // loop_header_branch
    %12 = sbr.rel (%p10) target = $region8
  $region5: #{_lambda_.15} parent=0 // loop_body
    %s14 = ssub.s32 %s9, 1
    %s15 = ssub.s32 %s9, 2
    %s25 = sadd.s32 1, %s18
    %p26 = scmp.ge.s32.totalorder %s25, 4
    %s27 = scalar_select %p26, 0, %s25
    %s28 = sadd.s32 1, %s17
    %s29 = scalar_select %p26, %s28, %s17
    %p30 = scmp.ge.s32.totalorder %s29, 1
    %s31 = scalar_select %p30, 0, %s29
    %s32 = sadd.s32 1, %s16
    %s33 = scalar_select %p30, %s32, %s16
    %p34 = scmp.ge.s32.totalorder %s33, 1
    %s35 = scalar_select %p34, 0, %s33
    %s36 = ssub.s32 %s16, %s35
    %s37 = ssub.s32 %s18, %s27
    %s38 = sor.u32 %s36, %s37
    %p39 = scmp.eq.s32.totalorder %s38, 0
    %s41 = sadd.s32 %s40, 1
    %s42 = scalar_select %p39, %s40, %s41
    %p45 = pneg %p39
    %p46 = scmp.eq.s32.totalorder %s9, 3
    %p47 = por %p45, %p46
    %p48 = scmp.ne.s32.totalorder %s40, %s43
    %p49 = scmp.eq.s32.totalorder %s9, 0
    %p50 = por %p48, %p49
    %p51 = scmp.ne.s32.totalorder %s40, %s43
    %p52 = scmp.eq.s32.totalorder %s14, 3
    %p53 = por %p51, %p52
    %p54 = scmp.ne.s32.totalorder %s43, %s44
    %p55 = scmp.eq.s32.totalorder %s14, 0
    %p56 = por %p54, %p55
    %p57 = scmp.ne.s32.totalorder %s43, %s44
    %p58 = scmp.eq.s32.totalorder %s15, 3
    %p59 = por %p57, %p58
    %p61 = scmp.ne.s32.totalorder %s44, %s60
    %p62 = scmp.eq.s32.totalorder %s15, 0
    %p63 = por %p61, %p62
    %s64 = ssub.s32 %s18, %s27
    %s65 = ssub.s32 %s17, %s31
    %s66 = sor.u32 %s64, %s65
    %p67 = scmp.eq.s32.totalorder %s66, 0
    %s69 = sadd.s32 %s68, 1
    %s70 = scalar_select %p67, %s68, %s69
    %p73 = pneg %p67
    %p74 = scmp.eq.s32.totalorder %s9, 3
    %p75 = por %p73, %p74
    %p76 = scmp.ne.s32.totalorder %s68, %s71
    %p77 = scmp.eq.s32.totalorder %s9, 0
    %p78 = por %p76, %p77
    %p79 = scmp.ne.s32.totalorder %s68, %s71
    %p80 = scmp.eq.s32.totalorder %s14, 3
    %p81 = por %p79, %p80
    %p82 = scmp.ne.s32.totalorder %s71, %s72
    %p83 = scmp.eq.s32.totalorder %s14, 0
    %p84 = por %p82, %p83
    %p85 = scmp.ne.s32.totalorder %s71, %s72
    %p86 = scmp.eq.s32.totalorder %s15, 3
    %p87 = por %p85, %p86
    %p89 = scmp.ne.s32.totalorder %s72, %s88
    %p90 = scmp.eq.s32.totalorder %s15, 0
    %p91 = por %p89, %p90
    %s92 = ssub.s32 %s17, %s31
    %p93 = scmp.eq.s32.totalorder %s92, 0
    %s95 = sadd.s32 %s94, 1
    %s96 = scalar_select %p93, %s94, %s95
    %p99 = pneg %p93
    %p100 = scmp.eq.s32.totalorder %s9, 3
    %p101 = por %p99, %p100
    %p102 = scmp.ne.s32.totalorder %s94, %s97
    %p103 = scmp.eq.s32.totalorder %s9, 0
    %p104 = por %p102, %p103
    %p105 = scmp.ne.s32.totalorder %s94, %s97
    %p106 = scmp.eq.s32.totalorder %s14, 3
    %p107 = por %p105, %p106
    %p108 = scmp.ne.s32.totalorder %s97, %s98
    %p109 = scmp.eq.s32.totalorder %s14, 0
    %p110 = por %p108, %p109
    %p111 = scmp.ne.s32.totalorder %s97, %s98
    %p112 = scmp.eq.s32.totalorder %s15, 3
    %p113 = por %p111, %p112
    %p115 = scmp.ne.s32.totalorder %s98, %s114
    %p116 = scmp.eq.s32.totalorder %s15, 0
    %p117 = por %p115, %p116
    %s118 = ssub.s32 %s16, %s35
    %s119 = ssub.s32 %s17, %s31
    %s120 = sor.u32 %s118, %s119
    %p121 = scmp.eq.s32.totalorder %s120, 0
    %s123 = sadd.s32 %s122, 1
    %s124 = scalar_select %p121, %s122, %s123
    %p127 = pneg %p121
    %p128 = scmp.eq.s32.totalorder %s9, 3
    %p129 = por %p127, %p128
    %p130 = scmp.ne.s32.totalorder %s122, %s125
    %p131 = scmp.eq.s32.totalorder %s9, 0
    %p132 = por %p130, %p131
    %p133 = scmp.ne.s32.totalorder %s122, %s125
    %p134 = scmp.eq.s32.totalorder %s14, 3
    %p135 = por %p133, %p134
    %p136 = scmp.ne.s32.totalorder %s125, %s126
    %p137 = scmp.eq.s32.totalorder %s14, 0
    %p138 = por %p136, %p137
    %p139 = scmp.ne.s32.totalorder %s125, %s126
    %p140 = scmp.eq.s32.totalorder %s15, 3
    %p141 = por %p139, %p140
    %p143 = scmp.ne.s32.totalorder %s126, %s142
    %p144 = scmp.eq.s32.totalorder %s15, 0
    %p145 = por %p143, %p144
    %p146 = scmp.le.s32.totalorder 1, %s9
    %p147 = scmp.lt.s32.totalorder %s9, 5
    %p148 = pnand %p146, %p147
    %p149 = pneg %p148
    // Predicated region
    $region9: #{_lambda_.15} parent=5 // pred_check
      _
    $region10: #{_lambda_.15} parent=5 // pred_check_branch
      %151 = sbr.rel (%p148) target = $region12
    $region11: #{_lambda_.15} parent=5 // pred_region
      %s152 = ssub.s32 %s9, 1
      // Predicated region
      $region13: #{_lambda_.15} parent=11 // pred_check
        %p153 = pneg %p110
      $region14: #{_lambda_.15} parent=11 // pred_check_branch
        %155 = sbr.rel (%p153) target = $region16
      $region15: #{_lambda_.15} parent=11 // pred_region
        %p156 = scmp.lt.s32.totalorder %s20, 0
        %s157 = scalar_select %p156, %s20, 0
        %s158 = scalar_lea.vmem %s2, %s157
      $region16: #{_lambda_.15} parent=11 // pred_fallthru
        _
    $region12: #{_lambda_.15} parent=5 // pred_fallthru
      _
    %p159 = scmp.lt.s32.totalorder %s9, 4
    // Predicated region
    $region17: #{_lambda_.15} parent=5 // pred_check
      %p160 = pneg %p159
    $region18: #{_lambda_.15} parent=5 // pred_check_branch
      %162 = sbr.rel (%p160) target = $region20
    $region19: #{_lambda_.15} parent=5 // pred_region
      // Predicated region
      $region21: #{_lambda_.15} parent=19 // pred_check
        %p163 = pneg %p50
      $region22: #{_lambda_.15} parent=19 // pred_check_branch
        %165 = sbr.rel (%p163) target = $region24
      $region23: #{_lambda_.15} parent=19 // pred_region
        %s166 = smul.u32 4, %s18
        %p167 = scmp.lt.s32.totalorder %s16, 0
        %s168 = scalar_select %p167, %s16, 0
        %p169 = scmp.lt.s32.totalorder %s166, 15
        %s170 = scalar_select %p169, %s166, 15
        %s171 = smul.addr %s168, 16
        %s172 = sadd.s32 %s170, %s171
        %s173 = smul.addr %s172, 4
        %s174 = scalar_lea.vmem %s0, %s173
        %s175 = smul.u32 4, %s18
      $region24: #{_lambda_.15} parent=19 // pred_fallthru
        _
      // Predicated region
      $region25: #{_lambda_.15} parent=19 // pred_check
        %p176 = pneg %p78
      $region26: #{_lambda_.15} parent=19 // pred_check_branch
        %178 = sbr.rel (%p176) target = $region28
      $region27: #{_lambda_.15} parent=19 // pred_region
        %s179 = smul.u32 64, %s18
        %p180 = scmp.lt.s32.totalorder %s179, 255
        %s181 = scalar_select %p180, %s179, 255
        %p182 = scmp.lt.s32.totalorder %s17, 0
        %s183 = scalar_select %p182, %s17, 0
        %s184 = sadd.s32 %s183, %s181
        %s185 = smul.addr %s184, 4
        %s186 = scalar_lea.vmem %s1, %s185
        %s187 = smul.u32 64, %s18
      $region28: #{_lambda_.15} parent=19 // pred_fallthru
        _
    $region20: #{_lambda_.15} parent=5 // pred_fallthru
      _
    %p188 = scmp.le.s32.totalorder 1, %s9
    %p189 = scmp.lt.s32.totalorder %s9, 5
    %p190 = pnand %p188, %p189
    %p191 = pneg %p190
    // Predicated region
    $region29: #{_lambda_.15} parent=5 // pred_check
      _
    $region30: #{_lambda_.15} parent=5 // pred_check_branch
      %193 = sbr.rel (%p190) target = $region32
    $region31: #{_lambda_.15} parent=5 // pred_region
      %s194 = ssub.s32 %s9, 1
      %s195 = smul.u32 4, %s21
      %p196 = scmp.lt.s32.totalorder %s19, 0
      %s197 = scalar_select %p196, %s19, 0
      %p198 = scmp.lt.s32.totalorder %s195, 15
      %s199 = scalar_select %p198, %s195, 15
      %s200 = smul.addr %s197, 16
      %s201 = sadd.s32 %s199, %s200
      %s202 = smul.addr %s201, 4
      %s203 = scalar_lea.vmem %s0, %s202
      %p204 = pneg %p56
      %p205 = pneg %p53
      %s206 = smul.u32 64, %s21
      %p207 = scmp.lt.s32.totalorder %s206, 255
      %s208 = scalar_select %p207, %s206, 255
      %p209 = scmp.lt.s32.totalorder %s20, 0
      %s210 = scalar_select %p209, %s20, 0
      %s211 = sadd.s32 %s210, %s208
      %s212 = smul.addr %s211, 4
      %s213 = scalar_lea.vmem %s1, %s212
      %p214 = pneg %p84
      %p215 = pneg %p81
      %p216 = scmp.lt.s32.totalorder %s20, 0
      %s217 = scalar_select %p216, %s20, 0
      %s218 = scalar_lea.vmem %s2, %s217
      %p219 = pneg %p110
      %p220 = pneg %p107
      %p221 = pneg %p138
      %p222 = pneg %p135
      %p223 = scmp.lt.s32.totalorder %s19, 0
      %s224 = scalar_select %p223, %s19, 0
      %p225 = scmp.lt.s32.totalorder %s20, 0
      %s226 = scalar_select %p225, %s20, 0
      %s227 = sadd.s32 %s226, %s224
      %s228 = smul.addr %s227, 8
      %s229 = scalar_lea.vmem %s3, %s228
      %s230 = smul.u32 4, %s21
      %p231 = scmp.lt.s32.totalorder %s19, 0
      %s232 = scalar_select %p231, %s19, 0
      %p233 = scmp.lt.s32.totalorder %s230, 15
      %s234 = scalar_select %p233, %s230, 15
      %s235 = smul.addr %s232, 16
      %s236 = sadd.s32 %s234, %s235
      %s237 = smul.addr %s236, 4
      %s238 = scalar_lea.vmem %s0, %s237
      %s239 = smul.u32 4, %s21
      %s240 = smul.u32 64, %s21
      %p241 = scmp.lt.s32.totalorder %s240, 255
      %s242 = scalar_select %p241, %s240, 255
      %p243 = scmp.lt.s32.totalorder %s20, 0
      %s244 = scalar_select %p243, %s20, 0
      %s245 = sadd.s32 %s244, %s242
      %s246 = smul.addr %s245, 4
      %s247 = scalar_lea.vmem %s1, %s246
      %s248 = smul.u32 64, %s21
      %p249 = scmp.lt.s32.totalorder %s20, 0
      %s250 = scalar_select %p249, %s20, 0
      %s251 = scalar_lea.vmem %s2, %s250
      %p252 = scmp.lt.s32.totalorder %s19, 0
      %s253 = scalar_select %p252, %s19, 0
      %p254 = scmp.lt.s32.totalorder %s20, 0
      %s255 = scalar_select %p254, %s20, 0
      %s256 = sadd.s32 %s255, %s253
      %s257 = smul.addr %s256, 8
      %s258 = scalar_lea.vmem %s3, %s257
      %p260 = scmp.eq.s32.totalorder %s21, 0
      // Predicated region
      $region33: #{_lambda_.15} parent=31 // pred_check
        %p261 = pneg %p260
      $region34: #{_lambda_.15} parent=31 // pred_check_branch
        %263 = sbr.rel (%p261) target = $region36
      $region35: #{_lambda_.15} parent=31 // pred_region
        %264 = vst [vmem:[#allocation2] sm:$0xff] 0.0
      $region36: #{_lambda_.15} parent=31 // pred_fallthru
        _
      %v265 = vld [vmem:[#allocation2] sm:$0xff]
      %v266 = vld [vmem:[%s238] sm:$0xff]
      %v267 = vld [vmem:[%s238 + $0x8] sm:$0xff]
      %v268 = vld [vmem:[%s247] sm:$0xf]
      %v269 = vld [vmem:[%s247 + $0x4] sm:$0xf]
      %v270 = vld [vmem:[%s247 + $0x8] sm:$0xf]
      %v271 = vld [vmem:[%s247 + $0xc] sm:$0xf]
      %v272 = vld [vmem:[%s247 + $0x10] sm:$0xf]
      %v273 = vld [vmem:[%s247 + $0x14] sm:$0xf]
      %v274 = vld [vmem:[%s247 + $0x18] sm:$0xf]
      %v275 = vld [vmem:[%s247 + $0x1c] sm:$0xf]
      %v276 = vld [vmem:[%s247 + $0x20] sm:$0xf]
      %v277 = vld [vmem:[%s247 + $0x24] sm:$0xf]
      %v278 = vld [vmem:[%s247 + $0x28] sm:$0xf]
      %v279 = vld [vmem:[%s247 + $0x2c] sm:$0xf]
      %v280 = vld [vmem:[%s247 + $0x30] sm:$0xf]
      %v281 = vld [vmem:[%s247 + $0x34] sm:$0xf]
      %v282 = vld [vmem:[%s247 + $0x38] sm:$0xf]
      %v283 = vld [vmem:[%s247 + $0x3c] sm:$0xf]
      %v284 = vld [vmem:[%s247 + $0x40] sm:$0xf]
      %v285 = vld [vmem:[%s247 + $0x44] sm:$0xf]
      %v286 = vld [vmem:[%s247 + $0x48] sm:$0xf]
      %v287 = vld [vmem:[%s247 + $0x4c] sm:$0xf]
      %v288 = vld [vmem:[%s247 + $0x50] sm:$0xf]
      %v289 = vld [vmem:[%s247 + $0x54] sm:$0xf]
      %v290 = vld [vmem:[%s247 + $0x58] sm:$0xf]
      %v291 = vld [vmem:[%s247 + $0x5c] sm:$0xf]
      %v292 = vld [vmem:[%s247 + $0x60] sm:$0xf]
      %v293 = vld [vmem:[%s247 + $0x64] sm:$0xf]
      %v294 = vld [vmem:[%s247 + $0x68] sm:$0xf]
      %v295 = vld [vmem:[%s247 + $0x6c] sm:$0xf]
      %v296 = vld [vmem:[%s247 + $0x70] sm:$0xf]
      %v297 = vld [vmem:[%s247 + $0x74] sm:$0xf]
      %v298 = vld [vmem:[%s247 + $0x78] sm:$0xf]
      %v299 = vld [vmem:[%s247 + $0x7c] sm:$0xf]
      %v300 = vld [vmem:[%s247 + $0x80] sm:$0xf]
      %v301 = vld [vmem:[%s247 + $0x84] sm:$0xf]
      %v302 = vld [vmem:[%s247 + $0x88] sm:$0xf]
      %v303 = vld [vmem:[%s247 + $0x8c] sm:$0xf]
      %v304 = vld [vmem:[%s247 + $0x90] sm:$0xf]
      %v305 = vld [vmem:[%s247 + $0x94] sm:$0xf]
      %v306 = vld [vmem:[%s247 + $0x98] sm:$0xf]
      %v307 = vld [vmem:[%s247 + $0x9c] sm:$0xf]
      %v308 = vld [vmem:[%s247 + $0xa0] sm:$0xf]
      %v309 = vld [vmem:[%s247 + $0xa4] sm:$0xf]
      %v310 = vld [vmem:[%s247 + $0xa8] sm:$0xf]
      %v311 = vld [vmem:[%s247 + $0xac] sm:$0xf]
      %v312 = vld [vmem:[%s247 + $0xb0] sm:$0xf]
      %v313 = vld [vmem:[%s247 + $0xb4] sm:$0xf]
      %v314 = vld [vmem:[%s247 + $0xb8] sm:$0xf]
      %v315 = vld [vmem:[%s247 + $0xbc] sm:$0xf]
      %v316 = vld [vmem:[%s247 + $0xc0] sm:$0xf]
      %v317 = vld [vmem:[%s247 + $0xc4] sm:$0xf]
      %v318 = vld [vmem:[%s247 + $0xc8] sm:$0xf]
      %v319 = vld [vmem:[%s247 + $0xcc] sm:$0xf]
      %v320 = vld [vmem:[%s247 + $0xd0] sm:$0xf]
      %v321 = vld [vmem:[%s247 + $0xd4] sm:$0xf]
      %v322 = vld [vmem:[%s247 + $0xd8] sm:$0xf]
      %v323 = vld [vmem:[%s247 + $0xdc] sm:$0xf]
      %v324 = vld [vmem:[%s247 + $0xe0] sm:$0xf]
      %v325 = vld [vmem:[%s247 + $0xe4] sm:$0xf]
      %v326 = vld [vmem:[%s247 + $0xe8] sm:$0xf]
      %v327 = vld [vmem:[%s247 + $0xec] sm:$0xf]
      %v328 = vld [vmem:[%s247 + $0xf0] sm:$0xf]
      %v329 = vld [vmem:[%s247 + $0xf4] sm:$0xf]
      %v330 = vld [vmem:[%s247 + $0xf8] sm:$0xf]
      %v331 = vld [vmem:[%s247 + $0xfc] sm:$0xf]
      %v334 = vunpack.c.l.b16 %v266
      %v335 = vunpack.c.h.b16 %v266
      %v336 = vunpack.c.l.b16 %v267
      %v337 = vunpack.c.h.b16 %v267
      %v338 = vpack.c.b16 %v334, %v334
      %v339 = vpack.c.b16 %v335, %v335
      %v340 = vpack.c.b16 %v336, %v336
      %v341 = vpack.c.b16 %v337, %v337
      %v410 = vunpack.c.l.b16 %v268
      %v411 = vunpack.c.l.b16 %v269
      %v412 = vunpack.c.l.b16 %v270
      %v413 = vunpack.c.l.b16 %v271
      %v414 = vunpack.c.l.b16 %v272
      %v415 = vunpack.c.l.b16 %v273
      %v416 = vunpack.c.l.b16 %v274
      %v417 = vunpack.c.l.b16 %v275
      %v418 = vunpack.c.l.b16 %v276
      %v419 = vunpack.c.l.b16 %v277
      %v420 = vunpack.c.l.b16 %v278
      %v421 = vunpack.c.l.b16 %v279
      %v422 = vunpack.c.l.b16 %v280
      %v423 = vunpack.c.l.b16 %v281
      %v424 = vunpack.c.l.b16 %v282
      %v425 = vunpack.c.l.b16 %v283
      %v426 = vunpack.c.l.b16 %v284
      %v427 = vunpack.c.l.b16 %v285
      %v428 = vunpack.c.l.b16 %v286
      %v429 = vunpack.c.l.b16 %v287
      %v430 = vunpack.c.l.b16 %v288
      %v431 = vunpack.c.l.b16 %v289
      %v432 = vunpack.c.l.b16 %v290
      %v433 = vunpack.c.l.b16 %v291
      %v434 = vunpack.c.l.b16 %v292
      %v435 = vunpack.c.l.b16 %v293
      %v436 = vunpack.c.l.b16 %v294
      %v437 = vunpack.c.l.b16 %v295
      %v438 = vunpack.c.l.b16 %v296
      %v439 = vunpack.c.l.b16 %v297
      %v440 = vunpack.c.l.b16 %v298
      %v441 = vunpack.c.l.b16 %v299
      %v442 = vunpack.c.l.b16 %v300
      %v443 = vunpack.c.l.b16 %v301
      %v444 = vunpack.c.l.b16 %v302
      %v445 = vunpack.c.l.b16 %v303
      %v446 = vunpack.c.l.b16 %v304
      %v447 = vunpack.c.l.b16 %v305
      %v448 = vunpack.c.l.b16 %v306
      %v449 = vunpack.c.l.b16 %v307
      %v450 = vunpack.c.l.b16 %v308
      %v451 = vunpack.c.l.b16 %v309
      %v452 = vunpack.c.l.b16 %v310
      %v453 = vunpack.c.l.b16 %v311
      %v454 = vunpack.c.l.b16 %v312
      %v455 = vunpack.c.l.b16 %v313
      %v456 = vunpack.c.l.b16 %v314
      %v457 = vunpack.c.l.b16 %v315
      %v458 = vunpack.c.l.b16 %v316
      %v459 = vunpack.c.l.b16 %v317
      %v460 = vunpack.c.l.b16 %v318
      %v461 = vunpack.c.l.b16 %v319
      %v462 = vunpack.c.l.b16 %v320
      %v463 = vunpack.c.l.b16 %v321
      %v464 = vunpack.c.l.b16 %v322
      %v465 = vunpack.c.l.b16 %v323
      %v466 = vunpack.c.l.b16 %v324
      %v467 = vunpack.c.l.b16 %v325
      %v468 = vunpack.c.l.b16 %v326
      %v469 = vunpack.c.l.b16 %v327
      %v470 = vunpack.c.l.b16 %v328
      %v471 = vunpack.c.l.b16 %v329
      %v472 = vunpack.c.l.b16 %v330
      %v473 = vunpack.c.l.b16 %v331
      %v474 = vpack.c.b16 %v411, %v410
      %v475 = vpack.c.b16 %v413, %v412
      %v476 = vpack.c.b16 %v415, %v414
      %v477 = vpack.c.b16 %v417, %v416
      %v478 = vpack.c.b16 %v419, %v418
      %v479 = vpack.c.b16 %v421, %v420
      %v480 = vpack.c.b16 %v423, %v422
      %v481 = vpack.c.b16 %v425, %v424
      %v482 = vpack.c.b16 %v427, %v426
      %v483 = vpack.c.b16 %v429, %v428
      %v484 = vpack.c.b16 %v431, %v430
      %v485 = vpack.c.b16 %v433, %v432
      %v486 = vpack.c.b16 %v435, %v434
      %v487 = vpack.c.b16 %v437, %v436
      %v488 = vpack.c.b16 %v439, %v438
      %v489 = vpack.c.b16 %v441, %v440
      %v490 = vpack.c.b16 %v443, %v442
      %v491 = vpack.c.b16 %v445, %v444
      %v492 = vpack.c.b16 %v447, %v446
      %v493 = vpack.c.b16 %v449, %v448
      %v494 = vpack.c.b16 %v451, %v450
      %v495 = vpack.c.b16 %v453, %v452
      %v496 = vpack.c.b16 %v455, %v454
      %v497 = vpack.c.b16 %v457, %v456
      %v498 = vpack.c.b16 %v459, %v458
      %v499 = vpack.c.b16 %v461, %v460
      %v500 = vpack.c.b16 %v463, %v462
      %v501 = vpack.c.b16 %v465, %v464
      %v502 = vpack.c.b16 %v467, %v466
      %v503 = vpack.c.b16 %v469, %v468
      %v504 = vpack.c.b16 %v471, %v470
      %v505 = vpack.c.b16 %v473, %v472
      %538 = vmatprep.subr.bf16.mxu0 0
      %539 = vmatpush1.bf16.msra.mxu0 %v474
      %540 = vmatprep.subr.bf16.mxu0 0
      %541 = vmatpush1.bf16.msra.mxu0 %v475
      %542 = vmatprep.subr.bf16.mxu0 0
      %543 = vmatpush1.bf16.msra.mxu0 %v476
      %544 = vmatprep.subr.bf16.mxu0 0
      %545 = vmatpush1.bf16.msra.mxu0 %v477
      %546 = vmatprep.subr.bf16.mxu0 0
      %547 = vmatpush1.bf16.msra.mxu0 %v478
      %548 = vmatprep.subr.bf16.mxu0 0
      %549 = vmatpush1.bf16.msra.mxu0 %v479
      %550 = vmatprep.subr.bf16.mxu0 0
      %551 = vmatpush1.bf16.msra.mxu0 %v480
      %552 = vmatprep.subr.bf16.mxu0 0
      %553 = vmatpush1.bf16.msra.mxu0 %v481
      %554 = vmatprep.subr.bf16.mxu0 0
      %555 = vmatpush1.bf16.msra.mxu0 %v482
      %556 = vmatprep.subr.bf16.mxu0 0
      %557 = vmatpush1.bf16.msra.mxu0 %v483
      %558 = vmatprep.subr.bf16.mxu0 0
      %559 = vmatpush1.bf16.msra.mxu0 %v484
      %560 = vmatprep.subr.bf16.mxu0 0
      %561 = vmatpush1.bf16.msra.mxu0 %v485
      %562 = vmatprep.subr.bf16.mxu0 0
      %563 = vmatpush1.bf16.msra.mxu0 %v486
      %564 = vmatprep.subr.bf16.mxu0 0
      %565 = vmatpush1.bf16.msra.mxu0 %v487
      %566 = vmatprep.subr.bf16.mxu0 0
      %567 = vmatpush1.bf16.msra.mxu0 %v488
      %568 = vmatprep.subr.bf16.mxu0 0
      %569 = vmatpush1.bf16.msra.mxu0 %v489
      %570 = vmatprep.mubr.bf16.mxu0 %v339
      %571 = vmatmul.mubr.bf16.gmra.mrb[0].mxu0 %v338
      %v572 = vpop.f32.mrb[0].mxu0
      %v573 = vadd.f32 0.0, %v572
      %v574 = vpop.f32.mrb[0].mxu0
      %v575 = vpop.f32.mrb[0].mxu0
      %v576 = vpop.f32.mrb[0].mxu0
      %577 = vdwg.mxu0
      %578 = vmatprep.subr.bf16.mxu0 0
      %579 = vmatpush1.bf16.msra.mxu0 %v490
      %580 = vmatprep.subr.bf16.mxu0 0
      %581 = vmatpush1.bf16.msra.mxu0 %v491
      %582 = vmatprep.subr.bf16.mxu0 0
      %583 = vmatpush1.bf16.msra.mxu0 %v492
      %584 = vmatprep.subr.bf16.mxu0 0
      %585 = vmatpush1.bf16.msra.mxu0 %v493
      %586 = vmatprep.subr.bf16.mxu0 0
      %587 = vmatpush1.bf16.msra.mxu0 %v494
      %588 = vmatprep.subr.bf16.mxu0 0
      %589 = vmatpush1.bf16.msra.mxu0 %v495
      %590 = vmatprep.subr.bf16.mxu0 0
      %591 = vmatpush1.bf16.msra.mxu0 %v496
      %592 = vmatprep.subr.bf16.mxu0 0
      %593 = vmatpush1.bf16.msra.mxu0 %v497
      %594 = vmatprep.subr.bf16.mxu0 0
      %595 = vmatpush1.bf16.msra.mxu0 %v498
      %596 = vmatprep.subr.bf16.mxu0 0
      %597 = vmatpush1.bf16.msra.mxu0 %v499
      %598 = vmatprep.subr.bf16.mxu0 0
      %599 = vmatpush1.bf16.msra.mxu0 %v500
      %600 = vmatprep.subr.bf16.mxu0 0
      %601 = vmatpush1.bf16.msra.mxu0 %v501
      %602 = vmatprep.subr.bf16.mxu0 0
      %603 = vmatpush1.bf16.msra.mxu0 %v502
      %604 = vmatprep.subr.bf16.mxu0 0
      %605 = vmatpush1.bf16.msra.mxu0 %v503
      %606 = vmatprep.subr.bf16.mxu0 0
      %607 = vmatpush1.bf16.msra.mxu0 %v504
      %608 = vmatprep.subr.bf16.mxu0 0
      %609 = vmatpush1.bf16.msra.mxu0 %v505
      %610 = vmatprep.mubr.bf16.mxu0 %v341
      %611 = vmatmul.mubr.bf16.gmra.mrb[0].mxu0 %v340
      %v612 = vpop.f32.mrb[0].mxu0
      %v613 = vadd.f32 %v573, %v612
      %v614 = vpop.f32.mrb[0].mxu0
      %v615 = vpop.f32.mrb[0].mxu0
      %v616 = vpop.f32.mrb[0].mxu0
      %617 = vdwg.mxu0
      %v618 = vadd.f32 %v265, %v613
      %619 = vst [vmem:[#allocation2] sm:$0xff] %v618
      %p620 = scmp.eq.s32.totalorder %s21, 3
      // Predicated region
      $region37: #{_lambda_.15} parent=31 // pred_check
        %p621 = pneg %p620
      $region38: #{_lambda_.15} parent=31 // pred_check_branch
        %623 = sbr.rel (%p621) target = $region40
      $region39: #{_lambda_.15} parent=31 // pred_region
        %v624 = vld [vmem:[#allocation2] sm:$0xff]
        %v625 = vld [vmem:[%s251] sm:$0x1]
        %v627 = vlaneseq
        %v628 = vshrl.u32 %v627, 7
        %v629 = vsub.s32 0, %v628
        %v630 = vrot.slane %v625, %v629
        %v632 = vadd.f32 %v624, %v630
        %633 = vst [vmem:[%s258] sm:$0xff] %v632
      $region40: #{_lambda_.15} parent=31 // pred_fallthru
        _
      %p634 = scmp.lt.s32.totalorder %s19, 0
      %s635 = scalar_select %p634, %s19, 0
      %p636 = scmp.lt.s32.totalorder %s20, 0
      %s637 = scalar_select %p636, %s20, 0
      %s638 = sadd.s32 %s637, %s635
      %s639 = smul.addr %s638, 8
      %s640 = scalar_lea.vmem %s3, %s639
      // Predicated region
      $region41: #{_lambda_.15} parent=31 // pred_check
        %p641 = pneg %p135
      $region42: #{_lambda_.15} parent=31 // pred_check_branch
        %643 = sbr.rel (%p641) target = $region44
      $region43: #{_lambda_.15} parent=31 // pred_region
        _
      $region44: #{_lambda_.15} parent=31 // pred_fallthru
        _
      // Predicated region
      $region45: #{_lambda_.15} parent=31 // pred_check
        %p644 = pneg %p135
      $region46: #{_lambda_.15} parent=31 // pred_check_branch
        %646 = sbr.rel (%p644) target = $region48
      $region47: #{_lambda_.15} parent=31 // pred_region
        %p647 = scmp.lt.s32.totalorder %s19, 0
        %s648 = scalar_select %p647, %s19, 0
        %p649 = scmp.lt.s32.totalorder %s20, 0
        %s650 = scalar_select %p649, %s20, 0
        %s651 = sadd.s32 %s650, %s648
        %s652 = smul.addr %s651, 8
        %s653 = scalar_lea.vmem %s3, %s652
      $region48: #{_lambda_.15} parent=31 // pred_fallthru
        _
    $region32: #{_lambda_.15} parent=5 // pred_fallthru
      _
    %p654 = scmp.le.s32.totalorder 2, %s9
    // Predicated region
    $region49: #{_lambda_.15} parent=5 // pred_check
      %p655 = pneg %p654
    $region50: #{_lambda_.15} parent=5 // pred_check_branch
      %657 = sbr.rel (%p655) target = $region52
    $region51: #{_lambda_.15} parent=5 // pred_region
      %s658 = ssub.s32 %s9, 2
    $region52: #{_lambda_.15} parent=5 // pred_fallthru
      _
  $region6: #{_lambda_.15} parent=0 // loop_footer
    %s13 = sadd.s32 1, %s9
  $region7: #{_lambda_.15} parent=0 // loop_footer_branch
    %8 = sbr.rel target = $region3
  $region8: #{_lambda_.15} parent=0 // loop_exit
    _

</llo_original>
